<compile_context>
chip_gen: v7x
topology: tpu7x:2x2x1
jax: 0.10.0
libtpu: 0.0.40
codegen_flags: <defaults>
</compile_context>

<pallas_src>
import numpy as np
import jax
import jax.numpy as jnp
from jax import lax
from jax.experimental import pallas as pl
from jax.experimental.pallas import tpu as pltpu  # noqa: F401  (TPU backend)

F32 = jnp.float32

# ----------------------------- configuration -------------------------------
B = 2            # batch
U_LEN = 8        # users per propagation path (nodes per graph / CNN seq len)
S_LEN = 6        # source-text sequence length
USER_DIM = 12    # gcn_in_dim == cnn_in_dim == propagation_gru_in_dim
GCN_HID = 32
GCN_OUT = 16
SRC_IN = 24      # source_gru_in_dim
SRC_MID = 32     # source_gru_mid_dim
SRC_HID = 16     # source_gru_hid_dim
CNN_FILTER = 3   # cnn_filter_size
CNN_K = 16       # cnn_kernel_size (must equal PROP_HID for the 2nd co-attn)
PROP_HID = 16    # propagation_gru_hid_dim
COATTN1 = 8      # source_gcn_coattn_dim
COATTN2 = 8      # source_cnn_coattn_dim
FC_OUT = 2
FC_IN = GCN_OUT + 2 * SRC_HID + CNN_K + PROP_HID   # 80

assert CNN_K == PROP_HID, "reference wiring requires cnn_kernel_size == propagation_gru_hid_dim"


# --------------------------- weight-slab layout ------------------------------
# Every weight lives in one (SLAB_ROWS, 128) f32 slab: rows start at an
# 8-aligned offset, columns occupy lanes [0, cols).  The same static layout is
# used by the host packer and by the kernel's slice loads, so the whole
# parameter set arrives in ONE DMA.

def _round8(n):
    return (n + 7) & ~7


_SLAB_SPECS = [
    ("gcn_w1", USER_DIM, GCN_HID),
    ("gcn_b1", 1, GCN_HID),
    ("gcn_w2", GCN_HID, GCN_OUT),
    ("gcn_b2", 1, GCN_OUT),
    ("src_fc_w", SRC_IN, SRC_MID),
    ("src_fc_b", 1, SRC_MID),
    ("src_wih", SRC_MID, 3 * SRC_HID),
    ("src_whh", SRC_HID, 3 * SRC_HID),
    ("src_bih", 1, 3 * SRC_HID),
    ("src_bhh", 1, 3 * SRC_HID),
    ("usr_wih", USER_DIM, 3 * PROP_HID),
    ("usr_whh", PROP_HID, 3 * PROP_HID),
    ("usr_bih", 1, 3 * PROP_HID),
    ("usr_bhh", 1, 3 * PROP_HID),
    ("cnn_filt", CNN_FILTER, USER_DIM),
    ("cnn_wk", CNN_FILTER * USER_DIM, CNN_K),
    ("cnn_bk", 1, CNN_K),
    ("wb1", GCN_OUT, SRC_HID),
    ("wq1t", GCN_OUT, COATTN1),
    ("wv12t", SRC_HID, COATTN1 + COATTN2),   # [W_v1^T | W_v2^T] lane-concatenated
    ("whv1t", 1, COATTN1),
    ("wb2", PROP_HID, SRC_HID),
    ("wq2t", PROP_HID, COATTN2),
    ("whv2t", 1, COATTN2),
    ("whq2t", 1, COATTN2),
    ("fc_w", FC_IN, FC_OUT),
    ("fc_b", 1, FC_OUT),
]

_SLAB_OFF = {}
_SLAB_SHAPES = {}
_off = 0
for _name, _r, _c in _SLAB_SPECS:
    _SLAB_OFF[_name] = _off
    _SLAB_SHAPES[_name] = (_r, _c)
    _off += _round8(_r)
SLAB_ROWS = _off          # 456 (multiple of 8)
SLAB_LANES = 128


def pack_slab(named_weights):
    """Host-side: place each kernel-layout weight at its static slab offset."""
    slab = np.zeros((SLAB_ROWS, SLAB_LANES), np.float32)
    for name, w in named_weights.items():
        r, c = _SLAB_SHAPES[name]
        w = np.asarray(w, np.float32)
        assert w.shape == (r, c), (name, w.shape, (r, c))
        o = _SLAB_OFF[name]
        slab[o:o + r, :c] = w
    return jnp.asarray(slab)


# ----------------------------- in-kernel helpers ----------------------------

def _dot(a, b):
    return jnp.dot(a, b, preferred_element_type=F32)


def _dot_bt(a, b):
    """a @ b.T via dot_general (transpose folded into the MXU feed)."""
    return lax.dot_general(a, b, (((1,), (1,)), ((), ())),
                           preferred_element_type=F32)


def _softmax_row(s, *, approx):
    s = s - jnp.max(s, axis=-1, keepdims=True)
    e = jnp.exp(s)
    denom = jnp.sum(e, axis=-1, keepdims=True)
    if approx:
        return e * pl.reciprocal(denom, approx=True)   # EUP slot, off the VALU
    return e / denom


def _gru_scan(x, w_ih, w_hh, b_ih, b_hh, *, collect):
    """Batched GRU, PyTorch gate order (r, z, n), h0 = 0.

    x: (B, T, Din); w_ih: (Din, 3H); w_hh: (H, 3H); b_*: (1, 3H).
    The input-to-hidden contribution is hoisted off the recurrence as ONE
    (B*T, Din) @ (Din, 3H) matmul; the only serial matmul per step is the
    shared (B, H) @ (H, 3H).  Time loop statically unrolled (T = 6 or 8).
    Returns all hidden states (B, T, H) if `collect`, else their time-mean (B, H).
    """
    Bn, T, Din = x.shape
    H = w_hh.shape[0]
    gi = (_dot(x.reshape(Bn * T, Din), w_ih) + b_ih).reshape(Bn, T, 3 * H)
    h = jnp.zeros((Bn, H), F32)
    outs = []
    acc = jnp.zeros((Bn, H), F32)
    for t in range(T):                                 # static unroll
        gh = _dot(h, w_hh) + b_hh                      # (B, 3H) -- only serial matmul
        gi_t = gi[:, t, :]                             # (B, 3H), off the h-chain
        rz = jax.nn.sigmoid(gi_t[:, :2 * H] + gh[:, :2 * H])   # fused r|z sigmoid
        r, z = rz[:, :H], rz[:, H:]
        n = jnp.tanh(gi_t[:, 2 * H:] + r * gh[:, 2 * H:])
        h = (1.0 - z) * n + z * h
        if collect:
            outs.append(h)
        else:
            acc = acc + h
    if collect:
        return jnp.stack(outs, axis=1)                 # (B, T, H)
    return acc * (1.0 / T)                             # (B, H) time-mean


# ------------------------------- fused kernel -------------------------------

def gcan_kernel(src_ref, usr_ref, slab_ref, out_ref):
    Bn, S, _ = src_ref.shape
    _, U, Din = usr_ref.shape
    L = U - CNN_FILTER            # reference loop: range(len - filter_size)

    def w(name):
        """Static slice of the resident weight slab (no extra DMA)."""
        r, c = _SLAB_SHAPES[name]
        o = _SLAB_OFF[name]
        return slab_ref[o:o + r, :c]

    src = src_ref[...]            # (B, S, SRC_IN)
    usr = usr_ref[...]            # (B, U, USER_DIM)

    # ---- GCN branch: fully-connected graph, no edge weights -> mean agg.
    # mean(x @ W) == mean(x) @ W and all node rows are identical, so the
    # 2-layer GCN collapses to two (B, d) matmuls.
    # TODO(synk): reference computes cosine edge weights but never passes them
    # to GCNConv, so they are intentionally omitted.
    row = jnp.mean(usr, axis=1)                               # (B, USER_DIM)
    h1 = _dot(row, w("gcn_w1")) + w("gcn_b1")                 # (B, GCN_HID)
    h2 = _dot(h1, w("gcn_w2")) + w("gcn_b2")                  # (B, GCN_OUT)

    # ---- Source encoder: tanh(Linear) + GRU, both batched over B.
    st = jnp.tanh(_dot(src.reshape(Bn * S, SRC_IN), w("src_fc_w")) + w("src_fc_b"))
    st = st.reshape(Bn, S, SRC_MID)
    src_out = _gru_scan(st, w("src_wih"), w("src_whh"), w("src_bih"), w("src_bhh"),
                        collect=True)                          # (B, S, SRC_HID)

    # ---- CNN encoder as ONE im2col matmul over B*L window rows.
    filt = w("cnn_filt")                                       # (F, USER_DIM)
    cols = [usr[:, f:f + L, :] * filt[f:f + 1, :] for f in range(CNN_FILTER)]
    im2col = jnp.concatenate(cols, axis=2).reshape(Bn * L, CNN_FILTER * Din)
    cnn2d = jnp.maximum(_dot(im2col, w("cnn_wk")) + w("cnn_bk"), 0.0)   # (B*L, CNN_K)

    # ---- Propagation GRU: only the time-mean of its outputs is needed.
    gru_mean = _gru_scan(usr, w("usr_wih"), w("usr_whh"), w("usr_bih"), w("usr_bhh"),
                         collect=False)                        # (B, PROP_HID)

    # ---- Co-attention: weight-shared products batched over B (and over both
    #      attentions for the shared V = src_out side).
    qb1 = _dot(h2, w("wb1"))                                   # (B, 16)  = Q W_b (rows identical)
    aq1u = float(U) * _dot(h2, w("wq1t"))                      # (B, 8)   = Tq * (Q W_q^T) row
    src2d = src_out.reshape(Bn * S, SRC_HID)                   # (B*S, 16)
    a_v12 = _dot(src2d, w("wv12t"))                            # (B*S, 16) = [A_v1 | A_v2]
    qb2 = _dot(cnn2d, w("wb2"))                                # (B*L, 16)
    aq2 = _dot(cnn2d, w("wq2t"))                               # (B*L, 8)
    whv1t, whv2t, whq2t = w("whv1t"), w("whv2t"), w("whq2t")

    whole_rows = []
    for b in range(Bn):                                        # batch-entangled products only
        V = src_out[b]                                         # (S, 16)
        Av1 = a_v12[b * S:(b + 1) * S, :COATTN1]               # (S, 8)
        Av2 = a_v12[b * S:(b + 1) * S, COATTN1:COATTN1 + COATTN2]
        cnn_b = cnn2d[b * L:(b + 1) * L, :]                    # (L, 16)
        qb2_b = qb2[b * L:(b + 1) * L, :]
        aq2_b = aq2[b * L:(b + 1) * L, :]

        # -- co-attention 1 (source <-> gcn).  Q rows are all h2[b], so
        #    C^T A_q is an outer product and the Q-side softmax is exactly
        #    uniform over identical rows -> gcn_output1 == h2[b] (w_hq1 cancels).
        c1 = jnp.sum(V * qb1[b:b + 1, :], axis=1, keepdims=True)      # (S, 1) = V (Q W_b)^T
        Hv1 = jnp.tanh(Av1 + c1 * aq1u[b:b + 1, :])                   # (S, 8)
        av1 = _softmax_row(_dot_bt(whv1t, Hv1), approx=True)          # (1, S)
        gcn1 = h2[b:b + 1, :]                                         # (1, 16)

        # -- co-attention 2 (source <-> cnn), full computation.
        C2 = _dot_bt(qb2_b, V)                                        # (L, S) = Q W_b V^T
        Ct2 = _dot_bt(V, qb2_b)                                       # (S, L) = C^T (no transpose op)
        Hv2 = jnp.tanh(Av2 + _dot(Ct2, aq2_b))                        # (S, 8)
        Hq2 = jnp.tanh(aq2_b + _dot(C2, Av2))                         # (L, 8)
        av2 = _softmax_row(_dot_bt(whv2t, Hv2), approx=True)          # (1, S)
        aq2s = _softmax_row(_dot_bt(whq2t, Hq2), approx=True)         # (1, L)

        # -- attended vectors; the two a_v @ V products share one matmul.
        av12 = jnp.concatenate([av1, av2], axis=0)                    # (2, S)
        src12 = _dot(av12, V)                                         # (2, 16): [src1; src2]
        cnn1 = _dot(aq2s, cnn_b)                                      # (1, 16)

        whole_rows.append(jnp.concatenate(
            [src12[0:1, :], gcn1, src12[1:2, :], cnn1, gru_mean[b:b + 1, :]],
            axis=1))                                                  # (1, 80)

    # ---- Head: one batched Linear -> relu -> softmax, single output store.
    whole = jnp.concatenate(whole_rows, axis=0)                       # (B, 80)
    logits = _dot(whole, w("fc_w")) + w("fc_b")                       # (B, FC_OUT)
    out_ref[...] = _softmax_row(jnp.maximum(logits, 0.0), approx=False)


# ------------------------------ forward wrapper ------------------------------

def gcan_forward(weight_slab, source_text, user_batch):
    n_batch = source_text.shape[0]
    # Single fused grid-less pallas_call: the three inputs (two activations +
    # one weight slab) are full-array VMEM blocks -> 3 input DMAs total.
    return pl.pallas_call(
        gcan_kernel,
        out_shape=jax.ShapeDtypeStruct((n_batch, FC_OUT), F32),
    )(source_text, user_batch, weight_slab)


# ------------------------------ parameter init -------------------------------

def init_params(key):
    """Generate parameters in PyTorch layouts, convert ONCE to kernel-ready
    layouts, and pack everything into the single weight slab."""
    ks = iter(jax.random.split(key, 40))

    def rnd(shape, scale=0.2):
        return (scale * jax.random.normal(next(ks), shape)).astype(F32)

    def linear(din, dout):
        # PyTorch nn.Linear / GCNConv.lin: weight (dout, din), bias (dout,)
        return rnd((dout, din)).T, rnd((dout,)).reshape(1, -1)

    def gru(din, hid):
        # PyTorch nn.GRU: weight_ih (3H, Din), weight_hh (3H, H), biases (3H,),
        # gate order (r, z, n).  Pre-transposed so the kernel computes x @ W.
        w_ih, w_hh = rnd((3 * hid, din)), rnd((3 * hid, hid))
        b_ih, b_hh = rnd((3 * hid,)), rnd((3 * hid,))
        return w_ih.T, w_hh.T, b_ih.reshape(1, -1), b_hh.reshape(1, -1)

    def coattn(dv, dq, k):
        # PyTorch: W_b (dq, dv), W_v (k, dv), W_q (k, dq), w_hv / w_hq (k, 1).
        w_b, w_v, w_q = rnd((dq, dv)), rnd((k, dv)), rnd((k, dq))
        w_hv, w_hq = rnd((k, 1)), rnd((k, 1))
        return w_b, w_v.T, w_q.T, w_hv.T, w_hq.T

    gcn_w1, gcn_b1 = linear(USER_DIM, GCN_HID)
    gcn_w2, gcn_b2 = linear(GCN_HID, GCN_OUT)
    src_fc_w, src_fc_b = linear(SRC_IN, SRC_MID)
    s_wih, s_whh, s_bih, s_bhh = gru(SRC_MID, SRC_HID)
    u_wih, u_whh, u_bih, u_bhh = gru(USER_DIM, PROP_HID)
    cnn_filt = rnd((CNN_FILTER, USER_DIM))
    cnn_wk = rnd((CNN_FILTER * USER_DIM, CNN_K))
    cnn_bk = rnd((CNN_K,)).reshape(1, -1)
    wb1, wv1t, wq1t, whv1t, _whq1t = coattn(SRC_HID, GCN_OUT, COATTN1)   # source <-> gcn
    wb2, wv2t, wq2t, whv2t, whq2t = coattn(SRC_HID, PROP_HID, COATTN2)   # source <-> cnn
    fc_w, fc_b = linear(FC_IN, FC_OUT)

    # _whq1t is drawn for parity with the reference but mathematically unused:
    # co-attention 1's Q rows are identical, so its Q-side softmax is uniform
    # no matter what w_hq1 is.

    named = dict(
        gcn_w1=gcn_w1, gcn_b1=gcn_b1, gcn_w2=gcn_w2, gcn_b2=gcn_b2,
        src_fc_w=src_fc_w, src_fc_b=src_fc_b,
        src_wih=s_wih, src_whh=s_whh, src_bih=s_bih, src_bhh=s_bhh,
        usr_wih=u_wih, usr_whh=u_whh, usr_bih=u_bih, usr_bhh=u_bhh,
        cnn_filt=cnn_filt, cnn_wk=cnn_wk, cnn_bk=cnn_bk,
        wb1=wb1, wq1t=wq1t,
        wv12t=jnp.concatenate([wv1t, wv2t], axis=1),   # fused V-side projection
        whv1t=whv1t,
        wb2=wb2, wq2t=wq2t, whv2t=whv2t, whq2t=whq2t,
        fc_w=fc_w, fc_b=fc_b,
    )
    return pack_slab(named)


# ----------------------------------- main ------------------------------------

if __name__ == "__main__":
    key = jax.random.PRNGKey(0)
    kp, kx, ku = jax.random.split(key, 3)
    weight_slab = init_params(kp)

    source_text = jax.random.normal(kx, (B, S_LEN, SRC_IN), dtype=F32)
    user_batch = jax.random.normal(ku, (B, U_LEN, USER_DIM), dtype=F32)

    out = jax.jit(gcan_forward)(weight_slab, source_text, user_batch)
    out = jax.block_until_ready(out)

    assert out.shape == (B, FC_OUT)
    assert bool(jnp.all(jnp.isfinite(out)))
    # softmax rows must sum to 1 (head softmax uses an exact divide)
    assert bool(jnp.allclose(jnp.sum(out, axis=1), 1.0, atol=1e-5))
    print("KERNEL_OK")
</pallas_src>

<mosaic_0001>
module attributes {stable_mosaic.version = 11 : i64} {
  func.func @gcan_kernel(%arg0: memref<2x6x24xf32, #tpu.memory_space<vmem>>, %arg1: memref<2x8x12xf32, #tpu.memory_space<vmem>>, %arg2: memref<456x128xf32, #tpu.memory_space<vmem>>, %arg3: memref<2x2xf32, #tpu.memory_space<vmem>>) attributes {dimension_semantics = [], scalar_prefetch = 0 : i64, scratch_operands = 0 : i64, tpu.core_type = #tpu.core_type<tc>} {
    %c0 = arith.constant 0 : index
    %c0_0 = arith.constant 0 : index
    %c0_1 = arith.constant 0 : index
    %0 = vector.load %arg0[%c0, %c0_0, %c0_1] : memref<2x6x24xf32, #tpu.memory_space<vmem>>, vector<2x6x24xf32>
    %c0_2 = arith.constant 0 : index
    %c0_3 = arith.constant 0 : index
    %c0_4 = arith.constant 0 : index
    %1 = vector.load %arg1[%c0_2, %c0_3, %c0_4] : memref<2x8x12xf32, #tpu.memory_space<vmem>>, vector<2x8x12xf32>
    %cst = arith.constant dense<0.000000e+00> : vector<2x12xf32>
    %2 = vector.multi_reduction <add>, %1, %cst [1] : vector<2x8x12xf32> to vector<2x12xf32>
    %cst_5 = arith.constant 8.000000e+00 : f32
    %3 = vector.broadcast %cst_5 : f32 to vector<2x12xf32>
    %4 = arith.divf %2, %3 : vector<2x12xf32>
    %c0_6 = arith.constant 0 : index
    %c0_7 = arith.constant 0 : index
    %5 = vector.load %arg2[%c0_6, %c0_7] : memref<456x128xf32, #tpu.memory_space<vmem>>, vector<12x32xf32>
    %cst_8 = arith.constant dense<0.000000e+00> : vector<2x32xf32>
    %6 = tpu.matmul %4, %5, %cst_8 {dimension_numbers = #tpu.dot_dimension_numbers<[1], [0], [0], [1], [0, 0, 1, 1], [], []>} : vector<2x12xf32>, vector<12x32xf32>, vector<2x32xf32> -> vector<2x32xf32>
    %c16 = arith.constant 16 : index
    %c0_9 = arith.constant 0 : index
    %7 = vector.load %arg2[%c16, %c0_9] : memref<456x128xf32, #tpu.memory_space<vmem>>, vector<1x32xf32>
    %8 = vector.broadcast %7 : vector<1x32xf32> to vector<2x32xf32>
    %9 = arith.addf %6, %8 : vector<2x32xf32>
    %c24 = arith.constant 24 : index
    %c0_10 = arith.constant 0 : index
    %10 = vector.load %arg2[%c24, %c0_10] : memref<456x128xf32, #tpu.memory_space<vmem>>, vector<32x16xf32>
    %cst_11 = arith.constant dense<0.000000e+00> : vector<2x16xf32>
    %11 = tpu.matmul %9, %10, %cst_11 {dimension_numbers = #tpu.dot_dimension_numbers<[1], [0], [0], [1], [0, 0, 1, 1], [], []>} : vector<2x32xf32>, vector<32x16xf32>, vector<2x16xf32> -> vector<2x16xf32>
    %c56 = arith.constant 56 : index
    %c0_12 = arith.constant 0 : index
    %12 = vector.load %arg2[%c56, %c0_12] : memref<456x128xf32, #tpu.memory_space<vmem>>, vector<1x16xf32>
    %13 = vector.broadcast %12 : vector<1x16xf32> to vector<2x16xf32>
    %14 = arith.addf %11, %13 : vector<2x16xf32>
    %15 = vector.shape_cast %0 : vector<2x6x24xf32> to vector<12x24xf32>
    %c64 = arith.constant 64 : index
    %c0_13 = arith.constant 0 : index
    %16 = vector.load %arg2[%c64, %c0_13] : memref<456x128xf32, #tpu.memory_space<vmem>>, vector<24x32xf32>
    %cst_14 = arith.constant dense<0.000000e+00> : vector<12x32xf32>
    %17 = tpu.matmul %15, %16, %cst_14 {dimension_numbers = #tpu.dot_dimension_numbers<[1], [0], [0], [1], [0, 0, 1, 1], [], []>} : vector<12x24xf32>, vector<24x32xf32>, vector<12x32xf32> -> vector<12x32xf32>
    %c88 = arith.constant 88 : index
    %c0_15 = arith.constant 0 : index
    %18 = vector.load %arg2[%c88, %c0_15] : memref<456x128xf32, #tpu.memory_space<vmem>>, vector<1x32xf32>
    %19 = vector.broadcast %18 : vector<1x32xf32> to vector<12x32xf32>
    %20 = arith.addf %17, %19 : vector<12x32xf32>
    %21 = math.tanh %20 : vector<12x32xf32>
    %22 = vector.shape_cast %21 : vector<12x32xf32> to vector<2x6x32xf32>
    %c96 = arith.constant 96 : index
    %c0_16 = arith.constant 0 : index
    %23 = vector.load %arg2[%c96, %c0_16] : memref<456x128xf32, #tpu.memory_space<vmem>>, vector<32x48xf32>
    %c128 = arith.constant 128 : index
    %c0_17 = arith.constant 0 : index
    %24 = vector.load %arg2[%c128, %c0_17] : memref<456x128xf32, #tpu.memory_space<vmem>>, vector<16x48xf32>
    %c144 = arith.constant 144 : index
    %c0_18 = arith.constant 0 : index
    %25 = vector.load %arg2[%c144, %c0_18] : memref<456x128xf32, #tpu.memory_space<vmem>>, vector<1x48xf32>
    %c152 = arith.constant 152 : index
    %c0_19 = arith.constant 0 : index
    %26 = vector.load %arg2[%c152, %c0_19] : memref<456x128xf32, #tpu.memory_space<vmem>>, vector<1x48xf32>
    %27 = vector.shape_cast %22 : vector<2x6x32xf32> to vector<12x32xf32>
    %cst_20 = arith.constant dense<0.000000e+00> : vector<12x48xf32>
    %28 = tpu.matmul %27, %23, %cst_20 {dimension_numbers = #tpu.dot_dimension_numbers<[1], [0], [0], [1], [0, 0, 1, 1], [], []>} : vector<12x32xf32>, vector<32x48xf32>, vector<12x48xf32> -> vector<12x48xf32>
    %29 = vector.broadcast %25 : vector<1x48xf32> to vector<12x48xf32>
    %30 = arith.addf %28, %29 : vector<12x48xf32>
    %31 = vector.shape_cast %30 : vector<12x48xf32> to vector<2x6x48xf32>
    %cst_21 = arith.constant 0.000000e+00 : f32
    %32 = vector.broadcast %cst_21 : f32 to vector<2x16xf32>
    %cst_22 = arith.constant dense<0.000000e+00> : vector<2x48xf32>
    %33 = tpu.matmul %32, %24, %cst_22 {dimension_numbers = #tpu.dot_dimension_numbers<[1], [0], [0], [1], [0, 0, 1, 1], [], []>} : vector<2x16xf32>, vector<16x48xf32>, vector<2x48xf32> -> vector<2x48xf32>
    %34 = vector.broadcast %26 : vector<1x48xf32> to vector<2x48xf32>
    %35 = arith.addf %33, %34 : vector<2x48xf32>
    %36 = vector.extract_strided_slice %31 {offsets = [0, 0, 0], sizes = [2, 1, 48], strides = [1, 1, 1]} : vector<2x6x48xf32> to vector<2x1x48xf32>
    %37 = vector.shape_cast %36 : vector<2x1x48xf32> to vector<2x48xf32>
    %38 = vector.extract_strided_slice %37 {offsets = [0, 0], sizes = [2, 32], strides = [1, 1]} : vector<2x48xf32> to vector<2x32xf32>
    %39 = vector.extract_strided_slice %35 {offsets = [0, 0], sizes = [2, 32], strides = [1, 1]} : vector<2x48xf32> to vector<2x32xf32>
    %40 = arith.addf %38, %39 : vector<2x32xf32>
    %41 = arith.negf %40 : vector<2x32xf32>
    %42 = math.exp %41 : vector<2x32xf32>
    %cst_23 = arith.constant 1.000000e+00 : f32
    %43 = vector.broadcast %cst_23 : f32 to vector<2x32xf32>
    %44 = arith.addf %43, %42 : vector<2x32xf32>
    %45 = arith.divf %43, %44 : vector<2x32xf32>
    %46 = vector.extract_strided_slice %45 {offsets = [0, 0], sizes = [2, 16], strides = [1, 1]} : vector<2x32xf32> to vector<2x16xf32>
    %47 = vector.extract_strided_slice %45 {offsets = [0, 16], sizes = [2, 16], strides = [1, 1]} : vector<2x32xf32> to vector<2x16xf32>
    %48 = vector.extract_strided_slice %37 {offsets = [0, 32], sizes = [2, 16], strides = [1, 1]} : vector<2x48xf32> to vector<2x16xf32>
    %49 = vector.extract_strided_slice %35 {offsets = [0, 32], sizes = [2, 16], strides = [1, 1]} : vector<2x48xf32> to vector<2x16xf32>
    %50 = arith.mulf %46, %49 : vector<2x16xf32>
    %51 = arith.addf %48, %50 : vector<2x16xf32>
    %52 = math.tanh %51 : vector<2x16xf32>
    %cst_24 = arith.constant 1.000000e+00 : f32
    %53 = vector.broadcast %cst_24 : f32 to vector<2x16xf32>
    %54 = arith.subf %53, %47 : vector<2x16xf32>
    %55 = arith.mulf %54, %52 : vector<2x16xf32>
    %56 = arith.mulf %47, %32 : vector<2x16xf32>
    %57 = arith.addf %55, %56 : vector<2x16xf32>
    %cst_25 = arith.constant dense<0.000000e+00> : vector<2x48xf32>
    %58 = tpu.matmul %57, %24, %cst_25 {dimension_numbers = #tpu.dot_dimension_numbers<[1], [0], [0], [1], [0, 0, 1, 1], [], []>} : vector<2x16xf32>, vector<16x48xf32>, vector<2x48xf32> -> vector<2x48xf32>
    %59 = vector.broadcast %26 : vector<1x48xf32> to vector<2x48xf32>
    %60 = arith.addf %58, %59 : vector<2x48xf32>
    %61 = vector.extract_strided_slice %31 {offsets = [0, 1, 0], sizes = [2, 1, 48], strides = [1, 1, 1]} : vector<2x6x48xf32> to vector<2x1x48xf32>
    %62 = vector.shape_cast %61 : vector<2x1x48xf32> to vector<2x48xf32>
    %63 = vector.extract_strided_slice %62 {offsets = [0, 0], sizes = [2, 32], strides = [1, 1]} : vector<2x48xf32> to vector<2x32xf32>
    %64 = vector.extract_strided_slice %60 {offsets = [0, 0], sizes = [2, 32], strides = [1, 1]} : vector<2x48xf32> to vector<2x32xf32>
    %65 = arith.addf %63, %64 : vector<2x32xf32>
    %66 = arith.negf %65 : vector<2x32xf32>
    %67 = math.exp %66 : vector<2x32xf32>
    %cst_26 = arith.constant 1.000000e+00 : f32
    %68 = vector.broadcast %cst_26 : f32 to vector<2x32xf32>
    %69 = arith.addf %68, %67 : vector<2x32xf32>
    %70 = arith.divf %68, %69 : vector<2x32xf32>
    %71 = vector.extract_strided_slice %70 {offsets = [0, 0], sizes = [2, 16], strides = [1, 1]} : vector<2x32xf32> to vector<2x16xf32>
    %72 = vector.extract_strided_slice %70 {offsets = [0, 16], sizes = [2, 16], strides = [1, 1]} : vector<2x32xf32> to vector<2x16xf32>
    %73 = vector.extract_strided_slice %62 {offsets = [0, 32], sizes = [2, 16], strides = [1, 1]} : vector<2x48xf32> to vector<2x16xf32>
    %74 = vector.extract_strided_slice %60 {offsets = [0, 32], sizes = [2, 16], strides = [1, 1]} : vector<2x48xf32> to vector<2x16xf32>
    %75 = arith.mulf %71, %74 : vector<2x16xf32>
    %76 = arith.addf %73, %75 : vector<2x16xf32>
    %77 = math.tanh %76 : vector<2x16xf32>
    %cst_27 = arith.constant 1.000000e+00 : f32
    %78 = vector.broadcast %cst_27 : f32 to vector<2x16xf32>
    %79 = arith.subf %78, %72 : vector<2x16xf32>
    %80 = arith.mulf %79, %77 : vector<2x16xf32>
    %81 = arith.mulf %72, %57 : vector<2x16xf32>
    %82 = arith.addf %80, %81 : vector<2x16xf32>
    %cst_28 = arith.constant dense<0.000000e+00> : vector<2x48xf32>
    %83 = tpu.matmul %82, %24, %cst_28 {dimension_numbers = #tpu.dot_dimension_numbers<[1], [0], [0], [1], [0, 0, 1, 1], [], []>} : vector<2x16xf32>, vector<16x48xf32>, vector<2x48xf32> -> vector<2x48xf32>
    %84 = vector.broadcast %26 : vector<1x48xf32> to vector<2x48xf32>
    %85 = arith.addf %83, %84 : vector<2x48xf32>
    %86 = vector.extract_strided_slice %31 {offsets = [0, 2, 0], sizes = [2, 1, 48], strides = [1, 1, 1]} : vector<2x6x48xf32> to vector<2x1x48xf32>
    %87 = vector.shape_cast %86 : vector<2x1x48xf32> to vector<2x48xf32>
    %88 = vector.extract_strided_slice %87 {offsets = [0, 0], sizes = [2, 32], strides = [1, 1]} : vector<2x48xf32> to vector<2x32xf32>
    %89 = vector.extract_strided_slice %85 {offsets = [0, 0], sizes = [2, 32], strides = [1, 1]} : vector<2x48xf32> to vector<2x32xf32>
    %90 = arith.addf %88, %89 : vector<2x32xf32>
    %91 = arith.negf %90 : vector<2x32xf32>
    %92 = math.exp %91 : vector<2x32xf32>
    %cst_29 = arith.constant 1.000000e+00 : f32
    %93 = vector.broadcast %cst_29 : f32 to vector<2x32xf32>
    %94 = arith.addf %93, %92 : vector<2x32xf32>
    %95 = arith.divf %93, %94 : vector<2x32xf32>
    %96 = vector.extract_strided_slice %95 {offsets = [0, 0], sizes = [2, 16], strides = [1, 1]} : vector<2x32xf32> to vector<2x16xf32>
    %97 = vector.extract_strided_slice %95 {offsets = [0, 16], sizes = [2, 16], strides = [1, 1]} : vector<2x32xf32> to vector<2x16xf32>
    %98 = vector.extract_strided_slice %87 {offsets = [0, 32], sizes = [2, 16], strides = [1, 1]} : vector<2x48xf32> to vector<2x16xf32>
    %99 = vector.extract_strided_slice %85 {offsets = [0, 32], sizes = [2, 16], strides = [1, 1]} : vector<2x48xf32> to vector<2x16xf32>
    %100 = arith.mulf %96, %99 : vector<2x16xf32>
    %101 = arith.addf %98, %100 : vector<2x16xf32>
    %102 = math.tanh %101 : vector<2x16xf32>
    %cst_30 = arith.constant 1.000000e+00 : f32
    %103 = vector.broadcast %cst_30 : f32 to vector<2x16xf32>
    %104 = arith.subf %103, %97 : vector<2x16xf32>
    %105 = arith.mulf %104, %102 : vector<2x16xf32>
    %106 = arith.mulf %97, %82 : vector<2x16xf32>
    %107 = arith.addf %105, %106 : vector<2x16xf32>
    %cst_31 = arith.constant dense<0.000000e+00> : vector<2x48xf32>
    %108 = tpu.matmul %107, %24, %cst_31 {dimension_numbers = #tpu.dot_dimension_numbers<[1], [0], [0], [1], [0, 0, 1, 1], [], []>} : vector<2x16xf32>, vector<16x48xf32>, vector<2x48xf32> -> vector<2x48xf32>
    %109 = vector.broadcast %26 : vector<1x48xf32> to vector<2x48xf32>
    %110 = arith.addf %108, %109 : vector<2x48xf32>
    %111 = vector.extract_strided_slice %31 {offsets = [0, 3, 0], sizes = [2, 1, 48], strides = [1, 1, 1]} : vector<2x6x48xf32> to vector<2x1x48xf32>
    %112 = vector.shape_cast %111 : vector<2x1x48xf32> to vector<2x48xf32>
    %113 = vector.extract_strided_slice %112 {offsets = [0, 0], sizes = [2, 32], strides = [1, 1]} : vector<2x48xf32> to vector<2x32xf32>
    %114 = vector.extract_strided_slice %110 {offsets = [0, 0], sizes = [2, 32], strides = [1, 1]} : vector<2x48xf32> to vector<2x32xf32>
    %115 = arith.addf %113, %114 : vector<2x32xf32>
    %116 = arith.negf %115 : vector<2x32xf32>
    %117 = math.exp %116 : vector<2x32xf32>
    %cst_32 = arith.constant 1.000000e+00 : f32
    %118 = vector.broadcast %cst_32 : f32 to vector<2x32xf32>
    %119 = arith.addf %118, %117 : vector<2x32xf32>
    %120 = arith.divf %118, %119 : vector<2x32xf32>
    %121 = vector.extract_strided_slice %120 {offsets = [0, 0], sizes = [2, 16], strides = [1, 1]} : vector<2x32xf32> to vector<2x16xf32>
    %122 = vector.extract_strided_slice %120 {offsets = [0, 16], sizes = [2, 16], strides = [1, 1]} : vector<2x32xf32> to vector<2x16xf32>
    %123 = vector.extract_strided_slice %112 {offsets = [0, 32], sizes = [2, 16], strides = [1, 1]} : vector<2x48xf32> to vector<2x16xf32>
    %124 = vector.extract_strided_slice %110 {offsets = [0, 32], sizes = [2, 16], strides = [1, 1]} : vector<2x48xf32> to vector<2x16xf32>
    %125 = arith.mulf %121, %124 : vector<2x16xf32>
    %126 = arith.addf %123, %125 : vector<2x16xf32>
    %127 = math.tanh %126 : vector<2x16xf32>
    %cst_33 = arith.constant 1.000000e+00 : f32
    %128 = vector.broadcast %cst_33 : f32 to vector<2x16xf32>
    %129 = arith.subf %128, %122 : vector<2x16xf32>
    %130 = arith.mulf %129, %127 : vector<2x16xf32>
    %131 = arith.mulf %122, %107 : vector<2x16xf32>
    %132 = arith.addf %130, %131 : vector<2x16xf32>
    %cst_34 = arith.constant dense<0.000000e+00> : vector<2x48xf32>
    %133 = tpu.matmul %132, %24, %cst_34 {dimension_numbers = #tpu.dot_dimension_numbers<[1], [0], [0], [1], [0, 0, 1, 1], [], []>} : vector<2x16xf32>, vector<16x48xf32>, vector<2x48xf32> -> vector<2x48xf32>
    %134 = vector.broadcast %26 : vector<1x48xf32> to vector<2x48xf32>
    %135 = arith.addf %133, %134 : vector<2x48xf32>
    %136 = vector.extract_strided_slice %31 {offsets = [0, 4, 0], sizes = [2, 1, 48], strides = [1, 1, 1]} : vector<2x6x48xf32> to vector<2x1x48xf32>
    %137 = vector.shape_cast %136 : vector<2x1x48xf32> to vector<2x48xf32>
    %138 = vector.extract_strided_slice %137 {offsets = [0, 0], sizes = [2, 32], strides = [1, 1]} : vector<2x48xf32> to vector<2x32xf32>
    %139 = vector.extract_strided_slice %135 {offsets = [0, 0], sizes = [2, 32], strides = [1, 1]} : vector<2x48xf32> to vector<2x32xf32>
    %140 = arith.addf %138, %139 : vector<2x32xf32>
    %141 = arith.negf %140 : vector<2x32xf32>
    %142 = math.exp %141 : vector<2x32xf32>
    %cst_35 = arith.constant 1.000000e+00 : f32
    %143 = vector.broadcast %cst_35 : f32 to vector<2x32xf32>
    %144 = arith.addf %143, %142 : vector<2x32xf32>
    %145 = arith.divf %143, %144 : vector<2x32xf32>
    %146 = vector.extract_strided_slice %145 {offsets = [0, 0], sizes = [2, 16], strides = [1, 1]} : vector<2x32xf32> to vector<2x16xf32>
    %147 = vector.extract_strided_slice %145 {offsets = [0, 16], sizes = [2, 16], strides = [1, 1]} : vector<2x32xf32> to vector<2x16xf32>
    %148 = vector.extract_strided_slice %137 {offsets = [0, 32], sizes = [2, 16], strides = [1, 1]} : vector<2x48xf32> to vector<2x16xf32>
    %149 = vector.extract_strided_slice %135 {offsets = [0, 32], sizes = [2, 16], strides = [1, 1]} : vector<2x48xf32> to vector<2x16xf32>
    %150 = arith.mulf %146, %149 : vector<2x16xf32>
    %151 = arith.addf %148, %150 : vector<2x16xf32>
    %152 = math.tanh %151 : vector<2x16xf32>
    %cst_36 = arith.constant 1.000000e+00 : f32
    %153 = vector.broadcast %cst_36 : f32 to vector<2x16xf32>
    %154 = arith.subf %153, %147 : vector<2x16xf32>
    %155 = arith.mulf %154, %152 : vector<2x16xf32>
    %156 = arith.mulf %147, %132 : vector<2x16xf32>
    %157 = arith.addf %155, %156 : vector<2x16xf32>
    %cst_37 = arith.constant dense<0.000000e+00> : vector<2x48xf32>
    %158 = tpu.matmul %157, %24, %cst_37 {dimension_numbers = #tpu.dot_dimension_numbers<[1], [0], [0], [1], [0, 0, 1, 1], [], []>} : vector<2x16xf32>, vector<16x48xf32>, vector<2x48xf32> -> vector<2x48xf32>
    %159 = vector.broadcast %26 : vector<1x48xf32> to vector<2x48xf32>
    %160 = arith.addf %158, %159 : vector<2x48xf32>
    %161 = vector.extract_strided_slice %31 {offsets = [0, 5, 0], sizes = [2, 1, 48], strides = [1, 1, 1]} : vector<2x6x48xf32> to vector<2x1x48xf32>
    %162 = vector.shape_cast %161 : vector<2x1x48xf32> to vector<2x48xf32>
    %163 = vector.extract_strided_slice %162 {offsets = [0, 0], sizes = [2, 32], strides = [1, 1]} : vector<2x48xf32> to vector<2x32xf32>
    %164 = vector.extract_strided_slice %160 {offsets = [0, 0], sizes = [2, 32], strides = [1, 1]} : vector<2x48xf32> to vector<2x32xf32>
    %165 = arith.addf %163, %164 : vector<2x32xf32>
    %166 = arith.negf %165 : vector<2x32xf32>
    %167 = math.exp %166 : vector<2x32xf32>
    %cst_38 = arith.constant 1.000000e+00 : f32
    %168 = vector.broadcast %cst_38 : f32 to vector<2x32xf32>
    %169 = arith.addf %168, %167 : vector<2x32xf32>
    %170 = arith.divf %168, %169 : vector<2x32xf32>
    %171 = vector.extract_strided_slice %170 {offsets = [0, 0], sizes = [2, 16], strides = [1, 1]} : vector<2x32xf32> to vector<2x16xf32>
    %172 = vector.extract_strided_slice %170 {offsets = [0, 16], sizes = [2, 16], strides = [1, 1]} : vector<2x32xf32> to vector<2x16xf32>
    %173 = vector.extract_strided_slice %162 {offsets = [0, 32], sizes = [2, 16], strides = [1, 1]} : vector<2x48xf32> to vector<2x16xf32>
    %174 = vector.extract_strided_slice %160 {offsets = [0, 32], sizes = [2, 16], strides = [1, 1]} : vector<2x48xf32> to vector<2x16xf32>
    %175 = arith.mulf %171, %174 : vector<2x16xf32>
    %176 = arith.addf %173, %175 : vector<2x16xf32>
    %177 = math.tanh %176 : vector<2x16xf32>
    %cst_39 = arith.constant 1.000000e+00 : f32
    %178 = vector.broadcast %cst_39 : f32 to vector<2x16xf32>
    %179 = arith.subf %178, %172 : vector<2x16xf32>
    %180 = arith.mulf %179, %177 : vector<2x16xf32>
    %181 = arith.mulf %172, %157 : vector<2x16xf32>
    %182 = arith.addf %180, %181 : vector<2x16xf32>
    %183 = vector.shape_cast %57 : vector<2x16xf32> to vector<2x1x16xf32>
    %184 = vector.shape_cast %82 : vector<2x16xf32> to vector<2x1x16xf32>
    %185 = vector.shape_cast %107 : vector<2x16xf32> to vector<2x1x16xf32>
    %186 = vector.shape_cast %132 : vector<2x16xf32> to vector<2x1x16xf32>
    %187 = vector.shape_cast %157 : vector<2x16xf32> to vector<2x1x16xf32>
    %188 = vector.shape_cast %182 : vector<2x16xf32> to vector<2x1x16xf32>
    %189 = tpu.concatenate %183, %184, %185, %186, %187, %188 in 1 : vector<2x1x16xf32>, vector<2x1x16xf32>, vector<2x1x16xf32>, vector<2x1x16xf32>, vector<2x1x16xf32>, vector<2x1x16xf32> -> vector<2x6x16xf32>
    %c208 = arith.constant 208 : index
    %c0_40 = arith.constant 0 : index
    %190 = vector.load %arg2[%c208, %c0_40] : memref<456x128xf32, #tpu.memory_space<vmem>>, vector<3x12xf32>
    %191 = vector.extract_strided_slice %1 {offsets = [0, 0, 0], sizes = [2, 5, 12], strides = [1, 1, 1]} : vector<2x8x12xf32> to vector<2x5x12xf32>
    %192 = vector.extract_strided_slice %190 {offsets = [0, 0], sizes = [1, 12], strides = [1, 1]} : vector<3x12xf32> to vector<1x12xf32>
    %193 = vector.shape_cast %192 : vector<1x12xf32> to vector<1x1x12xf32>
    %194 = vector.broadcast %193 : vector<1x1x12xf32> to vector<2x5x12xf32>
    %195 = arith.mulf %191, %194 : vector<2x5x12xf32>
    %196 = vector.extract_strided_slice %1 {offsets = [0, 1, 0], sizes = [2, 5, 12], strides = [1, 1, 1]} : vector<2x8x12xf32> to vector<2x5x12xf32>
    %197 = vector.extract_strided_slice %190 {offsets = [1, 0], sizes = [1, 12], strides = [1, 1]} : vector<3x12xf32> to vector<1x12xf32>
    %198 = vector.shape_cast %197 : vector<1x12xf32> to vector<1x1x12xf32>
    %199 = vector.broadcast %198 : vector<1x1x12xf32> to vector<2x5x12xf32>
    %200 = arith.mulf %196, %199 : vector<2x5x12xf32>
    %201 = vector.extract_strided_slice %1 {offsets = [0, 2, 0], sizes = [2, 5, 12], strides = [1, 1, 1]} : vector<2x8x12xf32> to vector<2x5x12xf32>
    %202 = vector.extract_strided_slice %190 {offsets = [2, 0], sizes = [1, 12], strides = [1, 1]} : vector<3x12xf32> to vector<1x12xf32>
    %203 = vector.shape_cast %202 : vector<1x12xf32> to vector<1x1x12xf32>
    %204 = vector.broadcast %203 : vector<1x1x12xf32> to vector<2x5x12xf32>
    %205 = arith.mulf %201, %204 : vector<2x5x12xf32>
    %206 = tpu.concatenate %195, %200, %205 in 2 : vector<2x5x12xf32>, vector<2x5x12xf32>, vector<2x5x12xf32> -> vector<2x5x36xf32>
    %207 = vector.shape_cast %206 : vector<2x5x36xf32> to vector<10x36xf32>
    %c216 = arith.constant 216 : index
    %c0_41 = arith.constant 0 : index
    %208 = vector.load %arg2[%c216, %c0_41] : memref<456x128xf32, #tpu.memory_space<vmem>>, vector<36x16xf32>
    %cst_42 = arith.constant dense<0.000000e+00> : vector<10x16xf32>
    %209 = tpu.matmul %207, %208, %cst_42 {dimension_numbers = #tpu.dot_dimension_numbers<[1], [0], [0], [1], [0, 0, 1, 1], [], []>} : vector<10x36xf32>, vector<36x16xf32>, vector<10x16xf32> -> vector<10x16xf32>
    %c256 = arith.constant 256 : index
    %c0_43 = arith.constant 0 : index
    %210 = vector.load %arg2[%c256, %c0_43] : memref<456x128xf32, #tpu.memory_space<vmem>>, vector<1x16xf32>
    %211 = vector.broadcast %210 : vector<1x16xf32> to vector<10x16xf32>
    %212 = arith.addf %209, %211 : vector<10x16xf32>
    %cst_44 = arith.constant 0.000000e+00 : f32
    %213 = vector.broadcast %cst_44 : f32 to vector<10x16xf32>
    %214 = arith.maximumf %212, %213 : vector<10x16xf32>
    %c160 = arith.constant 160 : index
    %c0_45 = arith.constant 0 : index
    %215 = vector.load %arg2[%c160, %c0_45] : memref<456x128xf32, #tpu.memory_space<vmem>>, vector<12x48xf32>
    %c176 = arith.constant 176 : index
    %c0_46 = arith.constant 0 : index
    %216 = vector.load %arg2[%c176, %c0_46] : memref<456x128xf32, #tpu.memory_space<vmem>>, vector<16x48xf32>
    %c192 = arith.constant 192 : index
    %c0_47 = arith.constant 0 : index
    %217 = vector.load %arg2[%c192, %c0_47] : memref<456x128xf32, #tpu.memory_space<vmem>>, vector<1x48xf32>
    %c200 = arith.constant 200 : index
    %c0_48 = arith.constant 0 : index
    %218 = vector.load %arg2[%c200, %c0_48] : memref<456x128xf32, #tpu.memory_space<vmem>>, vector<1x48xf32>
    %219 = vector.shape_cast %1 : vector<2x8x12xf32> to vector<16x12xf32>
    %cst_49 = arith.constant dense<0.000000e+00> : vector<16x48xf32>
    %220 = tpu.matmul %219, %215, %cst_49 {dimension_numbers = #tpu.dot_dimension_numbers<[1], [0], [0], [1], [0, 0, 1, 1], [], []>} : vector<16x12xf32>, vector<12x48xf32>, vector<16x48xf32> -> vector<16x48xf32>
    %221 = vector.broadcast %217 : vector<1x48xf32> to vector<16x48xf32>
    %222 = arith.addf %220, %221 : vector<16x48xf32>
    %223 = vector.shape_cast %222 : vector<16x48xf32> to vector<2x8x48xf32>
    %cst_50 = arith.constant 0.000000e+00 : f32
    %224 = vector.broadcast %cst_50 : f32 to vector<2x16xf32>
    %cst_51 = arith.constant 0.000000e+00 : f32
    %225 = vector.broadcast %cst_51 : f32 to vector<2x16xf32>
    %cst_52 = arith.constant dense<0.000000e+00> : vector<2x48xf32>
    %226 = tpu.matmul %224, %216, %cst_52 {dimension_numbers = #tpu.dot_dimension_numbers<[1], [0], [0], [1], [0, 0, 1, 1], [], []>} : vector<2x16xf32>, vector<16x48xf32>, vector<2x48xf32> -> vector<2x48xf32>
    %227 = vector.broadcast %218 : vector<1x48xf32> to vector<2x48xf32>
    %228 = arith.addf %226, %227 : vector<2x48xf32>
    %229 = vector.extract_strided_slice %223 {offsets = [0, 0, 0], sizes = [2, 1, 48], strides = [1, 1, 1]} : vector<2x8x48xf32> to vector<2x1x48xf32>
    %230 = vector.shape_cast %229 : vector<2x1x48xf32> to vector<2x48xf32>
    %231 = vector.extract_strided_slice %230 {offsets = [0, 0], sizes = [2, 32], strides = [1, 1]} : vector<2x48xf32> to vector<2x32xf32>
    %232 = vector.extract_strided_slice %228 {offsets = [0, 0], sizes = [2, 32], strides = [1, 1]} : vector<2x48xf32> to vector<2x32xf32>
    %233 = arith.addf %231, %232 : vector<2x32xf32>
    %234 = arith.negf %233 : vector<2x32xf32>
    %235 = math.exp %234 : vector<2x32xf32>
    %cst_53 = arith.constant 1.000000e+00 : f32
    %236 = vector.broadcast %cst_53 : f32 to vector<2x32xf32>
    %237 = arith.addf %236, %235 : vector<2x32xf32>
    %238 = arith.divf %236, %237 : vector<2x32xf32>
    %239 = vector.extract_strided_slice %238 {offsets = [0, 0], sizes = [2, 16], strides = [1, 1]} : vector<2x32xf32> to vector<2x16xf32>
    %240 = vector.extract_strided_slice %238 {offsets = [0, 16], sizes = [2, 16], strides = [1, 1]} : vector<2x32xf32> to vector<2x16xf32>
    %241 = vector.extract_strided_slice %230 {offsets = [0, 32], sizes = [2, 16], strides = [1, 1]} : vector<2x48xf32> to vector<2x16xf32>
    %242 = vector.extract_strided_slice %228 {offsets = [0, 32], sizes = [2, 16], strides = [1, 1]} : vector<2x48xf32> to vector<2x16xf32>
    %243 = arith.mulf %239, %242 : vector<2x16xf32>
    %244 = arith.addf %241, %243 : vector<2x16xf32>
    %245 = math.tanh %244 : vector<2x16xf32>
    %cst_54 = arith.constant 1.000000e+00 : f32
    %246 = vector.broadcast %cst_54 : f32 to vector<2x16xf32>
    %247 = arith.subf %246, %240 : vector<2x16xf32>
    %248 = arith.mulf %247, %245 : vector<2x16xf32>
    %249 = arith.mulf %240, %224 : vector<2x16xf32>
    %250 = arith.addf %248, %249 : vector<2x16xf32>
    %251 = arith.addf %225, %250 : vector<2x16xf32>
    %cst_55 = arith.constant dense<0.000000e+00> : vector<2x48xf32>
    %252 = tpu.matmul %250, %216, %cst_55 {dimension_numbers = #tpu.dot_dimension_numbers<[1], [0], [0], [1], [0, 0, 1, 1], [], []>} : vector<2x16xf32>, vector<16x48xf32>, vector<2x48xf32> -> vector<2x48xf32>
    %253 = vector.broadcast %218 : vector<1x48xf32> to vector<2x48xf32>
    %254 = arith.addf %252, %253 : vector<2x48xf32>
    %255 = vector.extract_strided_slice %223 {offsets = [0, 1, 0], sizes = [2, 1, 48], strides = [1, 1, 1]} : vector<2x8x48xf32> to vector<2x1x48xf32>
    %256 = vector.shape_cast %255 : vector<2x1x48xf32> to vector<2x48xf32>
    %257 = vector.extract_strided_slice %256 {offsets = [0, 0], sizes = [2, 32], strides = [1, 1]} : vector<2x48xf32> to vector<2x32xf32>
    %258 = vector.extract_strided_slice %254 {offsets = [0, 0], sizes = [2, 32], strides = [1, 1]} : vector<2x48xf32> to vector<2x32xf32>
    %259 = arith.addf %257, %258 : vector<2x32xf32>
    %260 = arith.negf %259 : vector<2x32xf32>
    %261 = math.exp %260 : vector<2x32xf32>
    %cst_56 = arith.constant 1.000000e+00 : f32
    %262 = vector.broadcast %cst_56 : f32 to vector<2x32xf32>
    %263 = arith.addf %262, %261 : vector<2x32xf32>
    %264 = arith.divf %262, %263 : vector<2x32xf32>
    %265 = vector.extract_strided_slice %264 {offsets = [0, 0], sizes = [2, 16], strides = [1, 1]} : vector<2x32xf32> to vector<2x16xf32>
    %266 = vector.extract_strided_slice %264 {offsets = [0, 16], sizes = [2, 16], strides = [1, 1]} : vector<2x32xf32> to vector<2x16xf32>
    %267 = vector.extract_strided_slice %256 {offsets = [0, 32], sizes = [2, 16], strides = [1, 1]} : vector<2x48xf32> to vector<2x16xf32>
    %268 = vector.extract_strided_slice %254 {offsets = [0, 32], sizes = [2, 16], strides = [1, 1]} : vector<2x48xf32> to vector<2x16xf32>
    %269 = arith.mulf %265, %268 : vector<2x16xf32>
    %270 = arith.addf %267, %269 : vector<2x16xf32>
    %271 = math.tanh %270 : vector<2x16xf32>
    %cst_57 = arith.constant 1.000000e+00 : f32
    %272 = vector.broadcast %cst_57 : f32 to vector<2x16xf32>
    %273 = arith.subf %272, %266 : vector<2x16xf32>
    %274 = arith.mulf %273, %271 : vector<2x16xf32>
    %275 = arith.mulf %266, %250 : vector<2x16xf32>
    %276 = arith.addf %274, %275 : vector<2x16xf32>
    %277 = arith.addf %251, %276 : vector<2x16xf32>
    %cst_58 = arith.constant dense<0.000000e+00> : vector<2x48xf32>
    %278 = tpu.matmul %276, %216, %cst_58 {dimension_numbers = #tpu.dot_dimension_numbers<[1], [0], [0], [1], [0, 0, 1, 1], [], []>} : vector<2x16xf32>, vector<16x48xf32>, vector<2x48xf32> -> vector<2x48xf32>
    %279 = vector.broadcast %218 : vector<1x48xf32> to vector<2x48xf32>
    %280 = arith.addf %278, %279 : vector<2x48xf32>
    %281 = vector.extract_strided_slice %223 {offsets = [0, 2, 0], sizes = [2, 1, 48], strides = [1, 1, 1]} : vector<2x8x48xf32> to vector<2x1x48xf32>
    %282 = vector.shape_cast %281 : vector<2x1x48xf32> to vector<2x48xf32>
    %283 = vector.extract_strided_slice %282 {offsets = [0, 0], sizes = [2, 32], strides = [1, 1]} : vector<2x48xf32> to vector<2x32xf32>
    %284 = vector.extract_strided_slice %280 {offsets = [0, 0], sizes = [2, 32], strides = [1, 1]} : vector<2x48xf32> to vector<2x32xf32>
    %285 = arith.addf %283, %284 : vector<2x32xf32>
    %286 = arith.negf %285 : vector<2x32xf32>
    %287 = math.exp %286 : vector<2x32xf32>
    %cst_59 = arith.constant 1.000000e+00 : f32
    %288 = vector.broadcast %cst_59 : f32 to vector<2x32xf32>
    %289 = arith.addf %288, %287 : vector<2x32xf32>
    %290 = arith.divf %288, %289 : vector<2x32xf32>
    %291 = vector.extract_strided_slice %290 {offsets = [0, 0], sizes = [2, 16], strides = [1, 1]} : vector<2x32xf32> to vector<2x16xf32>
    %292 = vector.extract_strided_slice %290 {offsets = [0, 16], sizes = [2, 16], strides = [1, 1]} : vector<2x32xf32> to vector<2x16xf32>
    %293 = vector.extract_strided_slice %282 {offsets = [0, 32], sizes = [2, 16], strides = [1, 1]} : vector<2x48xf32> to vector<2x16xf32>
    %294 = vector.extract_strided_slice %280 {offsets = [0, 32], sizes = [2, 16], strides = [1, 1]} : vector<2x48xf32> to vector<2x16xf32>
    %295 = arith.mulf %291, %294 : vector<2x16xf32>
    %296 = arith.addf %293, %295 : vector<2x16xf32>
    %297 = math.tanh %296 : vector<2x16xf32>
    %cst_60 = arith.constant 1.000000e+00 : f32
    %298 = vector.broadcast %cst_60 : f32 to vector<2x16xf32>
    %299 = arith.subf %298, %292 : vector<2x16xf32>
    %300 = arith.mulf %299, %297 : vector<2x16xf32>
    %301 = arith.mulf %292, %276 : vector<2x16xf32>
    %302 = arith.addf %300, %301 : vector<2x16xf32>
    %303 = arith.addf %277, %302 : vector<2x16xf32>
    %cst_61 = arith.constant dense<0.000000e+00> : vector<2x48xf32>
    %304 = tpu.matmul %302, %216, %cst_61 {dimension_numbers = #tpu.dot_dimension_numbers<[1], [0], [0], [1], [0, 0, 1, 1], [], []>} : vector<2x16xf32>, vector<16x48xf32>, vector<2x48xf32> -> vector<2x48xf32>
    %305 = vector.broadcast %218 : vector<1x48xf32> to vector<2x48xf32>
    %306 = arith.addf %304, %305 : vector<2x48xf32>
    %307 = vector.extract_strided_slice %223 {offsets = [0, 3, 0], sizes = [2, 1, 48], strides = [1, 1, 1]} : vector<2x8x48xf32> to vector<2x1x48xf32>
    %308 = vector.shape_cast %307 : vector<2x1x48xf32> to vector<2x48xf32>
    %309 = vector.extract_strided_slice %308 {offsets = [0, 0], sizes = [2, 32], strides = [1, 1]} : vector<2x48xf32> to vector<2x32xf32>
    %310 = vector.extract_strided_slice %306 {offsets = [0, 0], sizes = [2, 32], strides = [1, 1]} : vector<2x48xf32> to vector<2x32xf32>
    %311 = arith.addf %309, %310 : vector<2x32xf32>
    %312 = arith.negf %311 : vector<2x32xf32>
    %313 = math.exp %312 : vector<2x32xf32>
    %cst_62 = arith.constant 1.000000e+00 : f32
    %314 = vector.broadcast %cst_62 : f32 to vector<2x32xf32>
    %315 = arith.addf %314, %313 : vector<2x32xf32>
    %316 = arith.divf %314, %315 : vector<2x32xf32>
    %317 = vector.extract_strided_slice %316 {offsets = [0, 0], sizes = [2, 16], strides = [1, 1]} : vector<2x32xf32> to vector<2x16xf32>
    %318 = vector.extract_strided_slice %316 {offsets = [0, 16], sizes = [2, 16], strides = [1, 1]} : vector<2x32xf32> to vector<2x16xf32>
    %319 = vector.extract_strided_slice %308 {offsets = [0, 32], sizes = [2, 16], strides = [1, 1]} : vector<2x48xf32> to vector<2x16xf32>
    %320 = vector.extract_strided_slice %306 {offsets = [0, 32], sizes = [2, 16], strides = [1, 1]} : vector<2x48xf32> to vector<2x16xf32>
    %321 = arith.mulf %317, %320 : vector<2x16xf32>
    %322 = arith.addf %319, %321 : vector<2x16xf32>
    %323 = math.tanh %322 : vector<2x16xf32>
    %cst_63 = arith.constant 1.000000e+00 : f32
    %324 = vector.broadcast %cst_63 : f32 to vector<2x16xf32>
    %325 = arith.subf %324, %318 : vector<2x16xf32>
    %326 = arith.mulf %325, %323 : vector<2x16xf32>
    %327 = arith.mulf %318, %302 : vector<2x16xf32>
    %328 = arith.addf %326, %327 : vector<2x16xf32>
    %329 = arith.addf %303, %328 : vector<2x16xf32>
    %cst_64 = arith.constant dense<0.000000e+00> : vector<2x48xf32>
    %330 = tpu.matmul %328, %216, %cst_64 {dimension_numbers = #tpu.dot_dimension_numbers<[1], [0], [0], [1], [0, 0, 1, 1], [], []>} : vector<2x16xf32>, vector<16x48xf32>, vector<2x48xf32> -> vector<2x48xf32>
    %331 = vector.broadcast %218 : vector<1x48xf32> to vector<2x48xf32>
    %332 = arith.addf %330, %331 : vector<2x48xf32>
    %333 = vector.extract_strided_slice %223 {offsets = [0, 4, 0], sizes = [2, 1, 48], strides = [1, 1, 1]} : vector<2x8x48xf32> to vector<2x1x48xf32>
    %334 = vector.shape_cast %333 : vector<2x1x48xf32> to vector<2x48xf32>
    %335 = vector.extract_strided_slice %334 {offsets = [0, 0], sizes = [2, 32], strides = [1, 1]} : vector<2x48xf32> to vector<2x32xf32>
    %336 = vector.extract_strided_slice %332 {offsets = [0, 0], sizes = [2, 32], strides = [1, 1]} : vector<2x48xf32> to vector<2x32xf32>
    %337 = arith.addf %335, %336 : vector<2x32xf32>
    %338 = arith.negf %337 : vector<2x32xf32>
    %339 = math.exp %338 : vector<2x32xf32>
    %cst_65 = arith.constant 1.000000e+00 : f32
    %340 = vector.broadcast %cst_65 : f32 to vector<2x32xf32>
    %341 = arith.addf %340, %339 : vector<2x32xf32>
    %342 = arith.divf %340, %341 : vector<2x32xf32>
    %343 = vector.extract_strided_slice %342 {offsets = [0, 0], sizes = [2, 16], strides = [1, 1]} : vector<2x32xf32> to vector<2x16xf32>
    %344 = vector.extract_strided_slice %342 {offsets = [0, 16], sizes = [2, 16], strides = [1, 1]} : vector<2x32xf32> to vector<2x16xf32>
    %345 = vector.extract_strided_slice %334 {offsets = [0, 32], sizes = [2, 16], strides = [1, 1]} : vector<2x48xf32> to vector<2x16xf32>
    %346 = vector.extract_strided_slice %332 {offsets = [0, 32], sizes = [2, 16], strides = [1, 1]} : vector<2x48xf32> to vector<2x16xf32>
    %347 = arith.mulf %343, %346 : vector<2x16xf32>
    %348 = arith.addf %345, %347 : vector<2x16xf32>
    %349 = math.tanh %348 : vector<2x16xf32>
    %cst_66 = arith.constant 1.000000e+00 : f32
    %350 = vector.broadcast %cst_66 : f32 to vector<2x16xf32>
    %351 = arith.subf %350, %344 : vector<2x16xf32>
    %352 = arith.mulf %351, %349 : vector<2x16xf32>
    %353 = arith.mulf %344, %328 : vector<2x16xf32>
    %354 = arith.addf %352, %353 : vector<2x16xf32>
    %355 = arith.addf %329, %354 : vector<2x16xf32>
    %cst_67 = arith.constant dense<0.000000e+00> : vector<2x48xf32>
    %356 = tpu.matmul %354, %216, %cst_67 {dimension_numbers = #tpu.dot_dimension_numbers<[1], [0], [0], [1], [0, 0, 1, 1], [], []>} : vector<2x16xf32>, vector<16x48xf32>, vector<2x48xf32> -> vector<2x48xf32>
    %357 = vector.broadcast %218 : vector<1x48xf32> to vector<2x48xf32>
    %358 = arith.addf %356, %357 : vector<2x48xf32>
    %359 = vector.extract_strided_slice %223 {offsets = [0, 5, 0], sizes = [2, 1, 48], strides = [1, 1, 1]} : vector<2x8x48xf32> to vector<2x1x48xf32>
    %360 = vector.shape_cast %359 : vector<2x1x48xf32> to vector<2x48xf32>
    %361 = vector.extract_strided_slice %360 {offsets = [0, 0], sizes = [2, 32], strides = [1, 1]} : vector<2x48xf32> to vector<2x32xf32>
    %362 = vector.extract_strided_slice %358 {offsets = [0, 0], sizes = [2, 32], strides = [1, 1]} : vector<2x48xf32> to vector<2x32xf32>
    %363 = arith.addf %361, %362 : vector<2x32xf32>
    %364 = arith.negf %363 : vector<2x32xf32>
    %365 = math.exp %364 : vector<2x32xf32>
    %cst_68 = arith.constant 1.000000e+00 : f32
    %366 = vector.broadcast %cst_68 : f32 to vector<2x32xf32>
    %367 = arith.addf %366, %365 : vector<2x32xf32>
    %368 = arith.divf %366, %367 : vector<2x32xf32>
    %369 = vector.extract_strided_slice %368 {offsets = [0, 0], sizes = [2, 16], strides = [1, 1]} : vector<2x32xf32> to vector<2x16xf32>
    %370 = vector.extract_strided_slice %368 {offsets = [0, 16], sizes = [2, 16], strides = [1, 1]} : vector<2x32xf32> to vector<2x16xf32>
    %371 = vector.extract_strided_slice %360 {offsets = [0, 32], sizes = [2, 16], strides = [1, 1]} : vector<2x48xf32> to vector<2x16xf32>
    %372 = vector.extract_strided_slice %358 {offsets = [0, 32], sizes = [2, 16], strides = [1, 1]} : vector<2x48xf32> to vector<2x16xf32>
    %373 = arith.mulf %369, %372 : vector<2x16xf32>
    %374 = arith.addf %371, %373 : vector<2x16xf32>
    %375 = math.tanh %374 : vector<2x16xf32>
    %cst_69 = arith.constant 1.000000e+00 : f32
    %376 = vector.broadcast %cst_69 : f32 to vector<2x16xf32>
    %377 = arith.subf %376, %370 : vector<2x16xf32>
    %378 = arith.mulf %377, %375 : vector<2x16xf32>
    %379 = arith.mulf %370, %354 : vector<2x16xf32>
    %380 = arith.addf %378, %379 : vector<2x16xf32>
    %381 = arith.addf %355, %380 : vector<2x16xf32>
    %cst_70 = arith.constant dense<0.000000e+00> : vector<2x48xf32>
    %382 = tpu.matmul %380, %216, %cst_70 {dimension_numbers = #tpu.dot_dimension_numbers<[1], [0], [0], [1], [0, 0, 1, 1], [], []>} : vector<2x16xf32>, vector<16x48xf32>, vector<2x48xf32> -> vector<2x48xf32>
    %383 = vector.broadcast %218 : vector<1x48xf32> to vector<2x48xf32>
    %384 = arith.addf %382, %383 : vector<2x48xf32>
    %385 = vector.extract_strided_slice %223 {offsets = [0, 6, 0], sizes = [2, 1, 48], strides = [1, 1, 1]} : vector<2x8x48xf32> to vector<2x1x48xf32>
    %386 = vector.shape_cast %385 : vector<2x1x48xf32> to vector<2x48xf32>
    %387 = vector.extract_strided_slice %386 {offsets = [0, 0], sizes = [2, 32], strides = [1, 1]} : vector<2x48xf32> to vector<2x32xf32>
    %388 = vector.extract_strided_slice %384 {offsets = [0, 0], sizes = [2, 32], strides = [1, 1]} : vector<2x48xf32> to vector<2x32xf32>
    %389 = arith.addf %387, %388 : vector<2x32xf32>
    %390 = arith.negf %389 : vector<2x32xf32>
    %391 = math.exp %390 : vector<2x32xf32>
    %cst_71 = arith.constant 1.000000e+00 : f32
    %392 = vector.broadcast %cst_71 : f32 to vector<2x32xf32>
    %393 = arith.addf %392, %391 : vector<2x32xf32>
    %394 = arith.divf %392, %393 : vector<2x32xf32>
    %395 = vector.extract_strided_slice %394 {offsets = [0, 0], sizes = [2, 16], strides = [1, 1]} : vector<2x32xf32> to vector<2x16xf32>
    %396 = vector.extract_strided_slice %394 {offsets = [0, 16], sizes = [2, 16], strides = [1, 1]} : vector<2x32xf32> to vector<2x16xf32>
    %397 = vector.extract_strided_slice %386 {offsets = [0, 32], sizes = [2, 16], strides = [1, 1]} : vector<2x48xf32> to vector<2x16xf32>
    %398 = vector.extract_strided_slice %384 {offsets = [0, 32], sizes = [2, 16], strides = [1, 1]} : vector<2x48xf32> to vector<2x16xf32>
    %399 = arith.mulf %395, %398 : vector<2x16xf32>
    %400 = arith.addf %397, %399 : vector<2x16xf32>
    %401 = math.tanh %400 : vector<2x16xf32>
    %cst_72 = arith.constant 1.000000e+00 : f32
    %402 = vector.broadcast %cst_72 : f32 to vector<2x16xf32>
    %403 = arith.subf %402, %396 : vector<2x16xf32>
    %404 = arith.mulf %403, %401 : vector<2x16xf32>
    %405 = arith.mulf %396, %380 : vector<2x16xf32>
    %406 = arith.addf %404, %405 : vector<2x16xf32>
    %407 = arith.addf %381, %406 : vector<2x16xf32>
    %cst_73 = arith.constant dense<0.000000e+00> : vector<2x48xf32>
    %408 = tpu.matmul %406, %216, %cst_73 {dimension_numbers = #tpu.dot_dimension_numbers<[1], [0], [0], [1], [0, 0, 1, 1], [], []>} : vector<2x16xf32>, vector<16x48xf32>, vector<2x48xf32> -> vector<2x48xf32>
    %409 = vector.broadcast %218 : vector<1x48xf32> to vector<2x48xf32>
    %410 = arith.addf %408, %409 : vector<2x48xf32>
    %411 = vector.extract_strided_slice %223 {offsets = [0, 7, 0], sizes = [2, 1, 48], strides = [1, 1, 1]} : vector<2x8x48xf32> to vector<2x1x48xf32>
    %412 = vector.shape_cast %411 : vector<2x1x48xf32> to vector<2x48xf32>
    %413 = vector.extract_strided_slice %412 {offsets = [0, 0], sizes = [2, 32], strides = [1, 1]} : vector<2x48xf32> to vector<2x32xf32>
    %414 = vector.extract_strided_slice %410 {offsets = [0, 0], sizes = [2, 32], strides = [1, 1]} : vector<2x48xf32> to vector<2x32xf32>
    %415 = arith.addf %413, %414 : vector<2x32xf32>
    %416 = arith.negf %415 : vector<2x32xf32>
    %417 = math.exp %416 : vector<2x32xf32>
    %cst_74 = arith.constant 1.000000e+00 : f32
    %418 = vector.broadcast %cst_74 : f32 to vector<2x32xf32>
    %419 = arith.addf %418, %417 : vector<2x32xf32>
    %420 = arith.divf %418, %419 : vector<2x32xf32>
    %421 = vector.extract_strided_slice %420 {offsets = [0, 0], sizes = [2, 16], strides = [1, 1]} : vector<2x32xf32> to vector<2x16xf32>
    %422 = vector.extract_strided_slice %420 {offsets = [0, 16], sizes = [2, 16], strides = [1, 1]} : vector<2x32xf32> to vector<2x16xf32>
    %423 = vector.extract_strided_slice %412 {offsets = [0, 32], sizes = [2, 16], strides = [1, 1]} : vector<2x48xf32> to vector<2x16xf32>
    %424 = vector.extract_strided_slice %410 {offsets = [0, 32], sizes = [2, 16], strides = [1, 1]} : vector<2x48xf32> to vector<2x16xf32>
    %425 = arith.mulf %421, %424 : vector<2x16xf32>
    %426 = arith.addf %423, %425 : vector<2x16xf32>
    %427 = math.tanh %426 : vector<2x16xf32>
    %cst_75 = arith.constant 1.000000e+00 : f32
    %428 = vector.broadcast %cst_75 : f32 to vector<2x16xf32>
    %429 = arith.subf %428, %422 : vector<2x16xf32>
    %430 = arith.mulf %429, %427 : vector<2x16xf32>
    %431 = arith.mulf %422, %406 : vector<2x16xf32>
    %432 = arith.addf %430, %431 : vector<2x16xf32>
    %433 = arith.addf %407, %432 : vector<2x16xf32>
    %cst_76 = arith.constant 1.250000e-01 : f32
    %434 = vector.broadcast %cst_76 : f32 to vector<2x16xf32>
    %435 = arith.mulf %433, %434 : vector<2x16xf32>
    %c264 = arith.constant 264 : index
    %c0_77 = arith.constant 0 : index
    %436 = vector.load %arg2[%c264, %c0_77] : memref<456x128xf32, #tpu.memory_space<vmem>>, vector<16x16xf32>
    %cst_78 = arith.constant dense<0.000000e+00> : vector<2x16xf32>
    %437 = tpu.matmul %14, %436, %cst_78 {dimension_numbers = #tpu.dot_dimension_numbers<[1], [0], [0], [1], [0, 0, 1, 1], [], []>} : vector<2x16xf32>, vector<16x16xf32>, vector<2x16xf32> -> vector<2x16xf32>
    %c280 = arith.constant 280 : index
    %c0_79 = arith.constant 0 : index
    %438 = vector.load %arg2[%c280, %c0_79] : memref<456x128xf32, #tpu.memory_space<vmem>>, vector<16x8xf32>
    %cst_80 = arith.constant dense<0.000000e+00> : vector<2x8xf32>
    %439 = tpu.matmul %14, %438, %cst_80 {dimension_numbers = #tpu.dot_dimension_numbers<[1], [0], [0], [1], [0, 0, 1, 1], [], []>} : vector<2x16xf32>, vector<16x8xf32>, vector<2x8xf32> -> vector<2x8xf32>
    %cst_81 = arith.constant 8.000000e+00 : f32
    %440 = vector.broadcast %cst_81 : f32 to vector<2x8xf32>
    %441 = arith.mulf %440, %439 : vector<2x8xf32>
    %442 = vector.shape_cast %189 : vector<2x6x16xf32> to vector<12x16xf32>
    %c296 = arith.constant 296 : index
    %c0_82 = arith.constant 0 : index
    %443 = vector.load %arg2[%c296, %c0_82] : memref<456x128xf32, #tpu.memory_space<vmem>>, vector<16x16xf32>
    %cst_83 = arith.constant dense<0.000000e+00> : vector<12x16xf32>
    %444 = tpu.matmul %442, %443, %cst_83 {dimension_numbers = #tpu.dot_dimension_numbers<[1], [0], [0], [1], [0, 0, 1, 1], [], []>} : vector<12x16xf32>, vector<16x16xf32>, vector<12x16xf32> -> vector<12x16xf32>
    %c320 = arith.constant 320 : index
    %c0_84 = arith.constant 0 : index
    %445 = vector.load %arg2[%c320, %c0_84] : memref<456x128xf32, #tpu.memory_space<vmem>>, vector<16x16xf32>
    %cst_85 = arith.constant dense<0.000000e+00> : vector<10x16xf32>
    %446 = tpu.matmul %214, %445, %cst_85 {dimension_numbers = #tpu.dot_dimension_numbers<[1], [0], [0], [1], [0, 0, 1, 1], [], []>} : vector<10x16xf32>, vector<16x16xf32>, vector<10x16xf32> -> vector<10x16xf32>
    %c336 = arith.constant 336 : index
    %c0_86 = arith.constant 0 : index
    %447 = vector.load %arg2[%c336, %c0_86] : memref<456x128xf32, #tpu.memory_space<vmem>>, vector<16x8xf32>
    %cst_87 = arith.constant dense<0.000000e+00> : vector<10x8xf32>
    %448 = tpu.matmul %214, %447, %cst_87 {dimension_numbers = #tpu.dot_dimension_numbers<[1], [0], [0], [1], [0, 0, 1, 1], [], []>} : vector<10x16xf32>, vector<16x8xf32>, vector<10x8xf32> -> vector<10x8xf32>
    %c312 = arith.constant 312 : index
    %c0_88 = arith.constant 0 : index
    %449 = vector.load %arg2[%c312, %c0_88] : memref<456x128xf32, #tpu.memory_space<vmem>>, vector<1x8xf32>
    %c352 = arith.constant 352 : index
    %c0_89 = arith.constant 0 : index
    %450 = vector.load %arg2[%c352, %c0_89] : memref<456x128xf32, #tpu.memory_space<vmem>>, vector<1x8xf32>
    %c360 = arith.constant 360 : index
    %c0_90 = arith.constant 0 : index
    %451 = vector.load %arg2[%c360, %c0_90] : memref<456x128xf32, #tpu.memory_space<vmem>>, vector<1x8xf32>
    %452 = vector.extract_strided_slice %189 {offsets = [0, 0, 0], sizes = [1, 6, 16], strides = [1, 1, 1]} : vector<2x6x16xf32> to vector<1x6x16xf32>
    %453 = vector.shape_cast %452 : vector<1x6x16xf32> to vector<6x16xf32>
    %454 = vector.extract_strided_slice %444 {offsets = [0, 0], sizes = [6, 8], strides = [1, 1]} : vector<12x16xf32> to vector<6x8xf32>
    %455 = vector.extract_strided_slice %444 {offsets = [0, 8], sizes = [6, 8], strides = [1, 1]} : vector<12x16xf32> to vector<6x8xf32>
    %456 = vector.extract_strided_slice %214 {offsets = [0, 0], sizes = [5, 16], strides = [1, 1]} : vector<10x16xf32> to vector<5x16xf32>
    %457 = vector.extract_strided_slice %446 {offsets = [0, 0], sizes = [5, 16], strides = [1, 1]} : vector<10x16xf32> to vector<5x16xf32>
    %458 = vector.extract_strided_slice %448 {offsets = [0, 0], sizes = [5, 8], strides = [1, 1]} : vector<10x8xf32> to vector<5x8xf32>
    %459 = vector.extract_strided_slice %437 {offsets = [0, 0], sizes = [1, 16], strides = [1, 1]} : vector<2x16xf32> to vector<1x16xf32>
    %460 = vector.broadcast %459 : vector<1x16xf32> to vector<6x16xf32>
    %461 = arith.mulf %453, %460 : vector<6x16xf32>
    %cst_91 = arith.constant dense<0.000000e+00> : vector<6xf32>
    %462 = vector.multi_reduction <add>, %461, %cst_91 [1] : vector<6x16xf32> to vector<6xf32>
    %463 = vector.shape_cast %462 : vector<6xf32> to vector<6x1xf32>
    %464 = vector.extract_strided_slice %441 {offsets = [0, 0], sizes = [1, 8], strides = [1, 1]} : vector<2x8xf32> to vector<1x8xf32>
    %465 = vector.broadcast %463 : vector<6x1xf32> to vector<6x8xf32>
    %466 = vector.broadcast %464 : vector<1x8xf32> to vector<6x8xf32>
    %467 = arith.mulf %465, %466 : vector<6x8xf32>
    %468 = arith.addf %454, %467 : vector<6x8xf32>
    %469 = math.tanh %468 : vector<6x8xf32>
    %cst_92 = arith.constant dense<0.000000e+00> : vector<1x6xf32>
    %470 = tpu.matmul %449, %469, %cst_92 {dimension_numbers = #tpu.dot_dimension_numbers<[1], [1], [0], [0], [0, 0, 1, 0], [], []>} : vector<1x8xf32>, vector<6x8xf32>, vector<1x6xf32> -> vector<1x6xf32>
    %cst_93 = arith.constant dense<0xFF800000> : vector<1xf32>
    %471 = vector.multi_reduction <maximumf>, %470, %cst_93 [1] : vector<1x6xf32> to vector<1xf32>
    %472 = vector.shape_cast %471 : vector<1xf32> to vector<1x1xf32>
    %473 = vector.broadcast %472 : vector<1x1xf32> to vector<1x6xf32>
    %474 = arith.subf %470, %473 : vector<1x6xf32>
    %475 = math.exp %474 : vector<1x6xf32>
    %cst_94 = arith.constant dense<0.000000e+00> : vector<1xf32>
    %476 = vector.multi_reduction <add>, %475, %cst_94 [1] : vector<1x6xf32> to vector<1xf32>
    %477 = vector.shape_cast %476 : vector<1xf32> to vector<1x1xf32>
    %478 = tpu.reciprocal %477 {approx = true} : vector<1x1xf32> -> vector<1x1xf32>
    %479 = vector.broadcast %478 : vector<1x1xf32> to vector<1x6xf32>
    %480 = arith.mulf %475, %479 : vector<1x6xf32>
    %481 = vector.extract_strided_slice %14 {offsets = [0, 0], sizes = [1, 16], strides = [1, 1]} : vector<2x16xf32> to vector<1x16xf32>
    %cst_95 = arith.constant dense<0.000000e+00> : vector<5x6xf32>
    %482 = tpu.matmul %457, %453, %cst_95 {dimension_numbers = #tpu.dot_dimension_numbers<[1], [1], [0], [0], [0, 0, 1, 0], [], []>} : vector<5x16xf32>, vector<6x16xf32>, vector<5x6xf32> -> vector<5x6xf32>
    %cst_96 = arith.constant dense<0.000000e+00> : vector<6x5xf32>
    %483 = tpu.matmul %453, %457, %cst_96 {dimension_numbers = #tpu.dot_dimension_numbers<[1], [1], [0], [0], [0, 0, 1, 0], [], []>} : vector<6x16xf32>, vector<5x16xf32>, vector<6x5xf32> -> vector<6x5xf32>
    %cst_97 = arith.constant dense<0.000000e+00> : vector<6x8xf32>
    %484 = tpu.matmul %483, %458, %cst_97 {dimension_numbers = #tpu.dot_dimension_numbers<[1], [0], [0], [1], [0, 0, 1, 1], [], []>} : vector<6x5xf32>, vector<5x8xf32>, vector<6x8xf32> -> vector<6x8xf32>
    %485 = arith.addf %455, %484 : vector<6x8xf32>
    %486 = math.tanh %485 : vector<6x8xf32>
    %cst_98 = arith.constant dense<0.000000e+00> : vector<5x8xf32>
    %487 = tpu.matmul %482, %455, %cst_98 {dimension_numbers = #tpu.dot_dimension_numbers<[1], [0], [0], [1], [0, 0, 1, 1], [], []>} : vector<5x6xf32>, vector<6x8xf32>, vector<5x8xf32> -> vector<5x8xf32>
    %488 = arith.addf %458, %487 : vector<5x8xf32>
    %489 = math.tanh %488 : vector<5x8xf32>
    %cst_99 = arith.constant dense<0.000000e+00> : vector<1x6xf32>
    %490 = tpu.matmul %450, %486, %cst_99 {dimension_numbers = #tpu.dot_dimension_numbers<[1], [1], [0], [0], [0, 0, 1, 0], [], []>} : vector<1x8xf32>, vector<6x8xf32>, vector<1x6xf32> -> vector<1x6xf32>
    %cst_100 = arith.constant dense<0xFF800000> : vector<1xf32>
    %491 = vector.multi_reduction <maximumf>, %490, %cst_100 [1] : vector<1x6xf32> to vector<1xf32>
    %492 = vector.shape_cast %491 : vector<1xf32> to vector<1x1xf32>
    %493 = vector.broadcast %492 : vector<1x1xf32> to vector<1x6xf32>
    %494 = arith.subf %490, %493 : vector<1x6xf32>
    %495 = math.exp %494 : vector<1x6xf32>
    %cst_101 = arith.constant dense<0.000000e+00> : vector<1xf32>
    %496 = vector.multi_reduction <add>, %495, %cst_101 [1] : vector<1x6xf32> to vector<1xf32>
    %497 = vector.shape_cast %496 : vector<1xf32> to vector<1x1xf32>
    %498 = tpu.reciprocal %497 {approx = true} : vector<1x1xf32> -> vector<1x1xf32>
    %499 = vector.broadcast %498 : vector<1x1xf32> to vector<1x6xf32>
    %500 = arith.mulf %495, %499 : vector<1x6xf32>
    %cst_102 = arith.constant dense<0.000000e+00> : vector<1x5xf32>
    %501 = tpu.matmul %451, %489, %cst_102 {dimension_numbers = #tpu.dot_dimension_numbers<[1], [1], [0], [0], [0, 0, 1, 0], [], []>} : vector<1x8xf32>, vector<5x8xf32>, vector<1x5xf32> -> vector<1x5xf32>
    %cst_103 = arith.constant dense<0xFF800000> : vector<1xf32>
    %502 = vector.multi_reduction <maximumf>, %501, %cst_103 [1] : vector<1x5xf32> to vector<1xf32>
    %503 = vector.shape_cast %502 : vector<1xf32> to vector<1x1xf32>
    %504 = vector.broadcast %503 : vector<1x1xf32> to vector<1x5xf32>
    %505 = arith.subf %501, %504 : vector<1x5xf32>
    %506 = math.exp %505 : vector<1x5xf32>
    %cst_104 = arith.constant dense<0.000000e+00> : vector<1xf32>
    %507 = vector.multi_reduction <add>, %506, %cst_104 [1] : vector<1x5xf32> to vector<1xf32>
    %508 = vector.shape_cast %507 : vector<1xf32> to vector<1x1xf32>
    %509 = tpu.reciprocal %508 {approx = true} : vector<1x1xf32> -> vector<1x1xf32>
    %510 = vector.broadcast %509 : vector<1x1xf32> to vector<1x5xf32>
    %511 = arith.mulf %506, %510 : vector<1x5xf32>
    %512 = tpu.concatenate %480, %500 in 0 : vector<1x6xf32>, vector<1x6xf32> -> vector<2x6xf32>
    %cst_105 = arith.constant dense<0.000000e+00> : vector<2x16xf32>
    %513 = tpu.matmul %512, %453, %cst_105 {dimension_numbers = #tpu.dot_dimension_numbers<[1], [0], [0], [1], [0, 0, 1, 1], [], []>} : vector<2x6xf32>, vector<6x16xf32>, vector<2x16xf32> -> vector<2x16xf32>
    %cst_106 = arith.constant dense<0.000000e+00> : vector<1x16xf32>
    %514 = tpu.matmul %511, %456, %cst_106 {dimension_numbers = #tpu.dot_dimension_numbers<[1], [0], [0], [1], [0, 0, 1, 1], [], []>} : vector<1x5xf32>, vector<5x16xf32>, vector<1x16xf32> -> vector<1x16xf32>
    %515 = vector.extract_strided_slice %513 {offsets = [0, 0], sizes = [1, 16], strides = [1, 1]} : vector<2x16xf32> to vector<1x16xf32>
    %516 = vector.extract_strided_slice %513 {offsets = [1, 0], sizes = [1, 16], strides = [1, 1]} : vector<2x16xf32> to vector<1x16xf32>
    %517 = vector.extract_strided_slice %435 {offsets = [0, 0], sizes = [1, 16], strides = [1, 1]} : vector<2x16xf32> to vector<1x16xf32>
    %518 = tpu.concatenate %515, %481, %516, %514, %517 in 1 : vector<1x16xf32>, vector<1x16xf32>, vector<1x16xf32>, vector<1x16xf32>, vector<1x16xf32> -> vector<1x80xf32>
    %519 = vector.extract_strided_slice %189 {offsets = [1, 0, 0], sizes = [1, 6, 16], strides = [1, 1, 1]} : vector<2x6x16xf32> to vector<1x6x16xf32>
    %520 = vector.shape_cast %519 : vector<1x6x16xf32> to vector<6x16xf32>
    %521 = vector.extract_strided_slice %444 {offsets = [6, 0], sizes = [6, 8], strides = [1, 1]} : vector<12x16xf32> to vector<6x8xf32>
    %522 = vector.extract_strided_slice %444 {offsets = [6, 8], sizes = [6, 8], strides = [1, 1]} : vector<12x16xf32> to vector<6x8xf32>
    %523 = vector.extract_strided_slice %214 {offsets = [5, 0], sizes = [5, 16], strides = [1, 1]} : vector<10x16xf32> to vector<5x16xf32>
    %524 = vector.extract_strided_slice %446 {offsets = [5, 0], sizes = [5, 16], strides = [1, 1]} : vector<10x16xf32> to vector<5x16xf32>
    %525 = vector.extract_strided_slice %448 {offsets = [5, 0], sizes = [5, 8], strides = [1, 1]} : vector<10x8xf32> to vector<5x8xf32>
    %526 = vector.extract_strided_slice %437 {offsets = [1, 0], sizes = [1, 16], strides = [1, 1]} : vector<2x16xf32> to vector<1x16xf32>
    %527 = vector.broadcast %526 : vector<1x16xf32> to vector<6x16xf32>
    %528 = arith.mulf %520, %527 : vector<6x16xf32>
    %cst_107 = arith.constant dense<0.000000e+00> : vector<6xf32>
    %529 = vector.multi_reduction <add>, %528, %cst_107 [1] : vector<6x16xf32> to vector<6xf32>
    %530 = vector.shape_cast %529 : vector<6xf32> to vector<6x1xf32>
    %531 = vector.extract_strided_slice %441 {offsets = [1, 0], sizes = [1, 8], strides = [1, 1]} : vector<2x8xf32> to vector<1x8xf32>
    %532 = vector.broadcast %530 : vector<6x1xf32> to vector<6x8xf32>
    %533 = vector.broadcast %531 : vector<1x8xf32> to vector<6x8xf32>
    %534 = arith.mulf %532, %533 : vector<6x8xf32>
    %535 = arith.addf %521, %534 : vector<6x8xf32>
    %536 = math.tanh %535 : vector<6x8xf32>
    %cst_108 = arith.constant dense<0.000000e+00> : vector<1x6xf32>
    %537 = tpu.matmul %449, %536, %cst_108 {dimension_numbers = #tpu.dot_dimension_numbers<[1], [1], [0], [0], [0, 0, 1, 0], [], []>} : vector<1x8xf32>, vector<6x8xf32>, vector<1x6xf32> -> vector<1x6xf32>
    %cst_109 = arith.constant dense<0xFF800000> : vector<1xf32>
    %538 = vector.multi_reduction <maximumf>, %537, %cst_109 [1] : vector<1x6xf32> to vector<1xf32>
    %539 = vector.shape_cast %538 : vector<1xf32> to vector<1x1xf32>
    %540 = vector.broadcast %539 : vector<1x1xf32> to vector<1x6xf32>
    %541 = arith.subf %537, %540 : vector<1x6xf32>
    %542 = math.exp %541 : vector<1x6xf32>
    %cst_110 = arith.constant dense<0.000000e+00> : vector<1xf32>
    %543 = vector.multi_reduction <add>, %542, %cst_110 [1] : vector<1x6xf32> to vector<1xf32>
    %544 = vector.shape_cast %543 : vector<1xf32> to vector<1x1xf32>
    %545 = tpu.reciprocal %544 {approx = true} : vector<1x1xf32> -> vector<1x1xf32>
    %546 = vector.broadcast %545 : vector<1x1xf32> to vector<1x6xf32>
    %547 = arith.mulf %542, %546 : vector<1x6xf32>
    %548 = vector.extract_strided_slice %14 {offsets = [1, 0], sizes = [1, 16], strides = [1, 1]} : vector<2x16xf32> to vector<1x16xf32>
    %cst_111 = arith.constant dense<0.000000e+00> : vector<5x6xf32>
    %549 = tpu.matmul %524, %520, %cst_111 {dimension_numbers = #tpu.dot_dimension_numbers<[1], [1], [0], [0], [0, 0, 1, 0], [], []>} : vector<5x16xf32>, vector<6x16xf32>, vector<5x6xf32> -> vector<5x6xf32>
    %cst_112 = arith.constant dense<0.000000e+00> : vector<6x5xf32>
    %550 = tpu.matmul %520, %524, %cst_112 {dimension_numbers = #tpu.dot_dimension_numbers<[1], [1], [0], [0], [0, 0, 1, 0], [], []>} : vector<6x16xf32>, vector<5x16xf32>, vector<6x5xf32> -> vector<6x5xf32>
    %cst_113 = arith.constant dense<0.000000e+00> : vector<6x8xf32>
    %551 = tpu.matmul %550, %525, %cst_113 {dimension_numbers = #tpu.dot_dimension_numbers<[1], [0], [0], [1], [0, 0, 1, 1], [], []>} : vector<6x5xf32>, vector<5x8xf32>, vector<6x8xf32> -> vector<6x8xf32>
    %552 = arith.addf %522, %551 : vector<6x8xf32>
    %553 = math.tanh %552 : vector<6x8xf32>
    %cst_114 = arith.constant dense<0.000000e+00> : vector<5x8xf32>
    %554 = tpu.matmul %549, %522, %cst_114 {dimension_numbers = #tpu.dot_dimension_numbers<[1], [0], [0], [1], [0, 0, 1, 1], [], []>} : vector<5x6xf32>, vector<6x8xf32>, vector<5x8xf32> -> vector<5x8xf32>
    %555 = arith.addf %525, %554 : vector<5x8xf32>
    %556 = math.tanh %555 : vector<5x8xf32>
    %cst_115 = arith.constant dense<0.000000e+00> : vector<1x6xf32>
    %557 = tpu.matmul %450, %553, %cst_115 {dimension_numbers = #tpu.dot_dimension_numbers<[1], [1], [0], [0], [0, 0, 1, 0], [], []>} : vector<1x8xf32>, vector<6x8xf32>, vector<1x6xf32> -> vector<1x6xf32>
    %cst_116 = arith.constant dense<0xFF800000> : vector<1xf32>
    %558 = vector.multi_reduction <maximumf>, %557, %cst_116 [1] : vector<1x6xf32> to vector<1xf32>
    %559 = vector.shape_cast %558 : vector<1xf32> to vector<1x1xf32>
    %560 = vector.broadcast %559 : vector<1x1xf32> to vector<1x6xf32>
    %561 = arith.subf %557, %560 : vector<1x6xf32>
    %562 = math.exp %561 : vector<1x6xf32>
    %cst_117 = arith.constant dense<0.000000e+00> : vector<1xf32>
    %563 = vector.multi_reduction <add>, %562, %cst_117 [1] : vector<1x6xf32> to vector<1xf32>
    %564 = vector.shape_cast %563 : vector<1xf32> to vector<1x1xf32>
    %565 = tpu.reciprocal %564 {approx = true} : vector<1x1xf32> -> vector<1x1xf32>
    %566 = vector.broadcast %565 : vector<1x1xf32> to vector<1x6xf32>
    %567 = arith.mulf %562, %566 : vector<1x6xf32>
    %cst_118 = arith.constant dense<0.000000e+00> : vector<1x5xf32>
    %568 = tpu.matmul %451, %556, %cst_118 {dimension_numbers = #tpu.dot_dimension_numbers<[1], [1], [0], [0], [0, 0, 1, 0], [], []>} : vector<1x8xf32>, vector<5x8xf32>, vector<1x5xf32> -> vector<1x5xf32>
    %cst_119 = arith.constant dense<0xFF800000> : vector<1xf32>
    %569 = vector.multi_reduction <maximumf>, %568, %cst_119 [1] : vector<1x5xf32> to vector<1xf32>
    %570 = vector.shape_cast %569 : vector<1xf32> to vector<1x1xf32>
    %571 = vector.broadcast %570 : vector<1x1xf32> to vector<1x5xf32>
    %572 = arith.subf %568, %571 : vector<1x5xf32>
    %573 = math.exp %572 : vector<1x5xf32>
    %cst_120 = arith.constant dense<0.000000e+00> : vector<1xf32>
    %574 = vector.multi_reduction <add>, %573, %cst_120 [1] : vector<1x5xf32> to vector<1xf32>
    %575 = vector.shape_cast %574 : vector<1xf32> to vector<1x1xf32>
    %576 = tpu.reciprocal %575 {approx = true} : vector<1x1xf32> -> vector<1x1xf32>
    %577 = vector.broadcast %576 : vector<1x1xf32> to vector<1x5xf32>
    %578 = arith.mulf %573, %577 : vector<1x5xf32>
    %579 = tpu.concatenate %547, %567 in 0 : vector<1x6xf32>, vector<1x6xf32> -> vector<2x6xf32>
    %cst_121 = arith.constant dense<0.000000e+00> : vector<2x16xf32>
    %580 = tpu.matmul %579, %520, %cst_121 {dimension_numbers = #tpu.dot_dimension_numbers<[1], [0], [0], [1], [0, 0, 1, 1], [], []>} : vector<2x6xf32>, vector<6x16xf32>, vector<2x16xf32> -> vector<2x16xf32>
    %cst_122 = arith.constant dense<0.000000e+00> : vector<1x16xf32>
    %581 = tpu.matmul %578, %523, %cst_122 {dimension_numbers = #tpu.dot_dimension_numbers<[1], [0], [0], [1], [0, 0, 1, 1], [], []>} : vector<1x5xf32>, vector<5x16xf32>, vector<1x16xf32> -> vector<1x16xf32>
    %582 = vector.extract_strided_slice %580 {offsets = [0, 0], sizes = [1, 16], strides = [1, 1]} : vector<2x16xf32> to vector<1x16xf32>
    %583 = vector.extract_strided_slice %580 {offsets = [1, 0], sizes = [1, 16], strides = [1, 1]} : vector<2x16xf32> to vector<1x16xf32>
    %584 = vector.extract_strided_slice %435 {offsets = [1, 0], sizes = [1, 16], strides = [1, 1]} : vector<2x16xf32> to vector<1x16xf32>
    %585 = tpu.concatenate %582, %548, %583, %581, %584 in 1 : vector<1x16xf32>, vector<1x16xf32>, vector<1x16xf32>, vector<1x16xf32>, vector<1x16xf32> -> vector<1x80xf32>
    %586 = tpu.concatenate %518, %585 in 0 : vector<1x80xf32>, vector<1x80xf32> -> vector<2x80xf32>
    %c368 = arith.constant 368 : index
    %c0_123 = arith.constant 0 : index
    %587 = vector.load %arg2[%c368, %c0_123] : memref<456x128xf32, #tpu.memory_space<vmem>>, vector<80x2xf32>
    %cst_124 = arith.constant dense<0.000000e+00> : vector<2x2xf32>
    %588 = tpu.matmul %586, %587, %cst_124 {dimension_numbers = #tpu.dot_dimension_numbers<[1], [0], [0], [1], [0, 0, 1, 1], [], []>} : vector<2x80xf32>, vector<80x2xf32>, vector<2x2xf32> -> vector<2x2xf32>
    %c448 = arith.constant 448 : index
    %c0_125 = arith.constant 0 : index
    %589 = vector.load %arg2[%c448, %c0_125] : memref<456x128xf32, #tpu.memory_space<vmem>>, vector<1x2xf32>
    %590 = vector.broadcast %589 : vector<1x2xf32> to vector<2x2xf32>
    %591 = arith.addf %588, %590 : vector<2x2xf32>
    %cst_126 = arith.constant 0.000000e+00 : f32
    %592 = vector.broadcast %cst_126 : f32 to vector<2x2xf32>
    %593 = arith.maximumf %591, %592 : vector<2x2xf32>
    %cst_127 = arith.constant dense<0xFF800000> : vector<2xf32>
    %594 = vector.multi_reduction <maximumf>, %593, %cst_127 [1] : vector<2x2xf32> to vector<2xf32>
    %595 = vector.shape_cast %594 : vector<2xf32> to vector<2x1xf32>
    %596 = vector.broadcast %595 : vector<2x1xf32> to vector<2x2xf32>
    %597 = arith.subf %593, %596 : vector<2x2xf32>
    %598 = math.exp %597 : vector<2x2xf32>
    %cst_128 = arith.constant dense<0.000000e+00> : vector<2xf32>
    %599 = vector.multi_reduction <add>, %598, %cst_128 [1] : vector<2x2xf32> to vector<2xf32>
    %600 = vector.shape_cast %599 : vector<2xf32> to vector<2x1xf32>
    %601 = vector.broadcast %600 : vector<2x1xf32> to vector<2x2xf32>
    %602 = arith.divf %598, %601 : vector<2x2xf32>
    %c0_129 = arith.constant 0 : index
    %c0_130 = arith.constant 0 : index
    %603 = vector.load %arg3[%c0_129, %c0_130] : memref<2x2xf32, #tpu.memory_space<vmem>>, vector<2x2xf32>
    tpu.vector_store %arg3[%c0_129, %c0_130], %602 {strides = array<i32>} : memref<2x2xf32, #tpu.memory_space<vmem>>, vector<2x2xf32>,
    return
  }
}

</mosaic_0001>

<llo_original>
// kernel: gcan_forward.1
$region0: #{gcan_forward.1}
  #allocation0 [shape = 'u32[]', space=smem, size = 0x4, offset = 0x4, fixed_abs, tag = 'smem constant byte address 0x4 - core index']
  #allocation1 [shape = 'u32[144,128]{1,0:T(1,128)}', space=vmem, size = 0x12000, scoped, tag = 'internal scratch']
  %s0 = inlined_call_operand.vmem [shape: f32[2,6,24], index: 0, kind: input, shape index: {}]
  %s1 = inlined_call_operand.vmem [shape: f32[2,8,12], index: 1, kind: input, shape index: {}]
  %s2 = inlined_call_operand.hbm [shape: f32[456,128], index: 2, kind: input, shape index: {}]
  %s3 = inlined_call_operand.hbm [shape: f32[2,2], index: 3, kind: output, shape index: {}]
  %s4 = sld [smem:[#allocation0]]
  $region26: #{gcan_forward.1} parent=0
    _
  %s6 = ssub.s32 1, %s4
  %s7 = scalar_select 0, %s6, %s4
  $region1: #{gcan_forward.1} parent=0
    #allocation2 [shape = 'u8[233472]{0}', space=vmem, size = 0x39000, scoped, tag = 'input window, operand 2, single buffered']
    #allocation3 [shape = 's32[1]{0}', space=sflag, size = 0x4, scoped, tag = 'scoped memory for gcan_forward.1']
    #allocation4 [shape = 's32[1]{0}', space=sflag, size = 0x4, scoped, tag = 'scoped memory for gcan_forward.1']
    #allocation5 [shape = 'u8[1024]{0}', space=vmem, size = 0x400, scoped, tag = 'output window, operand 0, single buffered']
    %8 = vsyncpa [#allocation3], 0
    %9 = vsyncpa [#allocation4], 0
    // Predicated region
    $region2: #{gcan_forward.1} parent=1 // pred_check
      _
    $region3: #{gcan_forward.1} parent=1 // pred_check_branch
      %11 = sbr.rel (0) target = $region5
    $region4: #{gcan_forward.1} parent=1 // pred_region
      _
    $region5: #{gcan_forward.1} parent=1 // pred_fallthru
      _
    // Predicated region
    $region6: #{gcan_forward.1} parent=1 // pred_check
      _
    $region7: #{gcan_forward.1} parent=1 // pred_check_branch
      %13 = sbr.rel (0) target = $region9
    $region8: #{gcan_forward.1} parent=1 // pred_region
      _
    $region9: #{gcan_forward.1} parent=1 // pred_fallthru
      _
    // Predicated region
    $region10: #{gcan_forward.1} parent=1 // pred_check
      _
    $region11: #{gcan_forward.1} parent=1 // pred_check_branch
      %15 = sbr.rel (0) target = $region13
    $region12: #{gcan_forward.1} parent=1 // pred_region
      %s17 = ssub.s32 7296, 7296
      %18 = vsyncadd [#allocation3], %s17
      %s19 = sshll.u32 [#allocation2], 4
      %s20 = int_to_ptr.vmem [resolvable:$true] %s19
      %25 = dma.hbm_to_vmem [thread:$0]  %s2, 7296, %s20, [#allocation3], 128, 128, 8
    $region13: #{gcan_forward.1} parent=1 // pred_fallthru
      _
    // Predicated region
    $region14: #{gcan_forward.1} parent=1 // pred_check
      _
    $region15: #{gcan_forward.1} parent=1 // pred_check_branch
      %27 = sbr.rel (0) target = $region17
    $region16: #{gcan_forward.1} parent=1 // pred_region
      %28 = dma.done [#allocation3], 7296
    $region17: #{gcan_forward.1} parent=1 // pred_fallthru
      _
    %v29 = vld [vmem:[%s0] sm:$0x3f]
    %v30 = vld [vmem:[%s0 + $0x8] sm:$0x3f]
    %v31 = vld [vmem:[%s1] sm:$0xff]
    %v32 = vld [vmem:[%s1 + $0x8] sm:$0xff]
    %vm33 = vcmask 97280
    %v34 = vsel %vm33, %v31, 0.0
    %v35 = vrot.slane %v34, 4
    %v36 = vadd.f32 %v34, %v35
    %v37 = vrot.slane %v36, 2
    %v38 = vadd.f32 %v36, %v37
    %v39 = vrot.slane %v38, 1
    %v40 = vadd.f32 %v38, %v39
    %v41 = vsel %vm33, %v32, 0.0
    %v42 = vrot.slane %v41, 4
    %v43 = vadd.f32 %v41, %v42
    %v44 = vrot.slane %v43, 2
    %v45 = vadd.f32 %v43, %v44
    %v46 = vrot.slane %v45, 1
    %v47 = vadd.f32 %v45, %v46
    %v48 = vrcp.pop 8.0
    %v49 = vmul.f32 %v40, %v48
    %v50 = vmul.f32 %v47, %v48
    %v51 = vld [vmem:[#allocation2] sm:$0xff]
    %v52 = vld [vmem:[#allocation2 + $0x8] sm:$0xf]
    %v53 = vld [vmem:[#allocation2 + $0x10] sm:$0x1]
    %v54 = vlaneseq
    %v55 = vshrl.u32 %v54, 7
    %v56 = vsub.s32 0, %v55
    %v57 = vrot.slane %v53, %v56
    %vm60 = vcmask 1041409
    %v61 = vsel %vm60, %v50, %v49
    %v62 = vsel %vm33, %v61, 0
    %vm64 = vcmask 1043456
    %v66 = vsel %vm64, %v52, 0
    %68 = vmatprep.subr.mxu0 0.0
    %69 = vmatpush1.msra.mxu0 %v51
    %70 = vmatprep.subr.mxu0 0.0
    %71 = vmatpush1.msra.mxu0 %v66
    %72 = vmatprep.subr.mxu0 0.0
    %73 = vmatpush1.msra.mxu0 0.0
    %74 = vmatprep.subr.mxu0 0.0
    %75 = vmatpush1.msra.mxu0 0.0
    %76 = vmatprep.subr.mxu0 0.0
    %77 = vmatpush1.msra.mxu0 0.0
    %78 = vmatprep.subr.mxu0 0.0
    %79 = vmatpush1.msra.mxu0 0.0
    %80 = vmatprep.subr.mxu0 0.0
    %81 = vmatpush1.msra.mxu0 0.0
    %82 = vmatprep.subr.mxu0 0.0
    %83 = vmatpush1.msra.mxu0 0.0
    %84 = vmatprep.subr.mxu0 0.0
    %85 = vmatpush1.msra.mxu0 0.0
    %86 = vmatprep.subr.mxu0 0.0
    %87 = vmatpush1.msra.mxu0 0.0
    %88 = vmatprep.subr.mxu0 0.0
    %89 = vmatpush1.msra.mxu0 0.0
    %90 = vmatprep.subr.mxu0 0.0
    %91 = vmatpush1.msra.mxu0 0.0
    %92 = vmatprep.subr.mxu0 0.0
    %93 = vmatpush1.msra.mxu0 0.0
    %94 = vmatprep.subr.mxu0 0.0
    %95 = vmatpush1.msra.mxu0 0.0
    %96 = vmatprep.subr.mxu0 0.0
    %97 = vmatpush1.msra.mxu0 0.0
    %98 = vmatprep.subr.mxu0 0.0
    %99 = vmatpush1.msra.mxu0 0.0
    %100 = vmatprep.subr.mxu0 0.0
    %101 = vmatpush1.msra.mxu0 0.0
    %102 = vmatprep.subr.mxu0 0.0
    %103 = vmatpush1.msra.mxu0 0.0
    %104 = vmatprep.subr.mxu0 0.0
    %105 = vmatpush1.msra.mxu0 0.0
    %106 = vmatprep.subr.mxu0 0.0
    %107 = vmatpush1.msra.mxu0 0.0
    %108 = vmatprep.subr.mxu0 0.0
    %109 = vmatpush1.msra.mxu0 0.0
    %110 = vmatprep.subr.mxu0 0.0
    %111 = vmatpush1.msra.mxu0 0.0
    %112 = vmatprep.subr.mxu0 0.0
    %113 = vmatpush1.msra.mxu0 0.0
    %114 = vmatprep.subr.mxu0 0.0
    %115 = vmatpush1.msra.mxu0 0.0
    %116 = vmatprep.subr.mxu0 0.0
    %117 = vmatpush1.msra.mxu0 0.0
    %118 = vmatprep.subr.mxu0 0.0
    %119 = vmatpush1.msra.mxu0 0.0
    %120 = vmatprep.subr.mxu0 0.0
    %121 = vmatpush1.msra.mxu0 0.0
    %122 = vmatprep.subr.mxu0 0.0
    %123 = vmatpush1.msra.mxu0 0.0
    %124 = vmatprep.subr.mxu0 0.0
    %125 = vmatpush1.msra.mxu0 0.0
    %126 = vmatprep.subr.mxu0 0.0
    %127 = vmatpush1.msra.mxu0 0.0
    %128 = vmatprep.subr.mxu0 0.0
    %129 = vmatpush1.msra.mxu0 0.0
    %130 = vmatprep.subr.mxu0 0.0
    %131 = vmatpush1.msra.mxu0 0.0
    %132 = vmatprep.mubr.f32.mxu0 0.0
    %133 = vmatmul.mubr.f32.gmra.mrb[0].mxu0 %v62
    %v134 = vpop.f32.mrb[0].mxu0
    %v135 = vadd.f32 %v57, %v134
    %v136 = vpop.f32.mrb[0].mxu0
    %137 = vdwg.mxu0
    %v138 = vld [vmem:[#allocation2 + $0x18] sm:$0xff]
    %v139 = vld [vmem:[#allocation2 + $0x20] sm:$0xff]
    %v140 = vld [vmem:[#allocation2 + $0x28] sm:$0xff]
    %v141 = vld [vmem:[#allocation2 + $0x30] sm:$0xff]
    %v142 = vld [vmem:[#allocation2 + $0x38] sm:$0x1]
    %v143 = vlaneseq
    %v144 = vshrl.u32 %v143, 7
    %v145 = vsub.s32 0, %v144
    %v146 = vrot.slane %v142, %v145
    %vm147 = vcmask 261120
    %v149 = vsel %vm147, %v135, 0
    %151 = vmatprep.subr.mxu0 0.0
    %152 = vmatpush1.msra.mxu0 %v138
    %153 = vmatprep.subr.mxu0 0.0
    %154 = vmatpush1.msra.mxu0 %v139
    %155 = vmatprep.subr.mxu0 0.0
    %156 = vmatpush1.msra.mxu0 %v140
    %157 = vmatprep.subr.mxu0 0.0
    %158 = vmatpush1.msra.mxu0 %v141
    %159 = vmatprep.subr.mxu0 0.0
    %160 = vmatpush1.msra.mxu0 0.0
    %161 = vmatprep.subr.mxu0 0.0
    %162 = vmatpush1.msra.mxu0 0.0
    %163 = vmatprep.subr.mxu0 0.0
    %164 = vmatpush1.msra.mxu0 0.0
    %165 = vmatprep.subr.mxu0 0.0
    %166 = vmatpush1.msra.mxu0 0.0
    %167 = vmatprep.subr.mxu0 0.0
    %168 = vmatpush1.msra.mxu0 0.0
    %169 = vmatprep.subr.mxu0 0.0
    %170 = vmatpush1.msra.mxu0 0.0
    %171 = vmatprep.subr.mxu0 0.0
    %172 = vmatpush1.msra.mxu0 0.0
    %173 = vmatprep.subr.mxu0 0.0
    %174 = vmatpush1.msra.mxu0 0.0
    %175 = vmatprep.subr.mxu0 0.0
    %176 = vmatpush1.msra.mxu0 0.0
    %177 = vmatprep.subr.mxu0 0.0
    %178 = vmatpush1.msra.mxu0 0.0
    %179 = vmatprep.subr.mxu0 0.0
    %180 = vmatpush1.msra.mxu0 0.0
    %181 = vmatprep.subr.mxu0 0.0
    %182 = vmatpush1.msra.mxu0 0.0
    %183 = vmatprep.subr.mxu0 0.0
    %184 = vmatpush1.msra.mxu0 0.0
    %185 = vmatprep.subr.mxu0 0.0
    %186 = vmatpush1.msra.mxu0 0.0
    %187 = vmatprep.subr.mxu0 0.0
    %188 = vmatpush1.msra.mxu0 0.0
    %189 = vmatprep.subr.mxu0 0.0
    %190 = vmatpush1.msra.mxu0 0.0
    %191 = vmatprep.subr.mxu0 0.0
    %192 = vmatpush1.msra.mxu0 0.0
    %193 = vmatprep.subr.mxu0 0.0
    %194 = vmatpush1.msra.mxu0 0.0
    %195 = vmatprep.subr.mxu0 0.0
    %196 = vmatpush1.msra.mxu0 0.0
    %197 = vmatprep.subr.mxu0 0.0
    %198 = vmatpush1.msra.mxu0 0.0
    %199 = vmatprep.subr.mxu0 0.0
    %200 = vmatpush1.msra.mxu0 0.0
    %201 = vmatprep.subr.mxu0 0.0
    %202 = vmatpush1.msra.mxu0 0.0
    %203 = vmatprep.subr.mxu0 0.0
    %204 = vmatpush1.msra.mxu0 0.0
    %205 = vmatprep.subr.mxu0 0.0
    %206 = vmatpush1.msra.mxu0 0.0
    %207 = vmatprep.subr.mxu0 0.0
    %208 = vmatpush1.msra.mxu0 0.0
    %209 = vmatprep.subr.mxu0 0.0
    %210 = vmatpush1.msra.mxu0 0.0
    %211 = vmatprep.subr.mxu0 0.0
    %212 = vmatpush1.msra.mxu0 0.0
    %213 = vmatprep.subr.mxu0 0.0
    %214 = vmatpush1.msra.mxu0 0.0
    %215 = vmatprep.mubr.f32.mxu0 0.0
    %216 = vmatmul.mubr.f32.gmra.mrb[0].mxu0 %v149
    %v217 = vpop.f32.mrb[0].mxu0
    %v218 = vadd.f32 %v146, %v217
    %v219 = vpop.f32.mrb[0].mxu0
    %220 = vdwg.mxu0
    %v223 = vcombine.high %v29, %v29
    %v225 = vunpack.c.l.s4 1983009808
    %v226 = vunpack.c.0.s8 %v225
    %v227 = vlaneseq
    %v228 = vshrl.u32 %v227, 7
    %v229 = vsub.s32 %v226, %v228
    %v230 = vrot.slane %v29, %v229
    %v232 = vunpack.c.l.s4 1983009808
    %v233 = vunpack.c.0.s8 %v232
    %v234 = vlaneseq
    %v235 = vshrl.u32 %v234, 7
    %v236 = vsub.s32 %v233, %v235
    %v237 = vrot.slane %v223, %v236
    %v238 = vcombine.high %v230, %v230
    %v239 = vcombine.high %v30, %v30
    %v241 = vunpack.c.l.s4 1983009808
    %v242 = vunpack.c.0.s8 %v241
    %v243 = vlaneseq
    %v244 = vshrl.u32 %v243, 7
    %v245 = vsub.s32 %v242, %v244
    %v246 = vrot.slane %v30, %v245
    %v248 = vunpack.c.l.s4 1983009808
    %v249 = vunpack.c.0.s8 %v248
    %v250 = vlaneseq
    %v251 = vshrl.u32 %v250, 7
    %v252 = vsub.s32 %v249, %v251
    %v253 = vrot.slane %v239, %v252
    %v254 = vcombine.high %v246, %v246
    %v255 = vld [vmem:[#allocation2 + $0x40] sm:$0xff]
    %v256 = vld [vmem:[#allocation2 + $0x48] sm:$0xff]
    %v257 = vld [vmem:[#allocation2 + $0x50] sm:$0xff]
    %v258 = vld [vmem:[#allocation2 + $0x58] sm:$0x1]
    %v259 = vlaneseq
    %v260 = vshrl.u32 %v259, 7
    %v261 = vsub.s32 0, %v260
    %v262 = vrot.slane %v258, %v261
    %v263 = vcombine.low %v230, %v238
    %v264 = vcombine.low %v237, %v246
    %v266 = vunpack.c.l.s4 1983009808
    %v267 = vunpack.c.0.s8 %v266
    %v268 = vlaneseq
    %v269 = vshrl.u32 %v268, 7
    %v270 = vsub.s32 %v267, %v269
    %v271 = vrot.slane %v263, %v270
    %v273 = vunpack.c.l.s4 1983009808
    %v274 = vunpack.c.0.s8 %v273
    %v275 = vlaneseq
    %v276 = vshrl.u32 %v275, 7
    %v277 = vsub.s32 %v274, %v276
    %v278 = vrot.slane %v264, %v277
    %v279 = vcombine.low %v271, %v278
    %v280 = vcombine.low %v254, %v253
    %v282 = vunpack.c.l.s4 1983009808
    %v283 = vunpack.c.0.s8 %v282
    %v284 = vlaneseq
    %v285 = vshrl.u32 %v284, 7
    %v286 = vsub.s32 %v283, %v285
    %v287 = vrot.slane %v280, %v286
    %vm288 = vcmask 195584
    %v289 = vsel %vm288, %v279, 0
    %v291 = vsel %vm288, %v287, 0
    %293 = vmatprep.subr.mxu0 0.0
    %294 = vmatpush1.msra.mxu0 %v255
    %295 = vmatprep.subr.mxu0 0.0
    %296 = vmatpush1.msra.mxu0 %v256
    %297 = vmatprep.subr.mxu0 0.0
    %298 = vmatpush1.msra.mxu0 %v257
    %299 = vmatprep.subr.mxu0 0.0
    %300 = vmatpush1.msra.mxu0 0.0
    %301 = vmatprep.subr.mxu0 0.0
    %302 = vmatpush1.msra.mxu0 0.0
    %303 = vmatprep.subr.mxu0 0.0
    %304 = vmatpush1.msra.mxu0 0.0
    %305 = vmatprep.subr.mxu0 0.0
    %306 = vmatpush1.msra.mxu0 0.0
    %307 = vmatprep.subr.mxu0 0.0
    %308 = vmatpush1.msra.mxu0 0.0
    %309 = vmatprep.subr.mxu0 0.0
    %310 = vmatpush1.msra.mxu0 0.0
    %311 = vmatprep.subr.mxu0 0.0
    %312 = vmatpush1.msra.mxu0 0.0
    %313 = vmatprep.subr.mxu0 0.0
    %314 = vmatpush1.msra.mxu0 0.0
    %315 = vmatprep.subr.mxu0 0.0
    %316 = vmatpush1.msra.mxu0 0.0
    %317 = vmatprep.subr.mxu0 0.0
    %318 = vmatpush1.msra.mxu0 0.0
    %319 = vmatprep.subr.mxu0 0.0
    %320 = vmatpush1.msra.mxu0 0.0
    %321 = vmatprep.subr.mxu0 0.0
    %322 = vmatpush1.msra.mxu0 0.0
    %323 = vmatprep.subr.mxu0 0.0
    %324 = vmatpush1.msra.mxu0 0.0
    %325 = vmatprep.subr.mxu0 0.0
    %326 = vmatpush1.msra.mxu0 0.0
    %327 = vmatprep.subr.mxu0 0.0
    %328 = vmatpush1.msra.mxu0 0.0
    %329 = vmatprep.subr.mxu0 0.0
    %330 = vmatpush1.msra.mxu0 0.0
    %331 = vmatprep.subr.mxu0 0.0
    %332 = vmatpush1.msra.mxu0 0.0
    %333 = vmatprep.subr.mxu0 0.0
    %334 = vmatpush1.msra.mxu0 0.0
    %335 = vmatprep.subr.mxu0 0.0
    %336 = vmatpush1.msra.mxu0 0.0
    %337 = vmatprep.subr.mxu0 0.0
    %338 = vmatpush1.msra.mxu0 0.0
    %339 = vmatprep.subr.mxu0 0.0
    %340 = vmatpush1.msra.mxu0 0.0
    %341 = vmatprep.subr.mxu0 0.0
    %342 = vmatpush1.msra.mxu0 0.0
    %343 = vmatprep.subr.mxu0 0.0
    %344 = vmatpush1.msra.mxu0 0.0
    %345 = vmatprep.subr.mxu0 0.0
    %346 = vmatpush1.msra.mxu0 0.0
    %347 = vmatprep.subr.mxu0 0.0
    %348 = vmatpush1.msra.mxu0 0.0
    %349 = vmatprep.subr.mxu0 0.0
    %350 = vmatpush1.msra.mxu0 0.0
    %351 = vmatprep.subr.mxu0 0.0
    %352 = vmatpush1.msra.mxu0 0.0
    %353 = vmatprep.subr.mxu0 0.0
    %354 = vmatpush1.msra.mxu0 0.0
    %355 = vmatprep.subr.mxu0 0.0
    %356 = vmatpush1.msra.mxu0 0.0
    %357 = vmatprep.mubr.f32.mxu0 0.0
    %358 = vmatmul.mubr.f32.gmra.mrb[0].mxu0 %v289
    %v359 = vpop.f32.mrb[0].mxu0
    %v360 = vadd.f32 %v262, %v359
    %v361 = vpop.f32.mrb[0].mxu0
    %362 = vmatprep.mubr.f32.mxu0 0.0
    %363 = vmatmul.mubr.f32.gmra.mrb[0].mxu0 %v291
    %v364 = vpop.f32.mrb[0].mxu0
    %v365 = vadd.f32 %v262, %v364
    %v366 = vpop.f32.mrb[0].mxu0
    %367 = vdwg.mxu0
    %v368 = vtanh.pop %v360
    %v369 = vtanh.pop %v365
    %v370 = vld [vmem:[#allocation2 + $0x60] sm:$0xff]
    %v371 = vld [vmem:[#allocation2 + $0x68] sm:$0xff]
    %v372 = vld [vmem:[#allocation2 + $0x70] sm:$0xff]
    %v373 = vld [vmem:[#allocation2 + $0x78] sm:$0xff]
    %v374 = vld [vmem:[#allocation2 + $0x80] sm:$0xff]
    %v375 = vld [vmem:[#allocation2 + $0x88] sm:$0xff]
    %v376 = vld [vmem:[#allocation2 + $0x90] sm:$0x1]
    %v377 = vld [vmem:[#allocation2 + $0x98] sm:$0x1]
    %v378 = vlaneseq
    %v379 = vshrl.u32 %v378, 7
    %v380 = vsub.s32 0, %v379
    %v381 = vrot.slane %v376, %v380
    %v383 = vsel %vm147, %v368, 0
    %v386 = vsel %vm147, %v369, 0
    %388 = vmatprep.subr.mxu0 0.0
    %389 = vmatpush1.msra.mxu0 %v370
    %390 = vmatprep.subr.mxu0 0.0
    %391 = vmatpush1.msra.mxu0 %v371
    %392 = vmatprep.subr.mxu0 0.0
    %393 = vmatpush1.msra.mxu0 %v372
    %394 = vmatprep.subr.mxu0 0.0
    %395 = vmatpush1.msra.mxu0 %v373
    %396 = vmatprep.subr.mxu0 0.0
    %397 = vmatpush1.msra.mxu0 0.0
    %398 = vmatprep.subr.mxu0 0.0
    %399 = vmatpush1.msra.mxu0 0.0
    %400 = vmatprep.subr.mxu0 0.0
    %401 = vmatpush1.msra.mxu0 0.0
    %402 = vmatprep.subr.mxu0 0.0
    %403 = vmatpush1.msra.mxu0 0.0
    %404 = vmatprep.subr.mxu0 0.0
    %405 = vmatpush1.msra.mxu0 0.0
    %406 = vmatprep.subr.mxu0 0.0
    %407 = vmatpush1.msra.mxu0 0.0
    %408 = vmatprep.subr.mxu0 0.0
    %409 = vmatpush1.msra.mxu0 0.0
    %410 = vmatprep.subr.mxu0 0.0
    %411 = vmatpush1.msra.mxu0 0.0
    %412 = vmatprep.subr.mxu0 0.0
    %413 = vmatpush1.msra.mxu0 0.0
    %414 = vmatprep.subr.mxu0 0.0
    %415 = vmatpush1.msra.mxu0 0.0
    %416 = vmatprep.subr.mxu0 0.0
    %417 = vmatpush1.msra.mxu0 0.0
    %418 = vmatprep.subr.mxu0 0.0
    %419 = vmatpush1.msra.mxu0 0.0
    %420 = vmatprep.subr.mxu0 0.0
    %421 = vmatpush1.msra.mxu0 0.0
    %422 = vmatprep.subr.mxu0 0.0
    %423 = vmatpush1.msra.mxu0 0.0
    %424 = vmatprep.subr.mxu0 0.0
    %425 = vmatpush1.msra.mxu0 0.0
    %426 = vmatprep.subr.mxu0 0.0
    %427 = vmatpush1.msra.mxu0 0.0
    %428 = vmatprep.subr.mxu0 0.0
    %429 = vmatpush1.msra.mxu0 0.0
    %430 = vmatprep.subr.mxu0 0.0
    %431 = vmatpush1.msra.mxu0 0.0
    %432 = vmatprep.subr.mxu0 0.0
    %433 = vmatpush1.msra.mxu0 0.0
    %434 = vmatprep.subr.mxu0 0.0
    %435 = vmatpush1.msra.mxu0 0.0
    %436 = vmatprep.subr.mxu0 0.0
    %437 = vmatpush1.msra.mxu0 0.0
    %438 = vmatprep.subr.mxu0 0.0
    %439 = vmatpush1.msra.mxu0 0.0
    %440 = vmatprep.subr.mxu0 0.0
    %441 = vmatpush1.msra.mxu0 0.0
    %442 = vmatprep.subr.mxu0 0.0
    %443 = vmatpush1.msra.mxu0 0.0
    %444 = vmatprep.subr.mxu0 0.0
    %445 = vmatpush1.msra.mxu0 0.0
    %446 = vmatprep.subr.mxu0 0.0
    %447 = vmatpush1.msra.mxu0 0.0
    %448 = vmatprep.subr.mxu0 0.0
    %449 = vmatpush1.msra.mxu0 0.0
    %450 = vmatprep.subr.mxu0 0.0
    %451 = vmatpush1.msra.mxu0 0.0
    %452 = vmatprep.mubr.f32.mxu0 0.0
    %453 = vmatmul.mubr.f32.gmra.mrb[0].mxu0 %v383
    %v454 = vpop.f32.mrb[0].mxu0
    %v455 = vadd.f32 %v381, %v454
    %v456 = vpop.f32.mrb[0].mxu0
    %457 = vmatprep.mubr.f32.mxu0 0.0
    %458 = vmatmul.mubr.f32.gmra.mrb[0].mxu0 %v386
    %v459 = vpop.f32.mrb[0].mxu0
    %v460 = vadd.f32 %v381, %v459
    %v461 = vpop.f32.mrb[0].mxu0
    %462 = vdwg.mxu0
    %v465 = vcombine.high %v455, %v455
    %v467 = vunpack.c.l.s4 1983009808
    %v468 = vunpack.c.0.s8 %v467
    %v469 = vlaneseq
    %v470 = vshrl.u32 %v469, 7
    %v471 = vsub.s32 %v468, %v470
    %v472 = vrot.slane %v455, %v471
    %v474 = vunpack.c.l.s4 1983009808
    %v475 = vunpack.c.0.s8 %v474
    %v476 = vlaneseq
    %v477 = vshrl.u32 %v476, 7
    %v478 = vsub.s32 %v475, %v477
    %v479 = vrot.slane %v465, %v478
    %v480 = vcombine.high %v472, %v472
    %v481 = vcombine.high %v479, %v479
    %v483 = vunpack.c.l.s4 1983009808
    %v484 = vunpack.c.0.s8 %v483
    %v485 = vlaneseq
    %v486 = vshrl.u32 %v485, 7
    %v487 = vsub.s32 %v484, %v486
    %v488 = vrot.slane %v460, %v487
    %v489 = vcombine.high %v488, %v488
    %v496 = vlaneseq
    %v497 = vshrl.u32 %v496, 7
    %v498 = vsub.s32 0, %v497
    %v499 = vrot.slane %v377, %v498
    %vm500 = vcmask 130048
    %v502 = vsel %vm500, 0.0, 0
    %504 = vmatprep.subr.mxu0 0.0
    %505 = vmatpush1.msra.mxu0 %v374
    %506 = vmatprep.subr.mxu0 0.0
    %507 = vmatpush1.msra.mxu0 %v375
    %508 = vmatprep.subr.mxu0 0.0
    %509 = vmatpush1.msra.mxu0 0.0
    %510 = vmatprep.subr.mxu0 0.0
    %511 = vmatpush1.msra.mxu0 0.0
    %512 = vmatprep.subr.mxu0 0.0
    %513 = vmatpush1.msra.mxu0 0.0
    %514 = vmatprep.subr.mxu0 0.0
    %515 = vmatpush1.msra.mxu0 0.0
    %516 = vmatprep.subr.mxu0 0.0
    %517 = vmatpush1.msra.mxu0 0.0
    %518 = vmatprep.subr.mxu0 0.0
    %519 = vmatpush1.msra.mxu0 0.0
    %520 = vmatprep.subr.mxu0 0.0
    %521 = vmatpush1.msra.mxu0 0.0
    %522 = vmatprep.subr.mxu0 0.0
    %523 = vmatpush1.msra.mxu0 0.0
    %524 = vmatprep.subr.mxu0 0.0
    %525 = vmatpush1.msra.mxu0 0.0
    %526 = vmatprep.subr.mxu0 0.0
    %527 = vmatpush1.msra.mxu0 0.0
    %528 = vmatprep.subr.mxu0 0.0
    %529 = vmatpush1.msra.mxu0 0.0
    %530 = vmatprep.subr.mxu0 0.0
    %531 = vmatpush1.msra.mxu0 0.0
    %532 = vmatprep.subr.mxu0 0.0
    %533 = vmatpush1.msra.mxu0 0.0
    %534 = vmatprep.subr.mxu0 0.0
    %535 = vmatpush1.msra.mxu0 0.0
    %536 = vmatprep.subr.mxu0 0.0
    %537 = vmatpush1.msra.mxu0 0.0
    %538 = vmatprep.subr.mxu0 0.0
    %539 = vmatpush1.msra.mxu0 0.0
    %540 = vmatprep.subr.mxu0 0.0
    %541 = vmatpush1.msra.mxu0 0.0
    %542 = vmatprep.subr.mxu0 0.0
    %543 = vmatpush1.msra.mxu0 0.0
    %544 = vmatprep.subr.mxu0 0.0
    %545 = vmatpush1.msra.mxu0 0.0
    %546 = vmatprep.subr.mxu0 0.0
    %547 = vmatpush1.msra.mxu0 0.0
    %548 = vmatprep.subr.mxu0 0.0
    %549 = vmatpush1.msra.mxu0 0.0
    %550 = vmatprep.subr.mxu0 0.0
    %551 = vmatpush1.msra.mxu0 0.0
    %552 = vmatprep.subr.mxu0 0.0
    %553 = vmatpush1.msra.mxu0 0.0
    %554 = vmatprep.subr.mxu0 0.0
    %555 = vmatpush1.msra.mxu0 0.0
    %556 = vmatprep.subr.mxu0 0.0
    %557 = vmatpush1.msra.mxu0 0.0
    %558 = vmatprep.subr.mxu0 0.0
    %559 = vmatpush1.msra.mxu0 0.0
    %560 = vmatprep.subr.mxu0 0.0
    %561 = vmatpush1.msra.mxu0 0.0
    %562 = vmatprep.subr.mxu0 0.0
    %563 = vmatpush1.msra.mxu0 0.0
    %564 = vmatprep.subr.mxu0 0.0
    %565 = vmatpush1.msra.mxu0 0.0
    %566 = vmatprep.subr.mxu0 0.0
    %567 = vmatpush1.msra.mxu0 0.0
    %568 = vmatprep.mubr.f32.mxu0 0.0
    %569 = vmatmul.mubr.f32.gmra.mrb[0].mxu0 %v502
    %v570 = vpop.f32.mrb[0].mxu0
    %v571 = vadd.f32 %v499, %v570
    %v572 = vpop.f32.mrb[0].mxu0
    %573 = vdwg.mxu0
    %v576 = vunpack.c.l.s4 1983009808
    %v577 = vunpack.c.0.s8 %v576
    %v578 = vlaneseq
    %v579 = vshrl.u32 %v578, 7
    %v580 = vsub.s32 %v577, %v579
    %v581 = vrot.slane %v571, %v580
    %v582 = vrot.slane %v581, 1
    %v585 = vadd.f32 %v472, %v581
    %v586 = vadd.f32 %v481, %v582
    %v587 = vxor.u32 %v585, 2147483648
    %v588 = vxor.u32 %v586, 2147483648
    %v589 = vmul.f32 %v587, 1.442695
    %v590 = vpow.pop %v589
    %v591 = vmul.f32 %v588, 1.442695
    %v592 = vpow.pop %v591
    %v593 = vadd.f32 %v590, 1.0
    %v594 = vadd.f32 %v592, 1.0
    %v595 = vrcp.pop %v593
    %v596 = vmul.f32 1.0, %v595
    %v597 = vrcp.pop %v594
    %v598 = vmul.f32 1.0, %v597
    %599 = vrot.lane.b32.xlu0 %v581, 96
    %v600 = vpop.permute.xlu0 %599
    %601 = vrot.lane.b32.xlu0 %v582, 96
    %v602 = vpop.permute.xlu0 %601
    %v605 = vmul.f32 %v596, %v600
    %v606 = vmul.f32 %v598, %v602
    %609 = vrot.lane.b32.xlu0 %v605, 32
    %v610 = vpop.permute.xlu0 %609
    %611 = vrot.lane.b32.xlu0 %v606, 32
    %v612 = vpop.permute.xlu0 %611
    %v615 = vadd.f32 %v472, %v610
    %v616 = vadd.f32 %v481, %v612
    %v617 = vtanh.pop %v615
    %v618 = vtanh.pop %v616
    %v619 = vsub.f32 1.0, %v596
    %v620 = vsub.f32 1.0, %v598
    %623 = vrot.lane.b32.xlu0 %v617, 112
    %v624 = vpop.permute.xlu0 %623
    %625 = vrot.lane.b32.xlu0 %v618, 112
    %v626 = vpop.permute.xlu0 %625
    %v629 = vmul.f32 %v619, %v624
    %v630 = vmul.f32 %v620, %v626
    %v631 = vmul.f32 %v596, 0.0
    %v632 = vmul.f32 %v598, 0.0
    %v633 = vadd.f32 %v629, %v631
    %v634 = vadd.f32 %v630, %v632
    %v637 = vlaneseq
    %v638 = vshrl.u32 %v637, 7
    %v639 = vsub.s32 0, %v638
    %v640 = vrot.slane %v633, %v639
    %v641 = vlaneseq
    %v642 = vshrl.u32 %v641, 7
    %v643 = vsub.s32 0, %v642
    %v644 = vrot.slane %v634, %v643
    %v645 = vsel %vm60, %v644, %v640
    %646 = vrot.lane.b32.xlu0 %v645, 112
    %v647 = vpop.permute.xlu0 %646
    %v648 = vsel %vm500, %v647, 0
    %650 = vmatprep.subr.mxu0 0.0
    %651 = vmatpush1.msra.mxu0 %v374
    %652 = vmatprep.subr.mxu0 0.0
    %653 = vmatpush1.msra.mxu0 %v375
    %654 = vmatprep.subr.mxu0 0.0
    %655 = vmatpush1.msra.mxu0 0.0
    %656 = vmatprep.subr.mxu0 0.0
    %657 = vmatpush1.msra.mxu0 0.0
    %658 = vmatprep.subr.mxu0 0.0
    %659 = vmatpush1.msra.mxu0 0.0
    %660 = vmatprep.subr.mxu0 0.0
    %661 = vmatpush1.msra.mxu0 0.0
    %662 = vmatprep.subr.mxu0 0.0
    %663 = vmatpush1.msra.mxu0 0.0
    %664 = vmatprep.subr.mxu0 0.0
    %665 = vmatpush1.msra.mxu0 0.0
    %666 = vmatprep.subr.mxu0 0.0
    %667 = vmatpush1.msra.mxu0 0.0
    %668 = vmatprep.subr.mxu0 0.0
    %669 = vmatpush1.msra.mxu0 0.0
    %670 = vmatprep.subr.mxu0 0.0
    %671 = vmatpush1.msra.mxu0 0.0
    %672 = vmatprep.subr.mxu0 0.0
    %673 = vmatpush1.msra.mxu0 0.0
    %674 = vmatprep.subr.mxu0 0.0
    %675 = vmatpush1.msra.mxu0 0.0
    %676 = vmatprep.subr.mxu0 0.0
    %677 = vmatpush1.msra.mxu0 0.0
    %678 = vmatprep.subr.mxu0 0.0
    %679 = vmatpush1.msra.mxu0 0.0
    %680 = vmatprep.subr.mxu0 0.0
    %681 = vmatpush1.msra.mxu0 0.0
    %682 = vmatprep.subr.mxu0 0.0
    %683 = vmatpush1.msra.mxu0 0.0
    %684 = vmatprep.subr.mxu0 0.0
    %685 = vmatpush1.msra.mxu0 0.0
    %686 = vmatprep.subr.mxu0 0.0
    %687 = vmatpush1.msra.mxu0 0.0
    %688 = vmatprep.subr.mxu0 0.0
    %689 = vmatpush1.msra.mxu0 0.0
    %690 = vmatprep.subr.mxu0 0.0
    %691 = vmatpush1.msra.mxu0 0.0
    %692 = vmatprep.subr.mxu0 0.0
    %693 = vmatpush1.msra.mxu0 0.0
    %694 = vmatprep.subr.mxu0 0.0
    %695 = vmatpush1.msra.mxu0 0.0
    %696 = vmatprep.subr.mxu0 0.0
    %697 = vmatpush1.msra.mxu0 0.0
    %698 = vmatprep.subr.mxu0 0.0
    %699 = vmatpush1.msra.mxu0 0.0
    %700 = vmatprep.subr.mxu0 0.0
    %701 = vmatpush1.msra.mxu0 0.0
    %702 = vmatprep.subr.mxu0 0.0
    %703 = vmatpush1.msra.mxu0 0.0
    %704 = vmatprep.subr.mxu0 0.0
    %705 = vmatpush1.msra.mxu0 0.0
    %706 = vmatprep.subr.mxu0 0.0
    %707 = vmatpush1.msra.mxu0 0.0
    %708 = vmatprep.subr.mxu0 0.0
    %709 = vmatpush1.msra.mxu0 0.0
    %710 = vmatprep.subr.mxu0 0.0
    %711 = vmatpush1.msra.mxu0 0.0
    %712 = vmatprep.subr.mxu0 0.0
    %713 = vmatpush1.msra.mxu0 0.0
    %714 = vmatprep.mubr.f32.mxu0 0.0
    %715 = vmatmul.mubr.f32.gmra.mrb[0].mxu0 %v648
    %v716 = vpop.f32.mrb[0].mxu0
    %v717 = vadd.f32 %v499, %v716
    %v718 = vpop.f32.mrb[0].mxu0
    %719 = vdwg.mxu0
    %v722 = vunpack.c.l.s4 1983009808
    %v723 = vunpack.c.0.s8 %v722
    %v724 = vlaneseq
    %v725 = vshrl.u32 %v724, 7
    %v726 = vsub.s32 %v723, %v725
    %v727 = vrot.slane %v717, %v726
    %v728 = vrot.slane %v727, 7
    %v731 = vadd.f32 %v472, %v728
    %v732 = vadd.f32 %v481, %v727
    %v733 = vxor.u32 %v731, 2147483648
    %v734 = vxor.u32 %v732, 2147483648
    %v735 = vmul.f32 %v733, 1.442695
    %v736 = vpow.pop %v735
    %v737 = vmul.f32 %v734, 1.442695
    %v738 = vpow.pop %v737
    %v739 = vadd.f32 %v736, 1.0
    %v740 = vadd.f32 %v738, 1.0
    %v741 = vrcp.pop %v739
    %v742 = vmul.f32 1.0, %v741
    %v743 = vrcp.pop %v740
    %v744 = vmul.f32 1.0, %v743
    %745 = vrot.lane.b32.xlu0 %v728, 96
    %v746 = vpop.permute.xlu0 %745
    %747 = vrot.lane.b32.xlu0 %v727, 96
    %v748 = vpop.permute.xlu0 %747
    %v751 = vmul.f32 %v742, %v746
    %v752 = vmul.f32 %v744, %v748
    %755 = vrot.lane.b32.xlu0 %v751, 32
    %v756 = vpop.permute.xlu0 %755
    %757 = vrot.lane.b32.xlu0 %v752, 32
    %v758 = vpop.permute.xlu0 %757
    %v761 = vadd.f32 %v472, %v756
    %v762 = vadd.f32 %v481, %v758
    %v763 = vtanh.pop %v761
    %v764 = vtanh.pop %v762
    %v765 = vsub.f32 1.0, %v742
    %v766 = vsub.f32 1.0, %v744
    %769 = vrot.lane.b32.xlu0 %v763, 112
    %v770 = vpop.permute.xlu0 %769
    %771 = vrot.lane.b32.xlu0 %v764, 112
    %v772 = vpop.permute.xlu0 %771
    %v775 = vmul.f32 %v765, %v770
    %v776 = vmul.f32 %v766, %v772
    %v777 = vrot.slane %v633, 7
    %v778 = vrot.slane %v634, 7
    %v781 = vmul.f32 %v742, %v777
    %v782 = vmul.f32 %v744, %v778
    %v783 = vadd.f32 %v775, %v781
    %v784 = vadd.f32 %v776, %v782
    %v787 = vlaneseq
    %v788 = vshrl.u32 %v787, 7
    %v789 = vsub.s32 1, %v788
    %v790 = vrot.slane %v783, %v789
    %v791 = vlaneseq
    %v792 = vshrl.u32 %v791, 7
    %v793 = vsub.s32 1, %v792
    %v794 = vrot.slane %v784, %v793
    %v795 = vsel %vm60, %v794, %v790
    %796 = vrot.lane.b32.xlu0 %v795, 112
    %v797 = vpop.permute.xlu0 %796
    %v798 = vsel %vm500, %v797, 0
    %800 = vmatprep.subr.mxu0 0.0
    %801 = vmatpush1.msra.mxu0 %v374
    %802 = vmatprep.subr.mxu0 0.0
    %803 = vmatpush1.msra.mxu0 %v375
    %804 = vmatprep.subr.mxu0 0.0
    %805 = vmatpush1.msra.mxu0 0.0
    %806 = vmatprep.subr.mxu0 0.0
    %807 = vmatpush1.msra.mxu0 0.0
    %808 = vmatprep.subr.mxu0 0.0
    %809 = vmatpush1.msra.mxu0 0.0
    %810 = vmatprep.subr.mxu0 0.0
    %811 = vmatpush1.msra.mxu0 0.0
    %812 = vmatprep.subr.mxu0 0.0
    %813 = vmatpush1.msra.mxu0 0.0
    %814 = vmatprep.subr.mxu0 0.0
    %815 = vmatpush1.msra.mxu0 0.0
    %816 = vmatprep.subr.mxu0 0.0
    %817 = vmatpush1.msra.mxu0 0.0
    %818 = vmatprep.subr.mxu0 0.0
    %819 = vmatpush1.msra.mxu0 0.0
    %820 = vmatprep.subr.mxu0 0.0
    %821 = vmatpush1.msra.mxu0 0.0
    %822 = vmatprep.subr.mxu0 0.0
    %823 = vmatpush1.msra.mxu0 0.0
    %824 = vmatprep.subr.mxu0 0.0
    %825 = vmatpush1.msra.mxu0 0.0
    %826 = vmatprep.subr.mxu0 0.0
    %827 = vmatpush1.msra.mxu0 0.0
    %828 = vmatprep.subr.mxu0 0.0
    %829 = vmatpush1.msra.mxu0 0.0
    %830 = vmatprep.subr.mxu0 0.0
    %831 = vmatpush1.msra.mxu0 0.0
    %832 = vmatprep.subr.mxu0 0.0
    %833 = vmatpush1.msra.mxu0 0.0
    %834 = vmatprep.subr.mxu0 0.0
    %835 = vmatpush1.msra.mxu0 0.0
    %836 = vmatprep.subr.mxu0 0.0
    %837 = vmatpush1.msra.mxu0 0.0
    %838 = vmatprep.subr.mxu0 0.0
    %839 = vmatpush1.msra.mxu0 0.0
    %840 = vmatprep.subr.mxu0 0.0
    %841 = vmatpush1.msra.mxu0 0.0
    %842 = vmatprep.subr.mxu0 0.0
    %843 = vmatpush1.msra.mxu0 0.0
    %844 = vmatprep.subr.mxu0 0.0
    %845 = vmatpush1.msra.mxu0 0.0
    %846 = vmatprep.subr.mxu0 0.0
    %847 = vmatpush1.msra.mxu0 0.0
    %848 = vmatprep.subr.mxu0 0.0
    %849 = vmatpush1.msra.mxu0 0.0
    %850 = vmatprep.subr.mxu0 0.0
    %851 = vmatpush1.msra.mxu0 0.0
    %852 = vmatprep.subr.mxu0 0.0
    %853 = vmatpush1.msra.mxu0 0.0
    %854 = vmatprep.subr.mxu0 0.0
    %855 = vmatpush1.msra.mxu0 0.0
    %856 = vmatprep.subr.mxu0 0.0
    %857 = vmatpush1.msra.mxu0 0.0
    %858 = vmatprep.subr.mxu0 0.0
    %859 = vmatpush1.msra.mxu0 0.0
    %860 = vmatprep.subr.mxu0 0.0
    %861 = vmatpush1.msra.mxu0 0.0
    %862 = vmatprep.subr.mxu0 0.0
    %863 = vmatpush1.msra.mxu0 0.0
    %864 = vmatprep.mubr.f32.mxu0 0.0
    %865 = vmatmul.mubr.f32.gmra.mrb[0].mxu0 %v798
    %v866 = vpop.f32.mrb[0].mxu0
    %v867 = vadd.f32 %v499, %v866
    %v868 = vpop.f32.mrb[0].mxu0
    %869 = vdwg.mxu0
    %v872 = vunpack.c.l.s4 1983009808
    %v873 = vunpack.c.0.s8 %v872
    %v874 = vlaneseq
    %v875 = vshrl.u32 %v874, 7
    %v876 = vsub.s32 %v873, %v875
    %v877 = vrot.slane %v867, %v876
    %v878 = vrot.slane %v877, 1
    %v881 = vadd.f32 %v480, %v877
    %v882 = vadd.f32 %v488, %v878
    %v883 = vxor.u32 %v881, 2147483648
    %v884 = vxor.u32 %v882, 2147483648
    %v885 = vmul.f32 %v883, 1.442695
    %v886 = vpow.pop %v885
    %v887 = vmul.f32 %v884, 1.442695
    %v888 = vpow.pop %v887
    %v889 = vadd.f32 %v886, 1.0
    %v890 = vadd.f32 %v888, 1.0
    %v891 = vrcp.pop %v889
    %v892 = vmul.f32 1.0, %v891
    %v893 = vrcp.pop %v890
    %v894 = vmul.f32 1.0, %v893
    %895 = vrot.lane.b32.xlu0 %v877, 96
    %v896 = vpop.permute.xlu0 %895
    %897 = vrot.lane.b32.xlu0 %v878, 96
    %v898 = vpop.permute.xlu0 %897
    %v901 = vmul.f32 %v892, %v896
    %v902 = vmul.f32 %v894, %v898
    %905 = vrot.lane.b32.xlu0 %v901, 32
    %v906 = vpop.permute.xlu0 %905
    %907 = vrot.lane.b32.xlu0 %v902, 32
    %v908 = vpop.permute.xlu0 %907
    %v911 = vadd.f32 %v480, %v906
    %v912 = vadd.f32 %v488, %v908
    %v913 = vtanh.pop %v911
    %v914 = vtanh.pop %v912
    %v915 = vsub.f32 1.0, %v892
    %v916 = vsub.f32 1.0, %v894
    %919 = vrot.lane.b32.xlu0 %v913, 112
    %v920 = vpop.permute.xlu0 %919
    %921 = vrot.lane.b32.xlu0 %v914, 112
    %v922 = vpop.permute.xlu0 %921
    %v925 = vmul.f32 %v915, %v920
    %v926 = vmul.f32 %v916, %v922
    %v927 = vrot.slane %v783, 7
    %v928 = vrot.slane %v927, 2
    %v929 = vrot.slane %v784, 7
    %v930 = vrot.slane %v929, 2
    %v933 = vmul.f32 %v892, %v928
    %v934 = vmul.f32 %v894, %v930
    %v935 = vadd.f32 %v925, %v933
    %v936 = vadd.f32 %v926, %v934
    %v939 = vlaneseq
    %v940 = vshrl.u32 %v939, 7
    %v941 = vsub.s32 0, %v940
    %v942 = vrot.slane %v935, %v941
    %v943 = vlaneseq
    %v944 = vshrl.u32 %v943, 7
    %v945 = vsub.s32 0, %v944
    %v946 = vrot.slane %v936, %v945
    %v947 = vsel %vm60, %v946, %v942
    %948 = vrot.lane.b32.xlu0 %v947, 112
    %v949 = vpop.permute.xlu0 %948
    %v950 = vsel %vm500, %v949, 0
    %952 = vmatprep.subr.mxu0 0.0
    %953 = vmatpush1.msra.mxu0 %v374
    %954 = vmatprep.subr.mxu0 0.0
    %955 = vmatpush1.msra.mxu0 %v375
    %956 = vmatprep.subr.mxu0 0.0
    %957 = vmatpush1.msra.mxu0 0.0
    %958 = vmatprep.subr.mxu0 0.0
    %959 = vmatpush1.msra.mxu0 0.0
    %960 = vmatprep.subr.mxu0 0.0
    %961 = vmatpush1.msra.mxu0 0.0
    %962 = vmatprep.subr.mxu0 0.0
    %963 = vmatpush1.msra.mxu0 0.0
    %964 = vmatprep.subr.mxu0 0.0
    %965 = vmatpush1.msra.mxu0 0.0
    %966 = vmatprep.subr.mxu0 0.0
    %967 = vmatpush1.msra.mxu0 0.0
    %968 = vmatprep.subr.mxu0 0.0
    %969 = vmatpush1.msra.mxu0 0.0
    %970 = vmatprep.subr.mxu0 0.0
    %971 = vmatpush1.msra.mxu0 0.0
    %972 = vmatprep.subr.mxu0 0.0
    %973 = vmatpush1.msra.mxu0 0.0
    %974 = vmatprep.subr.mxu0 0.0
    %975 = vmatpush1.msra.mxu0 0.0
    %976 = vmatprep.subr.mxu0 0.0
    %977 = vmatpush1.msra.mxu0 0.0
    %978 = vmatprep.subr.mxu0 0.0
    %979 = vmatpush1.msra.mxu0 0.0
    %980 = vmatprep.subr.mxu0 0.0
    %981 = vmatpush1.msra.mxu0 0.0
    %982 = vmatprep.subr.mxu0 0.0
    %983 = vmatpush1.msra.mxu0 0.0
    %984 = vmatprep.subr.mxu0 0.0
    %985 = vmatpush1.msra.mxu0 0.0
    %986 = vmatprep.subr.mxu0 0.0
    %987 = vmatpush1.msra.mxu0 0.0
    %988 = vmatprep.subr.mxu0 0.0
    %989 = vmatpush1.msra.mxu0 0.0
    %990 = vmatprep.subr.mxu0 0.0
    %991 = vmatpush1.msra.mxu0 0.0
    %992 = vmatprep.subr.mxu0 0.0
    %993 = vmatpush1.msra.mxu0 0.0
    %994 = vmatprep.subr.mxu0 0.0
    %995 = vmatpush1.msra.mxu0 0.0
    %996 = vmatprep.subr.mxu0 0.0
    %997 = vmatpush1.msra.mxu0 0.0
    %998 = vmatprep.subr.mxu0 0.0
    %999 = vmatpush1.msra.mxu0 0.0
    %1000 = vmatprep.subr.mxu0 0.0
    %1001 = vmatpush1.msra.mxu0 0.0
    %1002 = vmatprep.subr.mxu0 0.0
    %1003 = vmatpush1.msra.mxu0 0.0
    %1004 = vmatprep.subr.mxu0 0.0
    %1005 = vmatpush1.msra.mxu0 0.0
    %1006 = vmatprep.subr.mxu0 0.0
    %1007 = vmatpush1.msra.mxu0 0.0
    %1008 = vmatprep.subr.mxu0 0.0
    %1009 = vmatpush1.msra.mxu0 0.0
    %1010 = vmatprep.subr.mxu0 0.0
    %1011 = vmatpush1.msra.mxu0 0.0
    %1012 = vmatprep.subr.mxu0 0.0
    %1013 = vmatpush1.msra.mxu0 0.0
    %1014 = vmatprep.subr.mxu0 0.0
    %1015 = vmatpush1.msra.mxu0 0.0
    %1016 = vmatprep.mubr.f32.mxu0 0.0
    %1017 = vmatmul.mubr.f32.gmra.mrb[0].mxu0 %v950
    %v1018 = vpop.f32.mrb[0].mxu0
    %v1019 = vadd.f32 %v499, %v1018
    %v1020 = vpop.f32.mrb[0].mxu0
    %1021 = vdwg.mxu0
    %v1024 = vunpack.c.l.s4 1983009808
    %v1025 = vunpack.c.0.s8 %v1024
    %v1026 = vlaneseq
    %v1027 = vshrl.u32 %v1026, 7
    %v1028 = vsub.s32 %v1025, %v1027
    %v1029 = vrot.slane %v1019, %v1028
    %v1030 = vrot.slane %v1029, 7
    %v1033 = vadd.f32 %v480, %v1030
    %v1034 = vadd.f32 %v488, %v1029
    %v1035 = vxor.u32 %v1033, 2147483648
    %v1036 = vxor.u32 %v1034, 2147483648
    %v1037 = vmul.f32 %v1035, 1.442695
    %v1038 = vpow.pop %v1037
    %v1039 = vmul.f32 %v1036, 1.442695
    %v1040 = vpow.pop %v1039
    %v1041 = vadd.f32 %v1038, 1.0
    %v1042 = vadd.f32 %v1040, 1.0
    %v1043 = vrcp.pop %v1041
    %v1044 = vmul.f32 1.0, %v1043
    %v1045 = vrcp.pop %v1042
    %v1046 = vmul.f32 1.0, %v1045
    %1047 = vrot.lane.b32.xlu0 %v1030, 96
    %v1048 = vpop.permute.xlu0 %1047
    %1049 = vrot.lane.b32.xlu0 %v1029, 96
    %v1050 = vpop.permute.xlu0 %1049
    %v1053 = vmul.f32 %v1044, %v1048
    %v1054 = vmul.f32 %v1046, %v1050
    %1057 = vrot.lane.b32.xlu0 %v1053, 32
    %v1058 = vpop.permute.xlu0 %1057
    %1059 = vrot.lane.b32.xlu0 %v1054, 32
    %v1060 = vpop.permute.xlu0 %1059
    %v1063 = vadd.f32 %v480, %v1058
    %v1064 = vadd.f32 %v488, %v1060
    %v1065 = vtanh.pop %v1063
    %v1066 = vtanh.pop %v1064
    %v1067 = vsub.f32 1.0, %v1044
    %v1068 = vsub.f32 1.0, %v1046
    %1071 = vrot.lane.b32.xlu0 %v1065, 112
    %v1072 = vpop.permute.xlu0 %1071
    %1073 = vrot.lane.b32.xlu0 %v1066, 112
    %v1074 = vpop.permute.xlu0 %1073
    %v1077 = vmul.f32 %v1067, %v1072
    %v1078 = vmul.f32 %v1068, %v1074
    %v1079 = vrot.slane %v935, 7
    %v1080 = vrot.slane %v936, 7
    %v1083 = vmul.f32 %v1044, %v1079
    %v1084 = vmul.f32 %v1046, %v1080
    %v1085 = vadd.f32 %v1077, %v1083
    %v1086 = vadd.f32 %v1078, %v1084
    %v1089 = vlaneseq
    %v1090 = vshrl.u32 %v1089, 7
    %v1091 = vsub.s32 1, %v1090
    %v1092 = vrot.slane %v1085, %v1091
    %v1093 = vlaneseq
    %v1094 = vshrl.u32 %v1093, 7
    %v1095 = vsub.s32 1, %v1094
    %v1096 = vrot.slane %v1086, %v1095
    %v1097 = vsel %vm60, %v1096, %v1092
    %1098 = vrot.lane.b32.xlu0 %v1097, 112
    %v1099 = vpop.permute.xlu0 %1098
    %v1100 = vsel %vm500, %v1099, 0
    %1102 = vmatprep.subr.mxu0 0.0
    %1103 = vmatpush1.msra.mxu0 %v374
    %1104 = vmatprep.subr.mxu0 0.0
    %1105 = vmatpush1.msra.mxu0 %v375
    %1106 = vmatprep.subr.mxu0 0.0
    %1107 = vmatpush1.msra.mxu0 0.0
    %1108 = vmatprep.subr.mxu0 0.0
    %1109 = vmatpush1.msra.mxu0 0.0
    %1110 = vmatprep.subr.mxu0 0.0
    %1111 = vmatpush1.msra.mxu0 0.0
    %1112 = vmatprep.subr.mxu0 0.0
    %1113 = vmatpush1.msra.mxu0 0.0
    %1114 = vmatprep.subr.mxu0 0.0
    %1115 = vmatpush1.msra.mxu0 0.0
    %1116 = vmatprep.subr.mxu0 0.0
    %1117 = vmatpush1.msra.mxu0 0.0
    %1118 = vmatprep.subr.mxu0 0.0
    %1119 = vmatpush1.msra.mxu0 0.0
    %1120 = vmatprep.subr.mxu0 0.0
    %1121 = vmatpush1.msra.mxu0 0.0
    %1122 = vmatprep.subr.mxu0 0.0
    %1123 = vmatpush1.msra.mxu0 0.0
    %1124 = vmatprep.subr.mxu0 0.0
    %1125 = vmatpush1.msra.mxu0 0.0
    %1126 = vmatprep.subr.mxu0 0.0
    %1127 = vmatpush1.msra.mxu0 0.0
    %1128 = vmatprep.subr.mxu0 0.0
    %1129 = vmatpush1.msra.mxu0 0.0
    %1130 = vmatprep.subr.mxu0 0.0
    %1131 = vmatpush1.msra.mxu0 0.0
    %1132 = vmatprep.subr.mxu0 0.0
    %1133 = vmatpush1.msra.mxu0 0.0
    %1134 = vmatprep.subr.mxu0 0.0
    %1135 = vmatpush1.msra.mxu0 0.0
    %1136 = vmatprep.subr.mxu0 0.0
    %1137 = vmatpush1.msra.mxu0 0.0
    %1138 = vmatprep.subr.mxu0 0.0
    %1139 = vmatpush1.msra.mxu0 0.0
    %1140 = vmatprep.subr.mxu0 0.0
    %1141 = vmatpush1.msra.mxu0 0.0
    %1142 = vmatprep.subr.mxu0 0.0
    %1143 = vmatpush1.msra.mxu0 0.0
    %1144 = vmatprep.subr.mxu0 0.0
    %1145 = vmatpush1.msra.mxu0 0.0
    %1146 = vmatprep.subr.mxu0 0.0
    %1147 = vmatpush1.msra.mxu0 0.0
    %1148 = vmatprep.subr.mxu0 0.0
    %1149 = vmatpush1.msra.mxu0 0.0
    %1150 = vmatprep.subr.mxu0 0.0
    %1151 = vmatpush1.msra.mxu0 0.0
    %1152 = vmatprep.subr.mxu0 0.0
    %1153 = vmatpush1.msra.mxu0 0.0
    %1154 = vmatprep.subr.mxu0 0.0
    %1155 = vmatpush1.msra.mxu0 0.0
    %1156 = vmatprep.subr.mxu0 0.0
    %1157 = vmatpush1.msra.mxu0 0.0
    %1158 = vmatprep.subr.mxu0 0.0
    %1159 = vmatpush1.msra.mxu0 0.0
    %1160 = vmatprep.subr.mxu0 0.0
    %1161 = vmatpush1.msra.mxu0 0.0
    %1162 = vmatprep.subr.mxu0 0.0
    %1163 = vmatpush1.msra.mxu0 0.0
    %1164 = vmatprep.subr.mxu0 0.0
    %1165 = vmatpush1.msra.mxu0 0.0
    %1166 = vmatprep.mubr.f32.mxu0 0.0
    %1167 = vmatmul.mubr.f32.gmra.mrb[0].mxu0 %v1100
    %v1168 = vpop.f32.mrb[0].mxu0
    %v1169 = vadd.f32 %v499, %v1168
    %v1170 = vpop.f32.mrb[0].mxu0
    %1171 = vdwg.mxu0
    %v1174 = vunpack.c.l.s4 1983009808
    %v1175 = vunpack.c.0.s8 %v1174
    %v1176 = vlaneseq
    %v1177 = vshrl.u32 %v1176, 7
    %v1178 = vsub.s32 %v1175, %v1177
    %v1179 = vrot.slane %v1169, %v1178
    %v1180 = vrot.slane %v1179, 1
    %v1183 = vadd.f32 %v479, %v1179
    %v1184 = vadd.f32 %v489, %v1180
    %v1185 = vxor.u32 %v1183, 2147483648
    %v1186 = vxor.u32 %v1184, 2147483648
    %v1187 = vmul.f32 %v1185, 1.442695
    %v1188 = vpow.pop %v1187
    %v1189 = vmul.f32 %v1186, 1.442695
    %v1190 = vpow.pop %v1189
    %v1191 = vadd.f32 %v1188, 1.0
    %v1192 = vadd.f32 %v1190, 1.0
    %v1193 = vrcp.pop %v1191
    %v1194 = vmul.f32 1.0, %v1193
    %v1195 = vrcp.pop %v1192
    %v1196 = vmul.f32 1.0, %v1195
    %1197 = vrot.lane.b32.xlu0 %v1179, 96
    %v1198 = vpop.permute.xlu0 %1197
    %1199 = vrot.lane.b32.xlu0 %v1180, 96
    %v1200 = vpop.permute.xlu0 %1199
    %v1203 = vmul.f32 %v1194, %v1198
    %v1204 = vmul.f32 %v1196, %v1200
    %1207 = vrot.lane.b32.xlu0 %v1203, 32
    %v1208 = vpop.permute.xlu0 %1207
    %1209 = vrot.lane.b32.xlu0 %v1204, 32
    %v1210 = vpop.permute.xlu0 %1209
    %v1213 = vadd.f32 %v479, %v1208
    %v1214 = vadd.f32 %v489, %v1210
    %v1215 = vtanh.pop %v1213
    %v1216 = vtanh.pop %v1214
    %v1217 = vsub.f32 1.0, %v1194
    %v1218 = vsub.f32 1.0, %v1196
    %1221 = vrot.lane.b32.xlu0 %v1215, 112
    %v1222 = vpop.permute.xlu0 %1221
    %1223 = vrot.lane.b32.xlu0 %v1216, 112
    %v1224 = vpop.permute.xlu0 %1223
    %v1227 = vmul.f32 %v1217, %v1222
    %v1228 = vmul.f32 %v1218, %v1224
    %v1229 = vrot.slane %v1085, 7
    %v1230 = vrot.slane %v1229, 2
    %v1231 = vrot.slane %v1086, 7
    %v1232 = vrot.slane %v1231, 2
    %v1235 = vmul.f32 %v1194, %v1230
    %v1236 = vmul.f32 %v1196, %v1232
    %v1237 = vadd.f32 %v1227, %v1235
    %v1238 = vadd.f32 %v1228, %v1236
    %v1241 = vlaneseq
    %v1242 = vshrl.u32 %v1241, 7
    %v1243 = vsub.s32 0, %v1242
    %v1244 = vrot.slane %v1237, %v1243
    %v1245 = vlaneseq
    %v1246 = vshrl.u32 %v1245, 7
    %v1247 = vsub.s32 0, %v1246
    %v1248 = vrot.slane %v1238, %v1247
    %v1249 = vsel %vm60, %v1248, %v1244
    %1250 = vrot.lane.b32.xlu0 %v1249, 112
    %v1251 = vpop.permute.xlu0 %1250
    %v1252 = vsel %vm500, %v1251, 0
    %1254 = vmatprep.subr.mxu0 0.0
    %1255 = vmatpush1.msra.mxu0 %v374
    %1256 = vmatprep.subr.mxu0 0.0
    %1257 = vmatpush1.msra.mxu0 %v375
    %1258 = vmatprep.subr.mxu0 0.0
    %1259 = vmatpush1.msra.mxu0 0.0
    %1260 = vmatprep.subr.mxu0 0.0
    %1261 = vmatpush1.msra.mxu0 0.0
    %1262 = vmatprep.subr.mxu0 0.0
    %1263 = vmatpush1.msra.mxu0 0.0
    %1264 = vmatprep.subr.mxu0 0.0
    %1265 = vmatpush1.msra.mxu0 0.0
    %1266 = vmatprep.subr.mxu0 0.0
    %1267 = vmatpush1.msra.mxu0 0.0
    %1268 = vmatprep.subr.mxu0 0.0
    %1269 = vmatpush1.msra.mxu0 0.0
    %1270 = vmatprep.subr.mxu0 0.0
    %1271 = vmatpush1.msra.mxu0 0.0
    %1272 = vmatprep.subr.mxu0 0.0
    %1273 = vmatpush1.msra.mxu0 0.0
    %1274 = vmatprep.subr.mxu0 0.0
    %1275 = vmatpush1.msra.mxu0 0.0
    %1276 = vmatprep.subr.mxu0 0.0
    %1277 = vmatpush1.msra.mxu0 0.0
    %1278 = vmatprep.subr.mxu0 0.0
    %1279 = vmatpush1.msra.mxu0 0.0
    %1280 = vmatprep.subr.mxu0 0.0
    %1281 = vmatpush1.msra.mxu0 0.0
    %1282 = vmatprep.subr.mxu0 0.0
    %1283 = vmatpush1.msra.mxu0 0.0
    %1284 = vmatprep.subr.mxu0 0.0
    %1285 = vmatpush1.msra.mxu0 0.0
    %1286 = vmatprep.subr.mxu0 0.0
    %1287 = vmatpush1.msra.mxu0 0.0
    %1288 = vmatprep.subr.mxu0 0.0
    %1289 = vmatpush1.msra.mxu0 0.0
    %1290 = vmatprep.subr.mxu0 0.0
    %1291 = vmatpush1.msra.mxu0 0.0
    %1292 = vmatprep.subr.mxu0 0.0
    %1293 = vmatpush1.msra.mxu0 0.0
    %1294 = vmatprep.subr.mxu0 0.0
    %1295 = vmatpush1.msra.mxu0 0.0
    %1296 = vmatprep.subr.mxu0 0.0
    %1297 = vmatpush1.msra.mxu0 0.0
    %1298 = vmatprep.subr.mxu0 0.0
    %1299 = vmatpush1.msra.mxu0 0.0
    %1300 = vmatprep.subr.mxu0 0.0
    %1301 = vmatpush1.msra.mxu0 0.0
    %1302 = vmatprep.subr.mxu0 0.0
    %1303 = vmatpush1.msra.mxu0 0.0
    %1304 = vmatprep.subr.mxu0 0.0
    %1305 = vmatpush1.msra.mxu0 0.0
    %1306 = vmatprep.subr.mxu0 0.0
    %1307 = vmatpush1.msra.mxu0 0.0
    %1308 = vmatprep.subr.mxu0 0.0
    %1309 = vmatpush1.msra.mxu0 0.0
    %1310 = vmatprep.subr.mxu0 0.0
    %1311 = vmatpush1.msra.mxu0 0.0
    %1312 = vmatprep.subr.mxu0 0.0
    %1313 = vmatpush1.msra.mxu0 0.0
    %1314 = vmatprep.subr.mxu0 0.0
    %1315 = vmatpush1.msra.mxu0 0.0
    %1316 = vmatprep.subr.mxu0 0.0
    %1317 = vmatpush1.msra.mxu0 0.0
    %1318 = vmatprep.mubr.f32.mxu0 0.0
    %1319 = vmatmul.mubr.f32.gmra.mrb[0].mxu0 %v1252
    %v1320 = vpop.f32.mrb[0].mxu0
    %v1321 = vadd.f32 %v499, %v1320
    %v1322 = vpop.f32.mrb[0].mxu0
    %1323 = vdwg.mxu0
    %v1326 = vunpack.c.l.s4 1983009808
    %v1327 = vunpack.c.0.s8 %v1326
    %v1328 = vlaneseq
    %v1329 = vshrl.u32 %v1328, 7
    %v1330 = vsub.s32 %v1327, %v1329
    %v1331 = vrot.slane %v1321, %v1330
    %v1332 = vrot.slane %v1331, 7
    %v1335 = vadd.f32 %v479, %v1332
    %v1336 = vadd.f32 %v489, %v1331
    %v1337 = vxor.u32 %v1335, 2147483648
    %v1338 = vxor.u32 %v1336, 2147483648
    %v1339 = vmul.f32 %v1337, 1.442695
    %v1340 = vpow.pop %v1339
    %v1341 = vmul.f32 %v1338, 1.442695
    %v1342 = vpow.pop %v1341
    %v1343 = vadd.f32 %v1340, 1.0
    %v1344 = vadd.f32 %v1342, 1.0
    %v1345 = vrcp.pop %v1343
    %v1346 = vmul.f32 1.0, %v1345
    %v1347 = vrcp.pop %v1344
    %v1348 = vmul.f32 1.0, %v1347
    %1349 = vrot.lane.b32.xlu0 %v1332, 96
    %v1350 = vpop.permute.xlu0 %1349
    %1351 = vrot.lane.b32.xlu0 %v1331, 96
    %v1352 = vpop.permute.xlu0 %1351
    %v1355 = vmul.f32 %v1346, %v1350
    %v1356 = vmul.f32 %v1348, %v1352
    %1359 = vrot.lane.b32.xlu0 %v1355, 32
    %v1360 = vpop.permute.xlu0 %1359
    %1361 = vrot.lane.b32.xlu0 %v1356, 32
    %v1362 = vpop.permute.xlu0 %1361
    %v1365 = vadd.f32 %v479, %v1360
    %v1366 = vadd.f32 %v489, %v1362
    %v1367 = vtanh.pop %v1365
    %v1368 = vtanh.pop %v1366
    %v1369 = vsub.f32 1.0, %v1346
    %v1370 = vsub.f32 1.0, %v1348
    %1373 = vrot.lane.b32.xlu0 %v1367, 112
    %v1374 = vpop.permute.xlu0 %1373
    %1375 = vrot.lane.b32.xlu0 %v1368, 112
    %v1376 = vpop.permute.xlu0 %1375
    %v1379 = vmul.f32 %v1369, %v1374
    %v1380 = vmul.f32 %v1370, %v1376
    %v1381 = vrot.slane %v1237, 7
    %v1382 = vrot.slane %v1238, 7
    %v1385 = vmul.f32 %v1346, %v1381
    %v1386 = vmul.f32 %v1348, %v1382
    %v1387 = vadd.f32 %v1379, %v1385
    %v1388 = vadd.f32 %v1380, %v1386
    %v1397 = vlaneseq
    %v1398 = vshrl.u32 %v1397, 7
    %v1399 = vsub.s32 1, %v1398
    %v1400 = vrot.slane %v1387, %v1399
    %v1401 = vlaneseq
    %v1402 = vshrl.u32 %v1401, 7
    %v1403 = vsub.s32 1, %v1402
    %v1404 = vrot.slane %v1388, %v1403
    %vm1407 = vcmask 1040384
    %v1408 = vsel %vm1407, %v633, %v783
    %v1409 = vsel %vm1407, %v634, %v784
    %vm1410 = vcmask 1041408
    %v1411 = vsel %vm1410, %v1408, %v942
    %v1412 = vsel %vm1410, %v1409, %v946
    %vm1413 = vcmask 1042432
    %v1414 = vsel %vm1413, %v1411, %v1092
    %v1415 = vsel %vm1413, %v1412, %v1096
    %v1416 = vsel %vm64, %v1414, %v1244
    %v1417 = vsel %vm64, %v1415, %v1248
    %vm1418 = vcmask 1044480
    %v1419 = vsel %vm1418, %v1416, %v1400
    %v1420 = vsel %vm1418, %v1417, %v1404
    %v1421 = vld [vmem:[#allocation2 + $0xd0] sm:$0x7]
    %v1422 = vlaneseq
    %v1423 = vshrl.u32 %v1422, 7
    %v1424 = vsub.s32 0, %v1423
    %v1425 = vrot.slane %v1421, %v1424
    %v1426 = vmul.f32 %v31, %v1425
    %v1427 = vmul.f32 %v32, %v1425
    %v1428 = vlaneseq
    %v1429 = vshrl.u32 %v1428, 7
    %v1430 = vsub.s32 1, %v1429
    %v1431 = vrot.slane %v1421, %v1430
    %v1432 = vmul.f32 %v31, %v1431
    %v1433 = vmul.f32 %v32, %v1431
    %v1434 = vlaneseq
    %v1435 = vshrl.u32 %v1434, 7
    %v1436 = vsub.s32 2, %v1435
    %v1437 = vrot.slane %v1421, %v1436
    %v1438 = vmul.f32 %v31, %v1437
    %v1439 = vmul.f32 %v32, %v1437
    %v1442 = vrot.slane %v1432, 1
    %v1443 = vrot.slane %v1433, 1
    %1444 = vrot.lane.b32.xlu0 %v1442, 12
    %v1445 = vpop.permute.xlu0 %1444
    %1446 = vrot.lane.b32.xlu0 %v1443, 12
    %v1447 = vpop.permute.xlu0 %1446
    %v1452 = vrot.slane %v1438, 2
    %v1453 = vrot.slane %v1439, 2
    %1454 = vrot.lane.b32.xlu0 %v1452, 24
    %v1455 = vpop.permute.xlu0 %1454
    %1456 = vrot.lane.b32.xlu0 %v1453, 24
    %v1457 = vpop.permute.xlu0 %1456
    %v1460 = vsel %vm33, %v1426, %v1445
    %v1461 = vsel %vm33, %v1427, %v1447
    %v1462 = vsel %vm288, %v1460, %v1455
    %v1463 = vsel %vm288, %v1461, %v1457
    %v1466 = vcombine.high %v1462, %v1462
    %v1468 = vunpack.c.l.s4 1966171168
    %v1469 = vunpack.c.0.s8 %v1468
    %v1470 = vlaneseq
    %v1471 = vshrl.u32 %v1470, 7
    %v1472 = vsub.s32 %v1469, %v1471
    %v1473 = vrot.slane %v1462, %v1472
    %v1475 = vunpack.c.l.s4 1966171168
    %v1476 = vunpack.c.0.s8 %v1475
    %v1477 = vlaneseq
    %v1478 = vshrl.u32 %v1477, 7
    %v1479 = vsub.s32 %v1476, %v1478
    %v1480 = vrot.slane %v1466, %v1479
    %v1481 = vcombine.high %v1473, %v1473
    %v1483 = vunpack.c.l.s4 1966171168
    %v1484 = vunpack.c.0.s8 %v1483
    %v1485 = vlaneseq
    %v1486 = vshrl.u32 %v1485, 7
    %v1487 = vsub.s32 %v1484, %v1486
    %v1488 = vrot.slane %v1473, %v1487
    %v1490 = vunpack.c.l.s4 1966171168
    %v1491 = vunpack.c.0.s8 %v1490
    %v1492 = vlaneseq
    %v1493 = vshrl.u32 %v1492, 7
    %v1494 = vsub.s32 %v1491, %v1493
    %v1495 = vrot.slane %v1480, %v1494
    %v1497 = vunpack.c.l.s4 1966171168
    %v1498 = vunpack.c.0.s8 %v1497
    %v1499 = vlaneseq
    %v1500 = vshrl.u32 %v1499, 7
    %v1501 = vsub.s32 %v1498, %v1500
    %v1502 = vrot.slane %v1481, %v1501
    %v1503 = vcombine.high %v1488, %v1488
    %v1504 = vcombine.high %v1502, %v1502
    %v1505 = vcombine.high %v1463, %v1463
    %v1507 = vunpack.c.l.s4 1966171168
    %v1508 = vunpack.c.0.s8 %v1507
    %v1509 = vlaneseq
    %v1510 = vshrl.u32 %v1509, 7
    %v1511 = vsub.s32 %v1508, %v1510
    %v1512 = vrot.slane %v1463, %v1511
    %v1514 = vunpack.c.l.s4 1966171168
    %v1515 = vunpack.c.0.s8 %v1514
    %v1516 = vlaneseq
    %v1517 = vshrl.u32 %v1516, 7
    %v1518 = vsub.s32 %v1515, %v1517
    %v1519 = vrot.slane %v1505, %v1518
    %v1520 = vcombine.high %v1512, %v1512
    %v1522 = vunpack.c.l.s4 1966171168
    %v1523 = vunpack.c.0.s8 %v1522
    %v1524 = vlaneseq
    %v1525 = vshrl.u32 %v1524, 7
    %v1526 = vsub.s32 %v1523, %v1525
    %v1527 = vrot.slane %v1512, %v1526
    %v1529 = vunpack.c.l.s4 1966171168
    %v1530 = vunpack.c.0.s8 %v1529
    %v1531 = vlaneseq
    %v1532 = vshrl.u32 %v1531, 7
    %v1533 = vsub.s32 %v1530, %v1532
    %v1534 = vrot.slane %v1519, %v1533
    %v1536 = vunpack.c.l.s4 1966171168
    %v1537 = vunpack.c.0.s8 %v1536
    %v1538 = vlaneseq
    %v1539 = vshrl.u32 %v1538, 7
    %v1540 = vsub.s32 %v1537, %v1539
    %v1541 = vrot.slane %v1520, %v1540
    %v1542 = vcombine.high %v1527, %v1527
    %v1543 = vcombine.high %v1541, %v1541
    %v1544 = vld [vmem:[#allocation2 + $0xd8] sm:$0xff]
    %v1545 = vld [vmem:[#allocation2 + $0xe0] sm:$0xff]
    %v1546 = vld [vmem:[#allocation2 + $0xe8] sm:$0xff]
    %v1547 = vld [vmem:[#allocation2 + $0xf0] sm:$0xff]
    %v1548 = vld [vmem:[#allocation2 + $0xf8] sm:$0xf]
    %v1549 = vld [vmem:[#allocation2 + $0x100] sm:$0x1]
    %v1550 = vlaneseq
    %v1551 = vshrl.u32 %v1550, 7
    %v1552 = vsub.s32 0, %v1551
    %v1553 = vrot.slane %v1549, %v1552
    %v1554 = vcombine.low %v1488, %v1502
    %v1555 = vcombine.low %v1503, %v1504
    %v1556 = vcombine.low %v1495, %v1527
    %v1557 = vcombine.low %v1541, %v1542
    %v1559 = vunpack.c.l.s4 1966171168
    %v1560 = vunpack.c.0.s8 %v1559
    %v1561 = vlaneseq
    %v1562 = vshrl.u32 %v1561, 7
    %v1563 = vsub.s32 %v1560, %v1562
    %v1564 = vrot.slane %v1554, %v1563
    %v1566 = vunpack.c.l.s4 1966171168
    %v1567 = vunpack.c.0.s8 %v1566
    %v1568 = vlaneseq
    %v1569 = vshrl.u32 %v1568, 7
    %v1570 = vsub.s32 %v1567, %v1569
    %v1571 = vrot.slane %v1555, %v1570
    %v1573 = vunpack.c.l.s4 1966171168
    %v1574 = vunpack.c.0.s8 %v1573
    %v1575 = vlaneseq
    %v1576 = vshrl.u32 %v1575, 7
    %v1577 = vsub.s32 %v1574, %v1576
    %v1578 = vrot.slane %v1556, %v1577
    %v1580 = vunpack.c.l.s4 1966171168
    %v1581 = vunpack.c.0.s8 %v1580
    %v1582 = vlaneseq
    %v1583 = vshrl.u32 %v1582, 7
    %v1584 = vsub.s32 %v1581, %v1583
    %v1585 = vrot.slane %v1557, %v1584
    %v1586 = vcombine.low %v1564, %v1571
    %v1587 = vcombine.low %v1578, %v1585
    %v1589 = vunpack.c.l.s4 1966171168
    %v1590 = vunpack.c.0.s8 %v1589
    %v1591 = vlaneseq
    %v1592 = vshrl.u32 %v1591, 7
    %v1593 = vsub.s32 %v1590, %v1592
    %v1594 = vrot.slane %v1586, %v1593
    %v1596 = vunpack.c.l.s4 1966171168
    %v1597 = vunpack.c.0.s8 %v1596
    %v1598 = vlaneseq
    %v1599 = vshrl.u32 %v1598, 7
    %v1600 = vsub.s32 %v1597, %v1599
    %v1601 = vrot.slane %v1587, %v1600
    %v1602 = vcombine.low %v1594, %v1601
    %v1603 = vcombine.low %v1543, %v1534
    %v1605 = vunpack.c.l.s4 1966171168
    %v1606 = vunpack.c.0.s8 %v1605
    %v1607 = vlaneseq
    %v1608 = vshrl.u32 %v1607, 7
    %v1609 = vsub.s32 %v1606, %v1608
    %v1610 = vrot.slane %v1603, %v1609
    %v1612 = vunpack.c.l.s4 1966171168
    %v1613 = vunpack.c.0.s8 %v1612
    %v1614 = vlaneseq
    %v1615 = vshrl.u32 %v1614, 7
    %v1616 = vsub.s32 %v1613, %v1615
    %v1617 = vrot.slane %v1610, %v1616
    %vm1618 = vcmask 293888
    %v1619 = vsel %vm1618, %v1602, 0
    %v1621 = vsel %vm1618, %v1617, 0
    %v1624 = vsel %vm64, %v1548, 0
    %1626 = vmatprep.subr.mxu0 0.0
    %1627 = vmatpush1.msra.mxu0 %v1544
    %1628 = vmatprep.subr.mxu0 0.0
    %1629 = vmatpush1.msra.mxu0 %v1545
    %1630 = vmatprep.subr.mxu0 0.0
    %1631 = vmatpush1.msra.mxu0 %v1546
    %1632 = vmatprep.subr.mxu0 0.0
    %1633 = vmatpush1.msra.mxu0 %v1547
    %1634 = vmatprep.subr.mxu0 0.0
    %1635 = vmatpush1.msra.mxu0 %v1624
    %1636 = vmatprep.subr.mxu0 0.0
    %1637 = vmatpush1.msra.mxu0 0.0
    %1638 = vmatprep.subr.mxu0 0.0
    %1639 = vmatpush1.msra.mxu0 0.0
    %1640 = vmatprep.subr.mxu0 0.0
    %1641 = vmatpush1.msra.mxu0 0.0
    %1642 = vmatprep.subr.mxu0 0.0
    %1643 = vmatpush1.msra.mxu0 0.0
    %1644 = vmatprep.subr.mxu0 0.0
    %1645 = vmatpush1.msra.mxu0 0.0
    %1646 = vmatprep.subr.mxu0 0.0
    %1647 = vmatpush1.msra.mxu0 0.0
    %1648 = vmatprep.subr.mxu0 0.0
    %1649 = vmatpush1.msra.mxu0 0.0
    %1650 = vmatprep.subr.mxu0 0.0
    %1651 = vmatpush1.msra.mxu0 0.0
    %1652 = vmatprep.subr.mxu0 0.0
    %1653 = vmatpush1.msra.mxu0 0.0
    %1654 = vmatprep.subr.mxu0 0.0
    %1655 = vmatpush1.msra.mxu0 0.0
    %1656 = vmatprep.subr.mxu0 0.0
    %1657 = vmatpush1.msra.mxu0 0.0
    %1658 = vmatprep.subr.mxu0 0.0
    %1659 = vmatpush1.msra.mxu0 0.0
    %1660 = vmatprep.subr.mxu0 0.0
    %1661 = vmatpush1.msra.mxu0 0.0
    %1662 = vmatprep.subr.mxu0 0.0
    %1663 = vmatpush1.msra.mxu0 0.0
    %1664 = vmatprep.subr.mxu0 0.0
    %1665 = vmatpush1.msra.mxu0 0.0
    %1666 = vmatprep.subr.mxu0 0.0
    %1667 = vmatpush1.msra.mxu0 0.0
    %1668 = vmatprep.subr.mxu0 0.0
    %1669 = vmatpush1.msra.mxu0 0.0
    %1670 = vmatprep.subr.mxu0 0.0
    %1671 = vmatpush1.msra.mxu0 0.0
    %1672 = vmatprep.subr.mxu0 0.0
    %1673 = vmatpush1.msra.mxu0 0.0
    %1674 = vmatprep.subr.mxu0 0.0
    %1675 = vmatpush1.msra.mxu0 0.0
    %1676 = vmatprep.subr.mxu0 0.0
    %1677 = vmatpush1.msra.mxu0 0.0
    %1678 = vmatprep.subr.mxu0 0.0
    %1679 = vmatpush1.msra.mxu0 0.0
    %1680 = vmatprep.subr.mxu0 0.0
    %1681 = vmatpush1.msra.mxu0 0.0
    %1682 = vmatprep.subr.mxu0 0.0
    %1683 = vmatpush1.msra.mxu0 0.0
    %1684 = vmatprep.subr.mxu0 0.0
    %1685 = vmatpush1.msra.mxu0 0.0
    %1686 = vmatprep.subr.mxu0 0.0
    %1687 = vmatpush1.msra.mxu0 0.0
    %1688 = vmatprep.subr.mxu0 0.0
    %1689 = vmatpush1.msra.mxu0 0.0
    %1690 = vmatprep.mubr.f32.mxu0 0.0
    %1691 = vmatmul.mubr.f32.gmra.mrb[0].mxu0 %v1619
    %v1692 = vpop.f32.mrb[0].mxu0
    %v1693 = vadd.f32 %v1553, %v1692
    %v1694 = vpop.f32.mrb[0].mxu0
    %1695 = vmatprep.mubr.f32.mxu0 0.0
    %1696 = vmatmul.mubr.f32.gmra.mrb[0].mxu0 %v1621
    %v1697 = vpop.f32.mrb[0].mxu0
    %v1698 = vadd.f32 %v1553, %v1697
    %v1699 = vpop.f32.mrb[0].mxu0
    %1700 = vdwg.mxu0
    %v1701 = vmax.f32 %v1693, 0.0
    %v1702 = vmax.f32 %v1698, 0.0
    %v1703 = vld [vmem:[#allocation2 + $0xa0] sm:$0xff]
    %v1704 = vld [vmem:[#allocation2 + $0xa8] sm:$0xf]
    %v1705 = vld [vmem:[#allocation2 + $0xb0] sm:$0xff]
    %v1706 = vld [vmem:[#allocation2 + $0xb8] sm:$0xff]
    %v1707 = vld [vmem:[#allocation2 + $0xc0] sm:$0x1]
    %v1708 = vld [vmem:[#allocation2 + $0xc8] sm:$0x1]
    %v1709 = vlaneseq
    %v1710 = vshrl.u32 %v1709, 7
    %v1711 = vsub.s32 0, %v1710
    %v1712 = vrot.slane %v1707, %v1711
    %v1714 = vsel %vm33, %v31, 0
    %v1717 = vsel %vm33, %v32, 0
    %v1720 = vsel %vm64, %v1704, 0
    %1722 = vmatprep.subr.mxu0 0.0
    %1723 = vmatpush1.msra.mxu0 %v1703
    %1724 = vmatprep.subr.mxu0 0.0
    %1725 = vmatpush1.msra.mxu0 %v1720
    %1726 = vmatprep.subr.mxu0 0.0
    %1727 = vmatpush1.msra.mxu0 0.0
    %1728 = vmatprep.subr.mxu0 0.0
    %1729 = vmatpush1.msra.mxu0 0.0
    %1730 = vmatprep.subr.mxu0 0.0
    %1731 = vmatpush1.msra.mxu0 0.0
    %1732 = vmatprep.subr.mxu0 0.0
    %1733 = vmatpush1.msra.mxu0 0.0
    %1734 = vmatprep.subr.mxu0 0.0
    %1735 = vmatpush1.msra.mxu0 0.0
    %1736 = vmatprep.subr.mxu0 0.0
    %1737 = vmatpush1.msra.mxu0 0.0
    %1738 = vmatprep.subr.mxu0 0.0
    %1739 = vmatpush1.msra.mxu0 0.0
    %1740 = vmatprep.subr.mxu0 0.0
    %1741 = vmatpush1.msra.mxu0 0.0
    %1742 = vmatprep.subr.mxu0 0.0
    %1743 = vmatpush1.msra.mxu0 0.0
    %1744 = vmatprep.subr.mxu0 0.0
    %1745 = vmatpush1.msra.mxu0 0.0
    %1746 = vmatprep.subr.mxu0 0.0
    %1747 = vmatpush1.msra.mxu0 0.0
    %1748 = vmatprep.subr.mxu0 0.0
    %1749 = vmatpush1.msra.mxu0 0.0
    %1750 = vmatprep.subr.mxu0 0.0
    %1751 = vmatpush1.msra.mxu0 0.0
    %1752 = vmatprep.subr.mxu0 0.0
    %1753 = vmatpush1.msra.mxu0 0.0
    %1754 = vmatprep.subr.mxu0 0.0
    %1755 = vmatpush1.msra.mxu0 0.0
    %1756 = vmatprep.subr.mxu0 0.0
    %1757 = vmatpush1.msra.mxu0 0.0
    %1758 = vmatprep.subr.mxu0 0.0
    %1759 = vmatpush1.msra.mxu0 0.0
    %1760 = vmatprep.subr.mxu0 0.0
    %1761 = vmatpush1.msra.mxu0 0.0
    %1762 = vmatprep.subr.mxu0 0.0
    %1763 = vmatpush1.msra.mxu0 0.0
    %1764 = vmatprep.subr.mxu0 0.0
    %1765 = vmatpush1.msra.mxu0 0.0
    %1766 = vmatprep.subr.mxu0 0.0
    %1767 = vmatpush1.msra.mxu0 0.0
    %1768 = vmatprep.subr.mxu0 0.0
    %1769 = vmatpush1.msra.mxu0 0.0
    %1770 = vmatprep.subr.mxu0 0.0
    %1771 = vmatpush1.msra.mxu0 0.0
    %1772 = vmatprep.subr.mxu0 0.0
    %1773 = vmatpush1.msra.mxu0 0.0
    %1774 = vmatprep.subr.mxu0 0.0
    %1775 = vmatpush1.msra.mxu0 0.0
    %1776 = vmatprep.subr.mxu0 0.0
    %1777 = vmatpush1.msra.mxu0 0.0
    %1778 = vmatprep.subr.mxu0 0.0
    %1779 = vmatpush1.msra.mxu0 0.0
    %1780 = vmatprep.subr.mxu0 0.0
    %1781 = vmatpush1.msra.mxu0 0.0
    %1782 = vmatprep.subr.mxu0 0.0
    %1783 = vmatpush1.msra.mxu0 0.0
    %1784 = vmatprep.subr.mxu0 0.0
    %1785 = vmatpush1.msra.mxu0 0.0
    %1786 = vmatprep.mubr.f32.mxu0 0.0
    %1787 = vmatmul.mubr.f32.gmra.mrb[0].mxu0 %v1714
    %v1788 = vpop.f32.mrb[0].mxu0
    %v1789 = vadd.f32 %v1712, %v1788
    %v1790 = vpop.f32.mrb[0].mxu0
    %1791 = vmatprep.mubr.f32.mxu0 0.0
    %1792 = vmatmul.mubr.f32.gmra.mrb[0].mxu0 %v1717
    %v1793 = vpop.f32.mrb[0].mxu0
    %v1794 = vadd.f32 %v1712, %v1793
    %v1795 = vpop.f32.mrb[0].mxu0
    %1796 = vdwg.mxu0
    %v1797 = vlaneseq
    %v1798 = vshrl.u32 %v1797, 7
    %v1799 = vsub.s32 0, %v1798
    %v1800 = vrot.slane %v1708, %v1799
    %1801 = vmatprep.subr.mxu0 0.0
    %1802 = vmatpush1.msra.mxu0 %v1705
    %1803 = vmatprep.subr.mxu0 0.0
    %1804 = vmatpush1.msra.mxu0 %v1706
    %1805 = vmatprep.subr.mxu0 0.0
    %1806 = vmatpush1.msra.mxu0 0.0
    %1807 = vmatprep.subr.mxu0 0.0
    %1808 = vmatpush1.msra.mxu0 0.0
    %1809 = vmatprep.subr.mxu0 0.0
    %1810 = vmatpush1.msra.mxu0 0.0
    %1811 = vmatprep.subr.mxu0 0.0
    %1812 = vmatpush1.msra.mxu0 0.0
    %1813 = vmatprep.subr.mxu0 0.0
    %1814 = vmatpush1.msra.mxu0 0.0
    %1815 = vmatprep.subr.mxu0 0.0
    %1816 = vmatpush1.msra.mxu0 0.0
    %1817 = vmatprep.subr.mxu0 0.0
    %1818 = vmatpush1.msra.mxu0 0.0
    %1819 = vmatprep.subr.mxu0 0.0
    %1820 = vmatpush1.msra.mxu0 0.0
    %1821 = vmatprep.subr.mxu0 0.0
    %1822 = vmatpush1.msra.mxu0 0.0
    %1823 = vmatprep.subr.mxu0 0.0
    %1824 = vmatpush1.msra.mxu0 0.0
    %1825 = vmatprep.subr.mxu0 0.0
    %1826 = vmatpush1.msra.mxu0 0.0
    %1827 = vmatprep.subr.mxu0 0.0
    %1828 = vmatpush1.msra.mxu0 0.0
    %1829 = vmatprep.subr.mxu0 0.0
    %1830 = vmatpush1.msra.mxu0 0.0
    %1831 = vmatprep.subr.mxu0 0.0
    %1832 = vmatpush1.msra.mxu0 0.0
    %1833 = vmatprep.subr.mxu0 0.0
    %1834 = vmatpush1.msra.mxu0 0.0
    %1835 = vmatprep.subr.mxu0 0.0
    %1836 = vmatpush1.msra.mxu0 0.0
    %1837 = vmatprep.subr.mxu0 0.0
    %1838 = vmatpush1.msra.mxu0 0.0
    %1839 = vmatprep.subr.mxu0 0.0
    %1840 = vmatpush1.msra.mxu0 0.0
    %1841 = vmatprep.subr.mxu0 0.0
    %1842 = vmatpush1.msra.mxu0 0.0
    %1843 = vmatprep.subr.mxu0 0.0
    %1844 = vmatpush1.msra.mxu0 0.0
    %1845 = vmatprep.subr.mxu0 0.0
    %1846 = vmatpush1.msra.mxu0 0.0
    %1847 = vmatprep.subr.mxu0 0.0
    %1848 = vmatpush1.msra.mxu0 0.0
    %1849 = vmatprep.subr.mxu0 0.0
    %1850 = vmatpush1.msra.mxu0 0.0
    %1851 = vmatprep.subr.mxu0 0.0
    %1852 = vmatpush1.msra.mxu0 0.0
    %1853 = vmatprep.subr.mxu0 0.0
    %1854 = vmatpush1.msra.mxu0 0.0
    %1855 = vmatprep.subr.mxu0 0.0
    %1856 = vmatpush1.msra.mxu0 0.0
    %1857 = vmatprep.subr.mxu0 0.0
    %1858 = vmatpush1.msra.mxu0 0.0
    %1859 = vmatprep.subr.mxu0 0.0
    %1860 = vmatpush1.msra.mxu0 0.0
    %1861 = vmatprep.subr.mxu0 0.0
    %1862 = vmatpush1.msra.mxu0 0.0
    %1863 = vmatprep.subr.mxu0 0.0
    %1864 = vmatpush1.msra.mxu0 0.0
    %1865 = vmatprep.mubr.f32.mxu0 0.0
    %1866 = vmatmul.mubr.f32.gmra.mrb[0].mxu0 %v502
    %v1867 = vpop.f32.mrb[0].mxu0
    %v1868 = vadd.f32 %v1800, %v1867
    %v1869 = vpop.f32.mrb[0].mxu0
    %1870 = vdwg.mxu0
    %v1872 = vrot.slane %v1868, 1
    %v1875 = vadd.f32 %v1789, %v1868
    %v1876 = vadd.f32 %v1794, %v1872
    %v1877 = vxor.u32 %v1875, 2147483648
    %v1878 = vxor.u32 %v1876, 2147483648
    %v1879 = vmul.f32 %v1877, 1.442695
    %v1880 = vpow.pop %v1879
    %v1881 = vmul.f32 %v1878, 1.442695
    %v1882 = vpow.pop %v1881
    %v1883 = vadd.f32 %v1880, 1.0
    %v1884 = vadd.f32 %v1882, 1.0
    %v1885 = vrcp.pop %v1883
    %v1886 = vmul.f32 1.0, %v1885
    %v1887 = vrcp.pop %v1884
    %v1888 = vmul.f32 1.0, %v1887
    %1889 = vrot.lane.b32.xlu0 %v1868, 96
    %v1890 = vpop.permute.xlu0 %1889
    %1891 = vrot.lane.b32.xlu0 %v1872, 96
    %v1892 = vpop.permute.xlu0 %1891
    %v1895 = vmul.f32 %v1886, %v1890
    %v1896 = vmul.f32 %v1888, %v1892
    %1899 = vrot.lane.b32.xlu0 %v1895, 32
    %v1900 = vpop.permute.xlu0 %1899
    %1901 = vrot.lane.b32.xlu0 %v1896, 32
    %v1902 = vpop.permute.xlu0 %1901
    %v1905 = vadd.f32 %v1789, %v1900
    %v1906 = vadd.f32 %v1794, %v1902
    %v1907 = vtanh.pop %v1905
    %v1908 = vtanh.pop %v1906
    %v1909 = vsub.f32 1.0, %v1886
    %v1910 = vsub.f32 1.0, %v1888
    %1913 = vrot.lane.b32.xlu0 %v1907, 112
    %v1914 = vpop.permute.xlu0 %1913
    %1915 = vrot.lane.b32.xlu0 %v1908, 112
    %v1916 = vpop.permute.xlu0 %1915
    %v1919 = vmul.f32 %v1909, %v1914
    %v1920 = vmul.f32 %v1910, %v1916
    %v1921 = vmul.f32 %v1886, 0.0
    %v1922 = vmul.f32 %v1888, 0.0
    %v1923 = vadd.f32 %v1919, %v1921
    %v1924 = vadd.f32 %v1920, %v1922
    %v1925 = vadd.f32 %v1923, 0.0
    %v1926 = vadd.f32 %v1924, 0.0
    %v1929 = vrot.slane %v1924, 7
    %v1930 = vsel %vm60, %v1929, %v1923
    %1931 = vrot.lane.b32.xlu0 %v1930, 112
    %v1932 = vpop.permute.xlu0 %1931
    %v1933 = vsel %vm500, %v1932, 0
    %1935 = vmatprep.subr.mxu0 0.0
    %1936 = vmatpush1.msra.mxu0 %v1705
    %1937 = vmatprep.subr.mxu0 0.0
    %1938 = vmatpush1.msra.mxu0 %v1706
    %1939 = vmatprep.subr.mxu0 0.0
    %1940 = vmatpush1.msra.mxu0 0.0
    %1941 = vmatprep.subr.mxu0 0.0
    %1942 = vmatpush1.msra.mxu0 0.0
    %1943 = vmatprep.subr.mxu0 0.0
    %1944 = vmatpush1.msra.mxu0 0.0
    %1945 = vmatprep.subr.mxu0 0.0
    %1946 = vmatpush1.msra.mxu0 0.0
    %1947 = vmatprep.subr.mxu0 0.0
    %1948 = vmatpush1.msra.mxu0 0.0
    %1949 = vmatprep.subr.mxu0 0.0
    %1950 = vmatpush1.msra.mxu0 0.0
    %1951 = vmatprep.subr.mxu0 0.0
    %1952 = vmatpush1.msra.mxu0 0.0
    %1953 = vmatprep.subr.mxu0 0.0
    %1954 = vmatpush1.msra.mxu0 0.0
    %1955 = vmatprep.subr.mxu0 0.0
    %1956 = vmatpush1.msra.mxu0 0.0
    %1957 = vmatprep.subr.mxu0 0.0
    %1958 = vmatpush1.msra.mxu0 0.0
    %1959 = vmatprep.subr.mxu0 0.0
    %1960 = vmatpush1.msra.mxu0 0.0
    %1961 = vmatprep.subr.mxu0 0.0
    %1962 = vmatpush1.msra.mxu0 0.0
    %1963 = vmatprep.subr.mxu0 0.0
    %1964 = vmatpush1.msra.mxu0 0.0
    %1965 = vmatprep.subr.mxu0 0.0
    %1966 = vmatpush1.msra.mxu0 0.0
    %1967 = vmatprep.subr.mxu0 0.0
    %1968 = vmatpush1.msra.mxu0 0.0
    %1969 = vmatprep.subr.mxu0 0.0
    %1970 = vmatpush1.msra.mxu0 0.0
    %1971 = vmatprep.subr.mxu0 0.0
    %1972 = vmatpush1.msra.mxu0 0.0
    %1973 = vmatprep.subr.mxu0 0.0
    %1974 = vmatpush1.msra.mxu0 0.0
    %1975 = vmatprep.subr.mxu0 0.0
    %1976 = vmatpush1.msra.mxu0 0.0
    %1977 = vmatprep.subr.mxu0 0.0
    %1978 = vmatpush1.msra.mxu0 0.0
    %1979 = vmatprep.subr.mxu0 0.0
    %1980 = vmatpush1.msra.mxu0 0.0
    %1981 = vmatprep.subr.mxu0 0.0
    %1982 = vmatpush1.msra.mxu0 0.0
    %1983 = vmatprep.subr.mxu0 0.0
    %1984 = vmatpush1.msra.mxu0 0.0
    %1985 = vmatprep.subr.mxu0 0.0
    %1986 = vmatpush1.msra.mxu0 0.0
    %1987 = vmatprep.subr.mxu0 0.0
    %1988 = vmatpush1.msra.mxu0 0.0
    %1989 = vmatprep.subr.mxu0 0.0
    %1990 = vmatpush1.msra.mxu0 0.0
    %1991 = vmatprep.subr.mxu0 0.0
    %1992 = vmatpush1.msra.mxu0 0.0
    %1993 = vmatprep.subr.mxu0 0.0
    %1994 = vmatpush1.msra.mxu0 0.0
    %1995 = vmatprep.subr.mxu0 0.0
    %1996 = vmatpush1.msra.mxu0 0.0
    %1997 = vmatprep.subr.mxu0 0.0
    %1998 = vmatpush1.msra.mxu0 0.0
    %1999 = vmatprep.mubr.f32.mxu0 0.0
    %2000 = vmatmul.mubr.f32.gmra.mrb[0].mxu0 %v1933
    %v2001 = vpop.f32.mrb[0].mxu0
    %v2002 = vadd.f32 %v1800, %v2001
    %v2003 = vpop.f32.mrb[0].mxu0
    %2004 = vdwg.mxu0
    %v2006 = vrot.slane %v2002, 7
    %v2009 = vadd.f32 %v1789, %v2006
    %v2010 = vadd.f32 %v1794, %v2002
    %v2011 = vxor.u32 %v2009, 2147483648
    %v2012 = vxor.u32 %v2010, 2147483648
    %v2013 = vmul.f32 %v2011, 1.442695
    %v2014 = vpow.pop %v2013
    %v2015 = vmul.f32 %v2012, 1.442695
    %v2016 = vpow.pop %v2015
    %v2017 = vadd.f32 %v2014, 1.0
    %v2018 = vadd.f32 %v2016, 1.0
    %v2019 = vrcp.pop %v2017
    %v2020 = vmul.f32 1.0, %v2019
    %v2021 = vrcp.pop %v2018
    %v2022 = vmul.f32 1.0, %v2021
    %2023 = vrot.lane.b32.xlu0 %v2006, 96
    %v2024 = vpop.permute.xlu0 %2023
    %2025 = vrot.lane.b32.xlu0 %v2002, 96
    %v2026 = vpop.permute.xlu0 %2025
    %v2029 = vmul.f32 %v2020, %v2024
    %v2030 = vmul.f32 %v2022, %v2026
    %2033 = vrot.lane.b32.xlu0 %v2029, 32
    %v2034 = vpop.permute.xlu0 %2033
    %2035 = vrot.lane.b32.xlu0 %v2030, 32
    %v2036 = vpop.permute.xlu0 %2035
    %v2039 = vadd.f32 %v1789, %v2034
    %v2040 = vadd.f32 %v1794, %v2036
    %v2041 = vtanh.pop %v2039
    %v2042 = vtanh.pop %v2040
    %v2043 = vsub.f32 1.0, %v2020
    %v2044 = vsub.f32 1.0, %v2022
    %2047 = vrot.lane.b32.xlu0 %v2041, 112
    %v2048 = vpop.permute.xlu0 %2047
    %2049 = vrot.lane.b32.xlu0 %v2042, 112
    %v2050 = vpop.permute.xlu0 %2049
    %v2053 = vmul.f32 %v2043, %v2048
    %v2054 = vmul.f32 %v2044, %v2050
    %v2055 = vrot.slane %v1923, 7
    %v2058 = vmul.f32 %v2020, %v2055
    %v2059 = vmul.f32 %v2022, %v1929
    %v2060 = vadd.f32 %v2053, %v2058
    %v2061 = vadd.f32 %v2054, %v2059
    %v2064 = vrot.slane %v2060, 1
    %v2065 = vrot.slane %v2061, 1
    %v2068 = vadd.f32 %v1925, %v2064
    %v2069 = vadd.f32 %v1926, %v2065
    %v2070 = vsel %vm60, %v2061, %v2064
    %2071 = vrot.lane.b32.xlu0 %v2070, 112
    %v2072 = vpop.permute.xlu0 %2071
    %v2073 = vsel %vm500, %v2072, 0
    %2075 = vmatprep.subr.mxu0 0.0
    %2076 = vmatpush1.msra.mxu0 %v1705
    %2077 = vmatprep.subr.mxu0 0.0
    %2078 = vmatpush1.msra.mxu0 %v1706
    %2079 = vmatprep.subr.mxu0 0.0
    %2080 = vmatpush1.msra.mxu0 0.0
    %2081 = vmatprep.subr.mxu0 0.0
    %2082 = vmatpush1.msra.mxu0 0.0
    %2083 = vmatprep.subr.mxu0 0.0
    %2084 = vmatpush1.msra.mxu0 0.0
    %2085 = vmatprep.subr.mxu0 0.0
    %2086 = vmatpush1.msra.mxu0 0.0
    %2087 = vmatprep.subr.mxu0 0.0
    %2088 = vmatpush1.msra.mxu0 0.0
    %2089 = vmatprep.subr.mxu0 0.0
    %2090 = vmatpush1.msra.mxu0 0.0
    %2091 = vmatprep.subr.mxu0 0.0
    %2092 = vmatpush1.msra.mxu0 0.0
    %2093 = vmatprep.subr.mxu0 0.0
    %2094 = vmatpush1.msra.mxu0 0.0
    %2095 = vmatprep.subr.mxu0 0.0
    %2096 = vmatpush1.msra.mxu0 0.0
    %2097 = vmatprep.subr.mxu0 0.0
    %2098 = vmatpush1.msra.mxu0 0.0
    %2099 = vmatprep.subr.mxu0 0.0
    %2100 = vmatpush1.msra.mxu0 0.0
    %2101 = vmatprep.subr.mxu0 0.0
    %2102 = vmatpush1.msra.mxu0 0.0
    %2103 = vmatprep.subr.mxu0 0.0
    %2104 = vmatpush1.msra.mxu0 0.0
    %2105 = vmatprep.subr.mxu0 0.0
    %2106 = vmatpush1.msra.mxu0 0.0
    %2107 = vmatprep.subr.mxu0 0.0
    %2108 = vmatpush1.msra.mxu0 0.0
    %2109 = vmatprep.subr.mxu0 0.0
    %2110 = vmatpush1.msra.mxu0 0.0
    %2111 = vmatprep.subr.mxu0 0.0
    %2112 = vmatpush1.msra.mxu0 0.0
    %2113 = vmatprep.subr.mxu0 0.0
    %2114 = vmatpush1.msra.mxu0 0.0
    %2115 = vmatprep.subr.mxu0 0.0
    %2116 = vmatpush1.msra.mxu0 0.0
    %2117 = vmatprep.subr.mxu0 0.0
    %2118 = vmatpush1.msra.mxu0 0.0
    %2119 = vmatprep.subr.mxu0 0.0
    %2120 = vmatpush1.msra.mxu0 0.0
    %2121 = vmatprep.subr.mxu0 0.0
    %2122 = vmatpush1.msra.mxu0 0.0
    %2123 = vmatprep.subr.mxu0 0.0
    %2124 = vmatpush1.msra.mxu0 0.0
    %2125 = vmatprep.subr.mxu0 0.0
    %2126 = vmatpush1.msra.mxu0 0.0
    %2127 = vmatprep.subr.mxu0 0.0
    %2128 = vmatpush1.msra.mxu0 0.0
    %2129 = vmatprep.subr.mxu0 0.0
    %2130 = vmatpush1.msra.mxu0 0.0
    %2131 = vmatprep.subr.mxu0 0.0
    %2132 = vmatpush1.msra.mxu0 0.0
    %2133 = vmatprep.subr.mxu0 0.0
    %2134 = vmatpush1.msra.mxu0 0.0
    %2135 = vmatprep.subr.mxu0 0.0
    %2136 = vmatpush1.msra.mxu0 0.0
    %2137 = vmatprep.subr.mxu0 0.0
    %2138 = vmatpush1.msra.mxu0 0.0
    %2139 = vmatprep.mubr.f32.mxu0 0.0
    %2140 = vmatmul.mubr.f32.gmra.mrb[0].mxu0 %v2073
    %v2141 = vpop.f32.mrb[0].mxu0
    %v2142 = vadd.f32 %v1800, %v2141
    %v2143 = vpop.f32.mrb[0].mxu0
    %2144 = vdwg.mxu0
    %v2146 = vrot.slane %v2142, 6
    %v2147 = vrot.slane %v2142, 7
    %v2150 = vadd.f32 %v1789, %v2146
    %v2151 = vadd.f32 %v1794, %v2147
    %v2152 = vxor.u32 %v2150, 2147483648
    %v2153 = vxor.u32 %v2151, 2147483648
    %v2154 = vmul.f32 %v2152, 1.442695
    %v2155 = vpow.pop %v2154
    %v2156 = vmul.f32 %v2153, 1.442695
    %v2157 = vpow.pop %v2156
    %v2158 = vadd.f32 %v2155, 1.0
    %v2159 = vadd.f32 %v2157, 1.0
    %v2160 = vrcp.pop %v2158
    %v2161 = vmul.f32 1.0, %v2160
    %v2162 = vrcp.pop %v2159
    %v2163 = vmul.f32 1.0, %v2162
    %2164 = vrot.lane.b32.xlu0 %v2146, 96
    %v2165 = vpop.permute.xlu0 %2164
    %2166 = vrot.lane.b32.xlu0 %v2147, 96
    %v2167 = vpop.permute.xlu0 %2166
    %v2170 = vmul.f32 %v2161, %v2165
    %v2171 = vmul.f32 %v2163, %v2167
    %2174 = vrot.lane.b32.xlu0 %v2170, 32
    %v2175 = vpop.permute.xlu0 %2174
    %2176 = vrot.lane.b32.xlu0 %v2171, 32
    %v2177 = vpop.permute.xlu0 %2176
    %v2180 = vadd.f32 %v1789, %v2175
    %v2181 = vadd.f32 %v1794, %v2177
    %v2182 = vtanh.pop %v2180
    %v2183 = vtanh.pop %v2181
    %v2184 = vsub.f32 1.0, %v2161
    %v2185 = vsub.f32 1.0, %v2163
    %2188 = vrot.lane.b32.xlu0 %v2182, 112
    %v2189 = vpop.permute.xlu0 %2188
    %2190 = vrot.lane.b32.xlu0 %v2183, 112
    %v2191 = vpop.permute.xlu0 %2190
    %v2194 = vmul.f32 %v2184, %v2189
    %v2195 = vmul.f32 %v2185, %v2191
    %v2196 = vrot.slane %v2060, 7
    %v2197 = vrot.slane %v2061, 7
    %v2200 = vmul.f32 %v2161, %v2196
    %v2201 = vmul.f32 %v2163, %v2197
    %v2202 = vadd.f32 %v2194, %v2200
    %v2203 = vadd.f32 %v2195, %v2201
    %v2206 = vrot.slane %v2202, 2
    %v2207 = vrot.slane %v2203, 2
    %v2210 = vadd.f32 %v2068, %v2206
    %v2211 = vadd.f32 %v2069, %v2207
    %v2212 = vrot.slane %v2203, 1
    %v2213 = vsel %vm60, %v2212, %v2206
    %2214 = vrot.lane.b32.xlu0 %v2213, 112
    %v2215 = vpop.permute.xlu0 %2214
    %v2216 = vsel %vm500, %v2215, 0
    %2218 = vmatprep.subr.mxu0 0.0
    %2219 = vmatpush1.msra.mxu0 %v1705
    %2220 = vmatprep.subr.mxu0 0.0
    %2221 = vmatpush1.msra.mxu0 %v1706
    %2222 = vmatprep.subr.mxu0 0.0
    %2223 = vmatpush1.msra.mxu0 0.0
    %2224 = vmatprep.subr.mxu0 0.0
    %2225 = vmatpush1.msra.mxu0 0.0
    %2226 = vmatprep.subr.mxu0 0.0
    %2227 = vmatpush1.msra.mxu0 0.0
    %2228 = vmatprep.subr.mxu0 0.0
    %2229 = vmatpush1.msra.mxu0 0.0
    %2230 = vmatprep.subr.mxu0 0.0
    %2231 = vmatpush1.msra.mxu0 0.0
    %2232 = vmatprep.subr.mxu0 0.0
    %2233 = vmatpush1.msra.mxu0 0.0
    %2234 = vmatprep.subr.mxu0 0.0
    %2235 = vmatpush1.msra.mxu0 0.0
    %2236 = vmatprep.subr.mxu0 0.0
    %2237 = vmatpush1.msra.mxu0 0.0
    %2238 = vmatprep.subr.mxu0 0.0
    %2239 = vmatpush1.msra.mxu0 0.0
    %2240 = vmatprep.subr.mxu0 0.0
    %2241 = vmatpush1.msra.mxu0 0.0
    %2242 = vmatprep.subr.mxu0 0.0
    %2243 = vmatpush1.msra.mxu0 0.0
    %2244 = vmatprep.subr.mxu0 0.0
    %2245 = vmatpush1.msra.mxu0 0.0
    %2246 = vmatprep.subr.mxu0 0.0
    %2247 = vmatpush1.msra.mxu0 0.0
    %2248 = vmatprep.subr.mxu0 0.0
    %2249 = vmatpush1.msra.mxu0 0.0
    %2250 = vmatprep.subr.mxu0 0.0
    %2251 = vmatpush1.msra.mxu0 0.0
    %2252 = vmatprep.subr.mxu0 0.0
    %2253 = vmatpush1.msra.mxu0 0.0
    %2254 = vmatprep.subr.mxu0 0.0
    %2255 = vmatpush1.msra.mxu0 0.0
    %2256 = vmatprep.subr.mxu0 0.0
    %2257 = vmatpush1.msra.mxu0 0.0
    %2258 = vmatprep.subr.mxu0 0.0
    %2259 = vmatpush1.msra.mxu0 0.0
    %2260 = vmatprep.subr.mxu0 0.0
    %2261 = vmatpush1.msra.mxu0 0.0
    %2262 = vmatprep.subr.mxu0 0.0
    %2263 = vmatpush1.msra.mxu0 0.0
    %2264 = vmatprep.subr.mxu0 0.0
    %2265 = vmatpush1.msra.mxu0 0.0
    %2266 = vmatprep.subr.mxu0 0.0
    %2267 = vmatpush1.msra.mxu0 0.0
    %2268 = vmatprep.subr.mxu0 0.0
    %2269 = vmatpush1.msra.mxu0 0.0
    %2270 = vmatprep.subr.mxu0 0.0
    %2271 = vmatpush1.msra.mxu0 0.0
    %2272 = vmatprep.subr.mxu0 0.0
    %2273 = vmatpush1.msra.mxu0 0.0
    %2274 = vmatprep.subr.mxu0 0.0
    %2275 = vmatpush1.msra.mxu0 0.0
    %2276 = vmatprep.subr.mxu0 0.0
    %2277 = vmatpush1.msra.mxu0 0.0
    %2278 = vmatprep.subr.mxu0 0.0
    %2279 = vmatpush1.msra.mxu0 0.0
    %2280 = vmatprep.subr.mxu0 0.0
    %2281 = vmatpush1.msra.mxu0 0.0
    %2282 = vmatprep.mubr.f32.mxu0 0.0
    %2283 = vmatmul.mubr.f32.gmra.mrb[0].mxu0 %v2216
    %v2284 = vpop.f32.mrb[0].mxu0
    %v2285 = vadd.f32 %v1800, %v2284
    %v2286 = vpop.f32.mrb[0].mxu0
    %2287 = vdwg.mxu0
    %v2289 = vrot.slane %v2285, 5
    %v2290 = vrot.slane %v2285, 6
    %v2293 = vadd.f32 %v1789, %v2289
    %v2294 = vadd.f32 %v1794, %v2290
    %v2295 = vxor.u32 %v2293, 2147483648
    %v2296 = vxor.u32 %v2294, 2147483648
    %v2297 = vmul.f32 %v2295, 1.442695
    %v2298 = vpow.pop %v2297
    %v2299 = vmul.f32 %v2296, 1.442695
    %v2300 = vpow.pop %v2299
    %v2301 = vadd.f32 %v2298, 1.0
    %v2302 = vadd.f32 %v2300, 1.0
    %v2303 = vrcp.pop %v2301
    %v2304 = vmul.f32 1.0, %v2303
    %v2305 = vrcp.pop %v2302
    %v2306 = vmul.f32 1.0, %v2305
    %2307 = vrot.lane.b32.xlu0 %v2289, 96
    %v2308 = vpop.permute.xlu0 %2307
    %2309 = vrot.lane.b32.xlu0 %v2290, 96
    %v2310 = vpop.permute.xlu0 %2309
    %v2313 = vmul.f32 %v2304, %v2308
    %v2314 = vmul.f32 %v2306, %v2310
    %2317 = vrot.lane.b32.xlu0 %v2313, 32
    %v2318 = vpop.permute.xlu0 %2317
    %2319 = vrot.lane.b32.xlu0 %v2314, 32
    %v2320 = vpop.permute.xlu0 %2319
    %v2323 = vadd.f32 %v1789, %v2318
    %v2324 = vadd.f32 %v1794, %v2320
    %v2325 = vtanh.pop %v2323
    %v2326 = vtanh.pop %v2324
    %v2327 = vsub.f32 1.0, %v2304
    %v2328 = vsub.f32 1.0, %v2306
    %2331 = vrot.lane.b32.xlu0 %v2325, 112
    %v2332 = vpop.permute.xlu0 %2331
    %2333 = vrot.lane.b32.xlu0 %v2326, 112
    %v2334 = vpop.permute.xlu0 %2333
    %v2337 = vmul.f32 %v2327, %v2332
    %v2338 = vmul.f32 %v2328, %v2334
    %v2339 = vrot.slane %v2202, 7
    %v2340 = vrot.slane %v2203, 7
    %v2343 = vmul.f32 %v2304, %v2339
    %v2344 = vmul.f32 %v2306, %v2340
    %v2345 = vadd.f32 %v2337, %v2343
    %v2346 = vadd.f32 %v2338, %v2344
    %v2349 = vrot.slane %v2345, 3
    %v2350 = vrot.slane %v2346, 3
    %v2353 = vadd.f32 %v2210, %v2349
    %v2354 = vadd.f32 %v2211, %v2350
    %v2355 = vrot.slane %v2346, 2
    %v2356 = vsel %vm60, %v2355, %v2349
    %2357 = vrot.lane.b32.xlu0 %v2356, 112
    %v2358 = vpop.permute.xlu0 %2357
    %v2359 = vsel %vm500, %v2358, 0
    %2361 = vmatprep.subr.mxu0 0.0
    %2362 = vmatpush1.msra.mxu0 %v1705
    %2363 = vmatprep.subr.mxu0 0.0
    %2364 = vmatpush1.msra.mxu0 %v1706
    %2365 = vmatprep.subr.mxu0 0.0
    %2366 = vmatpush1.msra.mxu0 0.0
    %2367 = vmatprep.subr.mxu0 0.0
    %2368 = vmatpush1.msra.mxu0 0.0
    %2369 = vmatprep.subr.mxu0 0.0
    %2370 = vmatpush1.msra.mxu0 0.0
    %2371 = vmatprep.subr.mxu0 0.0
    %2372 = vmatpush1.msra.mxu0 0.0
    %2373 = vmatprep.subr.mxu0 0.0
    %2374 = vmatpush1.msra.mxu0 0.0
    %2375 = vmatprep.subr.mxu0 0.0
    %2376 = vmatpush1.msra.mxu0 0.0
    %2377 = vmatprep.subr.mxu0 0.0
    %2378 = vmatpush1.msra.mxu0 0.0
    %2379 = vmatprep.subr.mxu0 0.0
    %2380 = vmatpush1.msra.mxu0 0.0
    %2381 = vmatprep.subr.mxu0 0.0
    %2382 = vmatpush1.msra.mxu0 0.0
    %2383 = vmatprep.subr.mxu0 0.0
    %2384 = vmatpush1.msra.mxu0 0.0
    %2385 = vmatprep.subr.mxu0 0.0
    %2386 = vmatpush1.msra.mxu0 0.0
    %2387 = vmatprep.subr.mxu0 0.0
    %2388 = vmatpush1.msra.mxu0 0.0
    %2389 = vmatprep.subr.mxu0 0.0
    %2390 = vmatpush1.msra.mxu0 0.0
    %2391 = vmatprep.subr.mxu0 0.0
    %2392 = vmatpush1.msra.mxu0 0.0
    %2393 = vmatprep.subr.mxu0 0.0
    %2394 = vmatpush1.msra.mxu0 0.0
    %2395 = vmatprep.subr.mxu0 0.0
    %2396 = vmatpush1.msra.mxu0 0.0
    %2397 = vmatprep.subr.mxu0 0.0
    %2398 = vmatpush1.msra.mxu0 0.0
    %2399 = vmatprep.subr.mxu0 0.0
    %2400 = vmatpush1.msra.mxu0 0.0
    %2401 = vmatprep.subr.mxu0 0.0
    %2402 = vmatpush1.msra.mxu0 0.0
    %2403 = vmatprep.subr.mxu0 0.0
    %2404 = vmatpush1.msra.mxu0 0.0
    %2405 = vmatprep.subr.mxu0 0.0
    %2406 = vmatpush1.msra.mxu0 0.0
    %2407 = vmatprep.subr.mxu0 0.0
    %2408 = vmatpush1.msra.mxu0 0.0
    %2409 = vmatprep.subr.mxu0 0.0
    %2410 = vmatpush1.msra.mxu0 0.0
    %2411 = vmatprep.subr.mxu0 0.0
    %2412 = vmatpush1.msra.mxu0 0.0
    %2413 = vmatprep.subr.mxu0 0.0
    %2414 = vmatpush1.msra.mxu0 0.0
    %2415 = vmatprep.subr.mxu0 0.0
    %2416 = vmatpush1.msra.mxu0 0.0
    %2417 = vmatprep.subr.mxu0 0.0
    %2418 = vmatpush1.msra.mxu0 0.0
    %2419 = vmatprep.subr.mxu0 0.0
    %2420 = vmatpush1.msra.mxu0 0.0
    %2421 = vmatprep.subr.mxu0 0.0
    %2422 = vmatpush1.msra.mxu0 0.0
    %2423 = vmatprep.subr.mxu0 0.0
    %2424 = vmatpush1.msra.mxu0 0.0
    %2425 = vmatprep.mubr.f32.mxu0 0.0
    %2426 = vmatmul.mubr.f32.gmra.mrb[0].mxu0 %v2359
    %v2427 = vpop.f32.mrb[0].mxu0
    %v2428 = vadd.f32 %v1800, %v2427
    %v2429 = vpop.f32.mrb[0].mxu0
    %2430 = vdwg.mxu0
    %v2432 = vrot.slane %v2428, 4
    %v2433 = vrot.slane %v2428, 5
    %v2436 = vadd.f32 %v1789, %v2432
    %v2437 = vadd.f32 %v1794, %v2433
    %v2438 = vxor.u32 %v2436, 2147483648
    %v2439 = vxor.u32 %v2437, 2147483648
    %v2440 = vmul.f32 %v2438, 1.442695
    %v2441 = vpow.pop %v2440
    %v2442 = vmul.f32 %v2439, 1.442695
    %v2443 = vpow.pop %v2442
    %v2444 = vadd.f32 %v2441, 1.0
    %v2445 = vadd.f32 %v2443, 1.0
    %v2446 = vrcp.pop %v2444
    %v2447 = vmul.f32 1.0, %v2446
    %v2448 = vrcp.pop %v2445
    %v2449 = vmul.f32 1.0, %v2448
    %2450 = vrot.lane.b32.xlu0 %v2432, 96
    %v2451 = vpop.permute.xlu0 %2450
    %2452 = vrot.lane.b32.xlu0 %v2433, 96
    %v2453 = vpop.permute.xlu0 %2452
    %v2456 = vmul.f32 %v2447, %v2451
    %v2457 = vmul.f32 %v2449, %v2453
    %2460 = vrot.lane.b32.xlu0 %v2456, 32
    %v2461 = vpop.permute.xlu0 %2460
    %2462 = vrot.lane.b32.xlu0 %v2457, 32
    %v2463 = vpop.permute.xlu0 %2462
    %v2466 = vadd.f32 %v1789, %v2461
    %v2467 = vadd.f32 %v1794, %v2463
    %v2468 = vtanh.pop %v2466
    %v2469 = vtanh.pop %v2467
    %v2470 = vsub.f32 1.0, %v2447
    %v2471 = vsub.f32 1.0, %v2449
    %2474 = vrot.lane.b32.xlu0 %v2468, 112
    %v2475 = vpop.permute.xlu0 %2474
    %2476 = vrot.lane.b32.xlu0 %v2469, 112
    %v2477 = vpop.permute.xlu0 %2476
    %v2480 = vmul.f32 %v2470, %v2475
    %v2481 = vmul.f32 %v2471, %v2477
    %v2482 = vrot.slane %v2345, 7
    %v2483 = vrot.slane %v2346, 7
    %v2486 = vmul.f32 %v2447, %v2482
    %v2487 = vmul.f32 %v2449, %v2483
    %v2488 = vadd.f32 %v2480, %v2486
    %v2489 = vadd.f32 %v2481, %v2487
    %v2492 = vrot.slane %v2488, 4
    %v2493 = vrot.slane %v2489, 4
    %v2496 = vadd.f32 %v2353, %v2492
    %v2497 = vadd.f32 %v2354, %v2493
    %v2498 = vrot.slane %v2489, 3
    %v2499 = vsel %vm60, %v2498, %v2492
    %2500 = vrot.lane.b32.xlu0 %v2499, 112
    %v2501 = vpop.permute.xlu0 %2500
    %v2502 = vsel %vm500, %v2501, 0
    %2504 = vmatprep.subr.mxu0 0.0
    %2505 = vmatpush1.msra.mxu0 %v1705
    %2506 = vmatprep.subr.mxu0 0.0
    %2507 = vmatpush1.msra.mxu0 %v1706
    %2508 = vmatprep.subr.mxu0 0.0
    %2509 = vmatpush1.msra.mxu0 0.0
    %2510 = vmatprep.subr.mxu0 0.0
    %2511 = vmatpush1.msra.mxu0 0.0
    %2512 = vmatprep.subr.mxu0 0.0
    %2513 = vmatpush1.msra.mxu0 0.0
    %2514 = vmatprep.subr.mxu0 0.0
    %2515 = vmatpush1.msra.mxu0 0.0
    %2516 = vmatprep.subr.mxu0 0.0
    %2517 = vmatpush1.msra.mxu0 0.0
    %2518 = vmatprep.subr.mxu0 0.0
    %2519 = vmatpush1.msra.mxu0 0.0
    %2520 = vmatprep.subr.mxu0 0.0
    %2521 = vmatpush1.msra.mxu0 0.0
    %2522 = vmatprep.subr.mxu0 0.0
    %2523 = vmatpush1.msra.mxu0 0.0
    %2524 = vmatprep.subr.mxu0 0.0
    %2525 = vmatpush1.msra.mxu0 0.0
    %2526 = vmatprep.subr.mxu0 0.0
    %2527 = vmatpush1.msra.mxu0 0.0
    %2528 = vmatprep.subr.mxu0 0.0
    %2529 = vmatpush1.msra.mxu0 0.0
    %2530 = vmatprep.subr.mxu0 0.0
    %2531 = vmatpush1.msra.mxu0 0.0
    %2532 = vmatprep.subr.mxu0 0.0
    %2533 = vmatpush1.msra.mxu0 0.0
    %2534 = vmatprep.subr.mxu0 0.0
    %2535 = vmatpush1.msra.mxu0 0.0
    %2536 = vmatprep.subr.mxu0 0.0
    %2537 = vmatpush1.msra.mxu0 0.0
    %2538 = vmatprep.subr.mxu0 0.0
    %2539 = vmatpush1.msra.mxu0 0.0
    %2540 = vmatprep.subr.mxu0 0.0
    %2541 = vmatpush1.msra.mxu0 0.0
    %2542 = vmatprep.subr.mxu0 0.0
    %2543 = vmatpush1.msra.mxu0 0.0
    %2544 = vmatprep.subr.mxu0 0.0
    %2545 = vmatpush1.msra.mxu0 0.0
    %2546 = vmatprep.subr.mxu0 0.0
    %2547 = vmatpush1.msra.mxu0 0.0
    %2548 = vmatprep.subr.mxu0 0.0
    %2549 = vmatpush1.msra.mxu0 0.0
    %2550 = vmatprep.subr.mxu0 0.0
    %2551 = vmatpush1.msra.mxu0 0.0
    %2552 = vmatprep.subr.mxu0 0.0
    %2553 = vmatpush1.msra.mxu0 0.0
    %2554 = vmatprep.subr.mxu0 0.0
    %2555 = vmatpush1.msra.mxu0 0.0
    %2556 = vmatprep.subr.mxu0 0.0
    %2557 = vmatpush1.msra.mxu0 0.0
    %2558 = vmatprep.subr.mxu0 0.0
    %2559 = vmatpush1.msra.mxu0 0.0
    %2560 = vmatprep.subr.mxu0 0.0
    %2561 = vmatpush1.msra.mxu0 0.0
    %2562 = vmatprep.subr.mxu0 0.0
    %2563 = vmatpush1.msra.mxu0 0.0
    %2564 = vmatprep.subr.mxu0 0.0
    %2565 = vmatpush1.msra.mxu0 0.0
    %2566 = vmatprep.subr.mxu0 0.0
    %2567 = vmatpush1.msra.mxu0 0.0
    %2568 = vmatprep.mubr.f32.mxu0 0.0
    %2569 = vmatmul.mubr.f32.gmra.mrb[0].mxu0 %v2502
    %v2570 = vpop.f32.mrb[0].mxu0
    %v2571 = vadd.f32 %v1800, %v2570
    %v2572 = vpop.f32.mrb[0].mxu0
    %2573 = vdwg.mxu0
    %v2575 = vrot.slane %v2571, 3
    %v2576 = vrot.slane %v2571, 4
    %v2579 = vadd.f32 %v1789, %v2575
    %v2580 = vadd.f32 %v1794, %v2576
    %v2581 = vxor.u32 %v2579, 2147483648
    %v2582 = vxor.u32 %v2580, 2147483648
    %v2583 = vmul.f32 %v2581, 1.442695
    %v2584 = vpow.pop %v2583
    %v2585 = vmul.f32 %v2582, 1.442695
    %v2586 = vpow.pop %v2585
    %v2587 = vadd.f32 %v2584, 1.0
    %v2588 = vadd.f32 %v2586, 1.0
    %v2589 = vrcp.pop %v2587
    %v2590 = vmul.f32 1.0, %v2589
    %v2591 = vrcp.pop %v2588
    %v2592 = vmul.f32 1.0, %v2591
    %2593 = vrot.lane.b32.xlu0 %v2575, 96
    %v2594 = vpop.permute.xlu0 %2593
    %2595 = vrot.lane.b32.xlu0 %v2576, 96
    %v2596 = vpop.permute.xlu0 %2595
    %v2599 = vmul.f32 %v2590, %v2594
    %v2600 = vmul.f32 %v2592, %v2596
    %2603 = vrot.lane.b32.xlu0 %v2599, 32
    %v2604 = vpop.permute.xlu0 %2603
    %2605 = vrot.lane.b32.xlu0 %v2600, 32
    %v2606 = vpop.permute.xlu0 %2605
    %v2609 = vadd.f32 %v1789, %v2604
    %v2610 = vadd.f32 %v1794, %v2606
    %v2611 = vtanh.pop %v2609
    %v2612 = vtanh.pop %v2610
    %v2613 = vsub.f32 1.0, %v2590
    %v2614 = vsub.f32 1.0, %v2592
    %2617 = vrot.lane.b32.xlu0 %v2611, 112
    %v2618 = vpop.permute.xlu0 %2617
    %2619 = vrot.lane.b32.xlu0 %v2612, 112
    %v2620 = vpop.permute.xlu0 %2619
    %v2623 = vmul.f32 %v2613, %v2618
    %v2624 = vmul.f32 %v2614, %v2620
    %v2625 = vrot.slane %v2488, 7
    %v2626 = vrot.slane %v2489, 7
    %v2629 = vmul.f32 %v2590, %v2625
    %v2630 = vmul.f32 %v2592, %v2626
    %v2631 = vadd.f32 %v2623, %v2629
    %v2632 = vadd.f32 %v2624, %v2630
    %v2635 = vrot.slane %v2631, 5
    %v2636 = vrot.slane %v2632, 5
    %v2639 = vadd.f32 %v2496, %v2635
    %v2640 = vadd.f32 %v2497, %v2636
    %v2641 = vrot.slane %v2632, 4
    %v2642 = vsel %vm60, %v2641, %v2635
    %2643 = vrot.lane.b32.xlu0 %v2642, 112
    %v2644 = vpop.permute.xlu0 %2643
    %v2645 = vsel %vm500, %v2644, 0
    %2647 = vmatprep.subr.mxu0 0.0
    %2648 = vmatpush1.msra.mxu0 %v1705
    %2649 = vmatprep.subr.mxu0 0.0
    %2650 = vmatpush1.msra.mxu0 %v1706
    %2651 = vmatprep.subr.mxu0 0.0
    %2652 = vmatpush1.msra.mxu0 0.0
    %2653 = vmatprep.subr.mxu0 0.0
    %2654 = vmatpush1.msra.mxu0 0.0
    %2655 = vmatprep.subr.mxu0 0.0
    %2656 = vmatpush1.msra.mxu0 0.0
    %2657 = vmatprep.subr.mxu0 0.0
    %2658 = vmatpush1.msra.mxu0 0.0
    %2659 = vmatprep.subr.mxu0 0.0
    %2660 = vmatpush1.msra.mxu0 0.0
    %2661 = vmatprep.subr.mxu0 0.0
    %2662 = vmatpush1.msra.mxu0 0.0
    %2663 = vmatprep.subr.mxu0 0.0
    %2664 = vmatpush1.msra.mxu0 0.0
    %2665 = vmatprep.subr.mxu0 0.0
    %2666 = vmatpush1.msra.mxu0 0.0
    %2667 = vmatprep.subr.mxu0 0.0
    %2668 = vmatpush1.msra.mxu0 0.0
    %2669 = vmatprep.subr.mxu0 0.0
    %2670 = vmatpush1.msra.mxu0 0.0
    %2671 = vmatprep.subr.mxu0 0.0
    %2672 = vmatpush1.msra.mxu0 0.0
    %2673 = vmatprep.subr.mxu0 0.0
    %2674 = vmatpush1.msra.mxu0 0.0
    %2675 = vmatprep.subr.mxu0 0.0
    %2676 = vmatpush1.msra.mxu0 0.0
    %2677 = vmatprep.subr.mxu0 0.0
    %2678 = vmatpush1.msra.mxu0 0.0
    %2679 = vmatprep.subr.mxu0 0.0
    %2680 = vmatpush1.msra.mxu0 0.0
    %2681 = vmatprep.subr.mxu0 0.0
    %2682 = vmatpush1.msra.mxu0 0.0
    %2683 = vmatprep.subr.mxu0 0.0
    %2684 = vmatpush1.msra.mxu0 0.0
    %2685 = vmatprep.subr.mxu0 0.0
    %2686 = vmatpush1.msra.mxu0 0.0
    %2687 = vmatprep.subr.mxu0 0.0
    %2688 = vmatpush1.msra.mxu0 0.0
    %2689 = vmatprep.subr.mxu0 0.0
    %2690 = vmatpush1.msra.mxu0 0.0
    %2691 = vmatprep.subr.mxu0 0.0
    %2692 = vmatpush1.msra.mxu0 0.0
    %2693 = vmatprep.subr.mxu0 0.0
    %2694 = vmatpush1.msra.mxu0 0.0
    %2695 = vmatprep.subr.mxu0 0.0
    %2696 = vmatpush1.msra.mxu0 0.0
    %2697 = vmatprep.subr.mxu0 0.0
    %2698 = vmatpush1.msra.mxu0 0.0
    %2699 = vmatprep.subr.mxu0 0.0
    %2700 = vmatpush1.msra.mxu0 0.0
    %2701 = vmatprep.subr.mxu0 0.0
    %2702 = vmatpush1.msra.mxu0 0.0
    %2703 = vmatprep.subr.mxu0 0.0
    %2704 = vmatpush1.msra.mxu0 0.0
    %2705 = vmatprep.subr.mxu0 0.0
    %2706 = vmatpush1.msra.mxu0 0.0
    %2707 = vmatprep.subr.mxu0 0.0
    %2708 = vmatpush1.msra.mxu0 0.0
    %2709 = vmatprep.subr.mxu0 0.0
    %2710 = vmatpush1.msra.mxu0 0.0
    %2711 = vmatprep.mubr.f32.mxu0 0.0
    %2712 = vmatmul.mubr.f32.gmra.mrb[0].mxu0 %v2645
    %v2713 = vpop.f32.mrb[0].mxu0
    %v2714 = vadd.f32 %v1800, %v2713
    %v2715 = vpop.f32.mrb[0].mxu0
    %2716 = vdwg.mxu0
    %v2718 = vrot.slane %v2714, 2
    %v2719 = vrot.slane %v2714, 3
    %v2722 = vadd.f32 %v1789, %v2718
    %v2723 = vadd.f32 %v1794, %v2719
    %v2724 = vxor.u32 %v2722, 2147483648
    %v2725 = vxor.u32 %v2723, 2147483648
    %v2726 = vmul.f32 %v2724, 1.442695
    %v2727 = vpow.pop %v2726
    %v2728 = vmul.f32 %v2725, 1.442695
    %v2729 = vpow.pop %v2728
    %v2730 = vadd.f32 %v2727, 1.0
    %v2731 = vadd.f32 %v2729, 1.0
    %v2732 = vrcp.pop %v2730
    %v2733 = vmul.f32 1.0, %v2732
    %v2734 = vrcp.pop %v2731
    %v2735 = vmul.f32 1.0, %v2734
    %2736 = vrot.lane.b32.xlu0 %v2718, 96
    %v2737 = vpop.permute.xlu0 %2736
    %2738 = vrot.lane.b32.xlu0 %v2719, 96
    %v2739 = vpop.permute.xlu0 %2738
    %v2742 = vmul.f32 %v2733, %v2737
    %v2743 = vmul.f32 %v2735, %v2739
    %2746 = vrot.lane.b32.xlu0 %v2742, 32
    %v2747 = vpop.permute.xlu0 %2746
    %2748 = vrot.lane.b32.xlu0 %v2743, 32
    %v2749 = vpop.permute.xlu0 %2748
    %v2752 = vadd.f32 %v1789, %v2747
    %v2753 = vadd.f32 %v1794, %v2749
    %v2754 = vtanh.pop %v2752
    %v2755 = vtanh.pop %v2753
    %v2756 = vsub.f32 1.0, %v2733
    %v2757 = vsub.f32 1.0, %v2735
    %2760 = vrot.lane.b32.xlu0 %v2754, 112
    %v2761 = vpop.permute.xlu0 %2760
    %2762 = vrot.lane.b32.xlu0 %v2755, 112
    %v2763 = vpop.permute.xlu0 %2762
    %v2766 = vmul.f32 %v2756, %v2761
    %v2767 = vmul.f32 %v2757, %v2763
    %v2768 = vrot.slane %v2631, 7
    %v2769 = vrot.slane %v2632, 7
    %v2772 = vmul.f32 %v2733, %v2768
    %v2773 = vmul.f32 %v2735, %v2769
    %v2774 = vadd.f32 %v2766, %v2772
    %v2775 = vadd.f32 %v2767, %v2773
    %v2778 = vrot.slane %v2774, 6
    %v2779 = vrot.slane %v2775, 6
    %v2782 = vadd.f32 %v2639, %v2778
    %v2783 = vadd.f32 %v2640, %v2779
    %v2784 = vrot.slane %v2775, 5
    %v2785 = vsel %vm60, %v2784, %v2778
    %2786 = vrot.lane.b32.xlu0 %v2785, 112
    %v2787 = vpop.permute.xlu0 %2786
    %v2788 = vsel %vm500, %v2787, 0
    %2790 = vmatprep.subr.mxu0 0.0
    %2791 = vmatpush1.msra.mxu0 %v1705
    %2792 = vmatprep.subr.mxu0 0.0
    %2793 = vmatpush1.msra.mxu0 %v1706
    %2794 = vmatprep.subr.mxu0 0.0
    %2795 = vmatpush1.msra.mxu0 0.0
    %2796 = vmatprep.subr.mxu0 0.0
    %2797 = vmatpush1.msra.mxu0 0.0
    %2798 = vmatprep.subr.mxu0 0.0
    %2799 = vmatpush1.msra.mxu0 0.0
    %2800 = vmatprep.subr.mxu0 0.0
    %2801 = vmatpush1.msra.mxu0 0.0
    %2802 = vmatprep.subr.mxu0 0.0
    %2803 = vmatpush1.msra.mxu0 0.0
    %2804 = vmatprep.subr.mxu0 0.0
    %2805 = vmatpush1.msra.mxu0 0.0
    %2806 = vmatprep.subr.mxu0 0.0
    %2807 = vmatpush1.msra.mxu0 0.0
    %2808 = vmatprep.subr.mxu0 0.0
    %2809 = vmatpush1.msra.mxu0 0.0
    %2810 = vmatprep.subr.mxu0 0.0
    %2811 = vmatpush1.msra.mxu0 0.0
    %2812 = vmatprep.subr.mxu0 0.0
    %2813 = vmatpush1.msra.mxu0 0.0
    %2814 = vmatprep.subr.mxu0 0.0
    %2815 = vmatpush1.msra.mxu0 0.0
    %2816 = vmatprep.subr.mxu0 0.0
    %2817 = vmatpush1.msra.mxu0 0.0
    %2818 = vmatprep.subr.mxu0 0.0
    %2819 = vmatpush1.msra.mxu0 0.0
    %2820 = vmatprep.subr.mxu0 0.0
    %2821 = vmatpush1.msra.mxu0 0.0
    %2822 = vmatprep.subr.mxu0 0.0
    %2823 = vmatpush1.msra.mxu0 0.0
    %2824 = vmatprep.subr.mxu0 0.0
    %2825 = vmatpush1.msra.mxu0 0.0
    %2826 = vmatprep.subr.mxu0 0.0
    %2827 = vmatpush1.msra.mxu0 0.0
    %2828 = vmatprep.subr.mxu0 0.0
    %2829 = vmatpush1.msra.mxu0 0.0
    %2830 = vmatprep.subr.mxu0 0.0
    %2831 = vmatpush1.msra.mxu0 0.0
    %2832 = vmatprep.subr.mxu0 0.0
    %2833 = vmatpush1.msra.mxu0 0.0
    %2834 = vmatprep.subr.mxu0 0.0
    %2835 = vmatpush1.msra.mxu0 0.0
    %2836 = vmatprep.subr.mxu0 0.0
    %2837 = vmatpush1.msra.mxu0 0.0
    %2838 = vmatprep.subr.mxu0 0.0
    %2839 = vmatpush1.msra.mxu0 0.0
    %2840 = vmatprep.subr.mxu0 0.0
    %2841 = vmatpush1.msra.mxu0 0.0
    %2842 = vmatprep.subr.mxu0 0.0
    %2843 = vmatpush1.msra.mxu0 0.0
    %2844 = vmatprep.subr.mxu0 0.0
    %2845 = vmatpush1.msra.mxu0 0.0
    %2846 = vmatprep.subr.mxu0 0.0
    %2847 = vmatpush1.msra.mxu0 0.0
    %2848 = vmatprep.subr.mxu0 0.0
    %2849 = vmatpush1.msra.mxu0 0.0
    %2850 = vmatprep.subr.mxu0 0.0
    %2851 = vmatpush1.msra.mxu0 0.0
    %2852 = vmatprep.subr.mxu0 0.0
    %2853 = vmatpush1.msra.mxu0 0.0
    %2854 = vmatprep.mubr.f32.mxu0 0.0
    %2855 = vmatmul.mubr.f32.gmra.mrb[0].mxu0 %v2788
    %v2856 = vpop.f32.mrb[0].mxu0
    %v2857 = vadd.f32 %v1800, %v2856
    %v2858 = vpop.f32.mrb[0].mxu0
    %2859 = vdwg.mxu0
    %v2861 = vrot.slane %v2857, 1
    %v2862 = vrot.slane %v2857, 2
    %v2865 = vadd.f32 %v1789, %v2861
    %v2866 = vadd.f32 %v1794, %v2862
    %v2867 = vxor.u32 %v2865, 2147483648
    %v2868 = vxor.u32 %v2866, 2147483648
    %v2869 = vmul.f32 %v2867, 1.442695
    %v2870 = vpow.pop %v2869
    %v2871 = vmul.f32 %v2868, 1.442695
    %v2872 = vpow.pop %v2871
    %v2873 = vadd.f32 %v2870, 1.0
    %v2874 = vadd.f32 %v2872, 1.0
    %v2875 = vrcp.pop %v2873
    %v2876 = vmul.f32 1.0, %v2875
    %v2877 = vrcp.pop %v2874
    %v2878 = vmul.f32 1.0, %v2877
    %2879 = vrot.lane.b32.xlu0 %v2861, 96
    %v2880 = vpop.permute.xlu0 %2879
    %2881 = vrot.lane.b32.xlu0 %v2862, 96
    %v2882 = vpop.permute.xlu0 %2881
    %v2885 = vmul.f32 %v2876, %v2880
    %v2886 = vmul.f32 %v2878, %v2882
    %2889 = vrot.lane.b32.xlu0 %v2885, 32
    %v2890 = vpop.permute.xlu0 %2889
    %2891 = vrot.lane.b32.xlu0 %v2886, 32
    %v2892 = vpop.permute.xlu0 %2891
    %v2895 = vadd.f32 %v1789, %v2890
    %v2896 = vadd.f32 %v1794, %v2892
    %v2897 = vtanh.pop %v2895
    %v2898 = vtanh.pop %v2896
    %v2899 = vsub.f32 1.0, %v2876
    %v2900 = vsub.f32 1.0, %v2878
    %2903 = vrot.lane.b32.xlu0 %v2897, 112
    %v2904 = vpop.permute.xlu0 %2903
    %2905 = vrot.lane.b32.xlu0 %v2898, 112
    %v2906 = vpop.permute.xlu0 %2905
    %v2909 = vmul.f32 %v2899, %v2904
    %v2910 = vmul.f32 %v2900, %v2906
    %v2911 = vrot.slane %v2774, 7
    %v2912 = vrot.slane %v2775, 7
    %v2915 = vmul.f32 %v2876, %v2911
    %v2916 = vmul.f32 %v2878, %v2912
    %v2917 = vadd.f32 %v2909, %v2915
    %v2918 = vadd.f32 %v2910, %v2916
    %v2921 = vrot.slane %v2917, 7
    %v2922 = vrot.slane %v2918, 7
    %v2925 = vadd.f32 %v2782, %v2921
    %v2926 = vadd.f32 %v2783, %v2922
    %v2927 = vmul.f32 %v2925, 0.125
    %v2928 = vmul.f32 %v2926, 0.125
    %v2929 = vld [vmem:[#allocation2 + $0x108] sm:$0xff]
    %v2930 = vld [vmem:[#allocation2 + $0x110] sm:$0xff]
    %v2932 = vsel %vm500, %v218, 0
    %2934 = vmatprep.subr.mxu0 0.0
    %2935 = vmatpush1.msra.mxu0 %v2929
    %2936 = vmatprep.subr.mxu0 0.0
    %2937 = vmatpush1.msra.mxu0 %v2930
    %2938 = vmatprep.subr.mxu0 0.0
    %2939 = vmatpush1.msra.mxu0 0.0
    %2940 = vmatprep.subr.mxu0 0.0
    %2941 = vmatpush1.msra.mxu0 0.0
    %2942 = vmatprep.subr.mxu0 0.0
    %2943 = vmatpush1.msra.mxu0 0.0
    %2944 = vmatprep.subr.mxu0 0.0
    %2945 = vmatpush1.msra.mxu0 0.0
    %2946 = vmatprep.subr.mxu0 0.0
    %2947 = vmatpush1.msra.mxu0 0.0
    %2948 = vmatprep.subr.mxu0 0.0
    %2949 = vmatpush1.msra.mxu0 0.0
    %2950 = vmatprep.subr.mxu0 0.0
    %2951 = vmatpush1.msra.mxu0 0.0
    %2952 = vmatprep.subr.mxu0 0.0
    %2953 = vmatpush1.msra.mxu0 0.0
    %2954 = vmatprep.subr.mxu0 0.0
    %2955 = vmatpush1.msra.mxu0 0.0
    %2956 = vmatprep.subr.mxu0 0.0
    %2957 = vmatpush1.msra.mxu0 0.0
    %2958 = vmatprep.subr.mxu0 0.0
    %2959 = vmatpush1.msra.mxu0 0.0
    %2960 = vmatprep.subr.mxu0 0.0
    %2961 = vmatpush1.msra.mxu0 0.0
    %2962 = vmatprep.subr.mxu0 0.0
    %2963 = vmatpush1.msra.mxu0 0.0
    %2964 = vmatprep.subr.mxu0 0.0
    %2965 = vmatpush1.msra.mxu0 0.0
    %2966 = vmatprep.subr.mxu0 0.0
    %2967 = vmatpush1.msra.mxu0 0.0
    %2968 = vmatprep.subr.mxu0 0.0
    %2969 = vmatpush1.msra.mxu0 0.0
    %2970 = vmatprep.subr.mxu0 0.0
    %2971 = vmatpush1.msra.mxu0 0.0
    %2972 = vmatprep.subr.mxu0 0.0
    %2973 = vmatpush1.msra.mxu0 0.0
    %2974 = vmatprep.subr.mxu0 0.0
    %2975 = vmatpush1.msra.mxu0 0.0
    %2976 = vmatprep.subr.mxu0 0.0
    %2977 = vmatpush1.msra.mxu0 0.0
    %2978 = vmatprep.subr.mxu0 0.0
    %2979 = vmatpush1.msra.mxu0 0.0
    %2980 = vmatprep.subr.mxu0 0.0
    %2981 = vmatpush1.msra.mxu0 0.0
    %2982 = vmatprep.subr.mxu0 0.0
    %2983 = vmatpush1.msra.mxu0 0.0
    %2984 = vmatprep.subr.mxu0 0.0
    %2985 = vmatpush1.msra.mxu0 0.0
    %2986 = vmatprep.subr.mxu0 0.0
    %2987 = vmatpush1.msra.mxu0 0.0
    %2988 = vmatprep.subr.mxu0 0.0
    %2989 = vmatpush1.msra.mxu0 0.0
    %2990 = vmatprep.subr.mxu0 0.0
    %2991 = vmatpush1.msra.mxu0 0.0
    %2992 = vmatprep.subr.mxu0 0.0
    %2993 = vmatpush1.msra.mxu0 0.0
    %2994 = vmatprep.subr.mxu0 0.0
    %2995 = vmatpush1.msra.mxu0 0.0
    %2996 = vmatprep.subr.mxu0 0.0
    %2997 = vmatpush1.msra.mxu0 0.0
    %2998 = vmatprep.mubr.f32.mxu0 0.0
    %2999 = vmatmul.mubr.f32.gmra.mrb[0].mxu0 %v2932
    %v3000 = vpop.f32.mrb[0].mxu0
    %v3001 = vadd.f32 0.0, %v3000
    %v3002 = vpop.f32.mrb[0].mxu0
    %3003 = vdwg.mxu0
    %v3004 = vld [vmem:[#allocation2 + $0x118] sm:$0xff]
    %v3005 = vld [vmem:[#allocation2 + $0x120] sm:$0xff]
    %3006 = vmatprep.subr.mxu0 0.0
    %3007 = vmatpush1.msra.mxu0 %v3004
    %3008 = vmatprep.subr.mxu0 0.0
    %3009 = vmatpush1.msra.mxu0 %v3005
    %3010 = vmatprep.subr.mxu0 0.0
    %3011 = vmatpush1.msra.mxu0 0.0
    %3012 = vmatprep.subr.mxu0 0.0
    %3013 = vmatpush1.msra.mxu0 0.0
    %3014 = vmatprep.subr.mxu0 0.0
    %3015 = vmatpush1.msra.mxu0 0.0
    %3016 = vmatprep.subr.mxu0 0.0
    %3017 = vmatpush1.msra.mxu0 0.0
    %3018 = vmatprep.subr.mxu0 0.0
    %3019 = vmatpush1.msra.mxu0 0.0
    %3020 = vmatprep.subr.mxu0 0.0
    %3021 = vmatpush1.msra.mxu0 0.0
    %3022 = vmatprep.subr.mxu0 0.0
    %3023 = vmatpush1.msra.mxu0 0.0
    %3024 = vmatprep.subr.mxu0 0.0
    %3025 = vmatpush1.msra.mxu0 0.0
    %3026 = vmatprep.subr.mxu0 0.0
    %3027 = vmatpush1.msra.mxu0 0.0
    %3028 = vmatprep.subr.mxu0 0.0
    %3029 = vmatpush1.msra.mxu0 0.0
    %3030 = vmatprep.subr.mxu0 0.0
    %3031 = vmatpush1.msra.mxu0 0.0
    %3032 = vmatprep.subr.mxu0 0.0
    %3033 = vmatpush1.msra.mxu0 0.0
    %3034 = vmatprep.subr.mxu0 0.0
    %3035 = vmatpush1.msra.mxu0 0.0
    %3036 = vmatprep.subr.mxu0 0.0
    %3037 = vmatpush1.msra.mxu0 0.0
    %3038 = vmatprep.subr.mxu0 0.0
    %3039 = vmatpush1.msra.mxu0 0.0
    %3040 = vmatprep.subr.mxu0 0.0
    %3041 = vmatpush1.msra.mxu0 0.0
    %3042 = vmatprep.subr.mxu0 0.0
    %3043 = vmatpush1.msra.mxu0 0.0
    %3044 = vmatprep.subr.mxu0 0.0
    %3045 = vmatpush1.msra.mxu0 0.0
    %3046 = vmatprep.subr.mxu0 0.0
    %3047 = vmatpush1.msra.mxu0 0.0
    %3048 = vmatprep.subr.mxu0 0.0
    %3049 = vmatpush1.msra.mxu0 0.0
    %3050 = vmatprep.subr.mxu0 0.0
    %3051 = vmatpush1.msra.mxu0 0.0
    %3052 = vmatprep.subr.mxu0 0.0
    %3053 = vmatpush1.msra.mxu0 0.0
    %3054 = vmatprep.subr.mxu0 0.0
    %3055 = vmatpush1.msra.mxu0 0.0
    %3056 = vmatprep.subr.mxu0 0.0
    %3057 = vmatpush1.msra.mxu0 0.0
    %3058 = vmatprep.subr.mxu0 0.0
    %3059 = vmatpush1.msra.mxu0 0.0
    %3060 = vmatprep.subr.mxu0 0.0
    %3061 = vmatpush1.msra.mxu0 0.0
    %3062 = vmatprep.subr.mxu0 0.0
    %3063 = vmatpush1.msra.mxu0 0.0
    %3064 = vmatprep.subr.mxu0 0.0
    %3065 = vmatpush1.msra.mxu0 0.0
    %3066 = vmatprep.subr.mxu0 0.0
    %3067 = vmatpush1.msra.mxu0 0.0
    %3068 = vmatprep.subr.mxu0 0.0
    %3069 = vmatpush1.msra.mxu0 0.0
    %3070 = vmatprep.mubr.f32.mxu0 0.0
    %3071 = vmatmul.mubr.f32.gmra.mrb[0].mxu0 %v2932
    %v3072 = vpop.f32.mrb[0].mxu0
    %v3073 = vadd.f32 0.0, %v3072
    %v3074 = vpop.f32.mrb[0].mxu0
    %3075 = vdwg.mxu0
    %v3076 = vmul.f32 %v3073, 8.0
    %v3079 = vcombine.high %v1419, %v1419
    %v3081 = vunpack.c.l.s4 1983009808
    %v3082 = vunpack.c.0.s8 %v3081
    %v3083 = vlaneseq
    %v3084 = vshrl.u32 %v3083, 7
    %v3085 = vsub.s32 %v3082, %v3084
    %v3086 = vrot.slane %v1419, %v3085
    %v3088 = vunpack.c.l.s4 1983009808
    %v3089 = vunpack.c.0.s8 %v3088
    %v3090 = vlaneseq
    %v3091 = vshrl.u32 %v3090, 7
    %v3092 = vsub.s32 %v3089, %v3091
    %v3093 = vrot.slane %v3079, %v3092
    %v3094 = vcombine.high %v3086, %v3086
    %v3095 = vcombine.high %v1420, %v1420
    %v3097 = vunpack.c.l.s4 1983009808
    %v3098 = vunpack.c.0.s8 %v3097
    %v3099 = vlaneseq
    %v3100 = vshrl.u32 %v3099, 7
    %v3101 = vsub.s32 %v3098, %v3100
    %v3102 = vrot.slane %v1420, %v3101
    %v3104 = vunpack.c.l.s4 1983009808
    %v3105 = vunpack.c.0.s8 %v3104
    %v3106 = vlaneseq
    %v3107 = vshrl.u32 %v3106, 7
    %v3108 = vsub.s32 %v3105, %v3107
    %v3109 = vrot.slane %v3095, %v3108
    %v3110 = vcombine.high %v3102, %v3102
    %v3111 = vld [vmem:[#allocation2 + $0x128] sm:$0xff]
    %v3112 = vld [vmem:[#allocation2 + $0x130] sm:$0xff]
    %v3113 = vcombine.low %v3086, %v3094
    %v3114 = vcombine.low %v3093, %v3102
    %v3116 = vunpack.c.l.s4 1983009808
    %v3117 = vunpack.c.0.s8 %v3116
    %v3118 = vlaneseq
    %v3119 = vshrl.u32 %v3118, 7
    %v3120 = vsub.s32 %v3117, %v3119
    %v3121 = vrot.slane %v3113, %v3120
    %v3123 = vunpack.c.l.s4 1983009808
    %v3124 = vunpack.c.0.s8 %v3123
    %v3125 = vlaneseq
    %v3126 = vshrl.u32 %v3125, 7
    %v3127 = vsub.s32 %v3124, %v3126
    %v3128 = vrot.slane %v3114, %v3127
    %v3129 = vcombine.low %v3121, %v3128
    %v3130 = vcombine.low %v3110, %v3109
    %v3132 = vunpack.c.l.s4 1983009808
    %v3133 = vunpack.c.0.s8 %v3132
    %v3134 = vlaneseq
    %v3135 = vshrl.u32 %v3134, 7
    %v3136 = vsub.s32 %v3133, %v3135
    %v3137 = vrot.slane %v3130, %v3136
    %3138 = vrot.lane.b32.xlu0 %v3129, 112
    %v3139 = vpop.permute.xlu0 %3138
    %3140 = vrot.lane.b32.xlu0 %v3137, 112
    %v3141 = vpop.permute.xlu0 %3140
    %v3142 = vsel %vm500, %v3139, 0
    %v3144 = vsel %vm500, %v3141, 0
    %3146 = vmatprep.subr.mxu0 0.0
    %3147 = vmatpush1.msra.mxu0 %v3111
    %3148 = vmatprep.subr.mxu0 0.0
    %3149 = vmatpush1.msra.mxu0 %v3112
    %3150 = vmatprep.subr.mxu0 0.0
    %3151 = vmatpush1.msra.mxu0 0.0
    %3152 = vmatprep.subr.mxu0 0.0
    %3153 = vmatpush1.msra.mxu0 0.0
    %3154 = vmatprep.subr.mxu0 0.0
    %3155 = vmatpush1.msra.mxu0 0.0
    %3156 = vmatprep.subr.mxu0 0.0
    %3157 = vmatpush1.msra.mxu0 0.0
    %3158 = vmatprep.subr.mxu0 0.0
    %3159 = vmatpush1.msra.mxu0 0.0
    %3160 = vmatprep.subr.mxu0 0.0
    %3161 = vmatpush1.msra.mxu0 0.0
    %3162 = vmatprep.subr.mxu0 0.0
    %3163 = vmatpush1.msra.mxu0 0.0
    %3164 = vmatprep.subr.mxu0 0.0
    %3165 = vmatpush1.msra.mxu0 0.0
    %3166 = vmatprep.subr.mxu0 0.0
    %3167 = vmatpush1.msra.mxu0 0.0
    %3168 = vmatprep.subr.mxu0 0.0
    %3169 = vmatpush1.msra.mxu0 0.0
    %3170 = vmatprep.subr.mxu0 0.0
    %3171 = vmatpush1.msra.mxu0 0.0
    %3172 = vmatprep.subr.mxu0 0.0
    %3173 = vmatpush1.msra.mxu0 0.0
    %3174 = vmatprep.subr.mxu0 0.0
    %3175 = vmatpush1.msra.mxu0 0.0
    %3176 = vmatprep.subr.mxu0 0.0
    %3177 = vmatpush1.msra.mxu0 0.0
    %3178 = vmatprep.subr.mxu0 0.0
    %3179 = vmatpush1.msra.mxu0 0.0
    %3180 = vmatprep.subr.mxu0 0.0
    %3181 = vmatpush1.msra.mxu0 0.0
    %3182 = vmatprep.subr.mxu0 0.0
    %3183 = vmatpush1.msra.mxu0 0.0
    %3184 = vmatprep.subr.mxu0 0.0
    %3185 = vmatpush1.msra.mxu0 0.0
    %3186 = vmatprep.subr.mxu0 0.0
    %3187 = vmatpush1.msra.mxu0 0.0
    %3188 = vmatprep.subr.mxu0 0.0
    %3189 = vmatpush1.msra.mxu0 0.0
    %3190 = vmatprep.subr.mxu0 0.0
    %3191 = vmatpush1.msra.mxu0 0.0
    %3192 = vmatprep.subr.mxu0 0.0
    %3193 = vmatpush1.msra.mxu0 0.0
    %3194 = vmatprep.subr.mxu0 0.0
    %3195 = vmatpush1.msra.mxu0 0.0
    %3196 = vmatprep.subr.mxu0 0.0
    %3197 = vmatpush1.msra.mxu0 0.0
    %3198 = vmatprep.subr.mxu0 0.0
    %3199 = vmatpush1.msra.mxu0 0.0
    %3200 = vmatprep.subr.mxu0 0.0
    %3201 = vmatpush1.msra.mxu0 0.0
    %3202 = vmatprep.subr.mxu0 0.0
    %3203 = vmatpush1.msra.mxu0 0.0
    %3204 = vmatprep.subr.mxu0 0.0
    %3205 = vmatpush1.msra.mxu0 0.0
    %3206 = vmatprep.subr.mxu0 0.0
    %3207 = vmatpush1.msra.mxu0 0.0
    %3208 = vmatprep.subr.mxu0 0.0
    %3209 = vmatpush1.msra.mxu0 0.0
    %3210 = vmatprep.mubr.f32.mxu0 0.0
    %3211 = vmatmul.mubr.f32.gmra.mrb[0].mxu0 %v3142
    %v3212 = vpop.f32.mrb[0].mxu0
    %v3213 = vadd.f32 0.0, %v3212
    %v3214 = vpop.f32.mrb[0].mxu0
    %3215 = vmatprep.mubr.f32.mxu0 0.0
    %3216 = vmatmul.mubr.f32.gmra.mrb[0].mxu0 %v3144
    %v3217 = vpop.f32.mrb[0].mxu0
    %v3218 = vadd.f32 0.0, %v3217
    %v3219 = vpop.f32.mrb[0].mxu0
    %3220 = vdwg.mxu0
    %v3221 = vld [vmem:[#allocation2 + $0x140] sm:$0xff]
    %v3222 = vld [vmem:[#allocation2 + $0x148] sm:$0xff]
    %v3224 = vsel %vm500, %v1701, 0
    %v3227 = vsel %vm500, %v1702, 0
    %3229 = vmatprep.subr.mxu0 0.0
    %3230 = vmatpush1.msra.mxu0 %v3221
    %3231 = vmatprep.subr.mxu0 0.0
    %3232 = vmatpush1.msra.mxu0 %v3222
    %3233 = vmatprep.subr.mxu0 0.0
    %3234 = vmatpush1.msra.mxu0 0.0
    %3235 = vmatprep.subr.mxu0 0.0
    %3236 = vmatpush1.msra.mxu0 0.0
    %3237 = vmatprep.subr.mxu0 0.0
    %3238 = vmatpush1.msra.mxu0 0.0
    %3239 = vmatprep.subr.mxu0 0.0
    %3240 = vmatpush1.msra.mxu0 0.0
    %3241 = vmatprep.subr.mxu0 0.0
    %3242 = vmatpush1.msra.mxu0 0.0
    %3243 = vmatprep.subr.mxu0 0.0
    %3244 = vmatpush1.msra.mxu0 0.0
    %3245 = vmatprep.subr.mxu0 0.0
    %3246 = vmatpush1.msra.mxu0 0.0
    %3247 = vmatprep.subr.mxu0 0.0
    %3248 = vmatpush1.msra.mxu0 0.0
    %3249 = vmatprep.subr.mxu0 0.0
    %3250 = vmatpush1.msra.mxu0 0.0
    %3251 = vmatprep.subr.mxu0 0.0
    %3252 = vmatpush1.msra.mxu0 0.0
    %3253 = vmatprep.subr.mxu0 0.0
    %3254 = vmatpush1.msra.mxu0 0.0
    %3255 = vmatprep.subr.mxu0 0.0
    %3256 = vmatpush1.msra.mxu0 0.0
    %3257 = vmatprep.subr.mxu0 0.0
    %3258 = vmatpush1.msra.mxu0 0.0
    %3259 = vmatprep.subr.mxu0 0.0
    %3260 = vmatpush1.msra.mxu0 0.0
    %3261 = vmatprep.subr.mxu0 0.0
    %3262 = vmatpush1.msra.mxu0 0.0
    %3263 = vmatprep.subr.mxu0 0.0
    %3264 = vmatpush1.msra.mxu0 0.0
    %3265 = vmatprep.subr.mxu0 0.0
    %3266 = vmatpush1.msra.mxu0 0.0
    %3267 = vmatprep.subr.mxu0 0.0
    %3268 = vmatpush1.msra.mxu0 0.0
    %3269 = vmatprep.subr.mxu0 0.0
    %3270 = vmatpush1.msra.mxu0 0.0
    %3271 = vmatprep.subr.mxu0 0.0
    %3272 = vmatpush1.msra.mxu0 0.0
    %3273 = vmatprep.subr.mxu0 0.0
    %3274 = vmatpush1.msra.mxu0 0.0
    %3275 = vmatprep.subr.mxu0 0.0
    %3276 = vmatpush1.msra.mxu0 0.0
    %3277 = vmatprep.subr.mxu0 0.0
    %3278 = vmatpush1.msra.mxu0 0.0
    %3279 = vmatprep.subr.mxu0 0.0
    %3280 = vmatpush1.msra.mxu0 0.0
    %3281 = vmatprep.subr.mxu0 0.0
    %3282 = vmatpush1.msra.mxu0 0.0
    %3283 = vmatprep.subr.mxu0 0.0
    %3284 = vmatpush1.msra.mxu0 0.0
    %3285 = vmatprep.subr.mxu0 0.0
    %3286 = vmatpush1.msra.mxu0 0.0
    %3287 = vmatprep.subr.mxu0 0.0
    %3288 = vmatpush1.msra.mxu0 0.0
    %3289 = vmatprep.subr.mxu0 0.0
    %3290 = vmatpush1.msra.mxu0 0.0
    %3291 = vmatprep.subr.mxu0 0.0
    %3292 = vmatpush1.msra.mxu0 0.0
    %3293 = vmatprep.mubr.f32.mxu0 0.0
    %3294 = vmatmul.mubr.f32.gmra.mrb[0].mxu0 %v3224
    %v3295 = vpop.f32.mrb[0].mxu0
    %v3296 = vadd.f32 0.0, %v3295
    %v3297 = vpop.f32.mrb[0].mxu0
    %3298 = vmatprep.mubr.f32.mxu0 0.0
    %3299 = vmatmul.mubr.f32.gmra.mrb[0].mxu0 %v3227
    %v3300 = vpop.f32.mrb[0].mxu0
    %v3301 = vadd.f32 0.0, %v3300
    %v3302 = vpop.f32.mrb[0].mxu0
    %3303 = vdwg.mxu0
    %v3304 = vld [vmem:[#allocation2 + $0x150] sm:$0xff]
    %v3305 = vld [vmem:[#allocation2 + $0x158] sm:$0xff]
    %3306 = vmatprep.subr.mxu0 0.0
    %3307 = vmatpush1.msra.mxu0 %v3304
    %3308 = vmatprep.subr.mxu0 0.0
    %3309 = vmatpush1.msra.mxu0 %v3305
    %3310 = vmatprep.subr.mxu0 0.0
    %3311 = vmatpush1.msra.mxu0 0.0
    %3312 = vmatprep.subr.mxu0 0.0
    %3313 = vmatpush1.msra.mxu0 0.0
    %3314 = vmatprep.subr.mxu0 0.0
    %3315 = vmatpush1.msra.mxu0 0.0
    %3316 = vmatprep.subr.mxu0 0.0
    %3317 = vmatpush1.msra.mxu0 0.0
    %3318 = vmatprep.subr.mxu0 0.0
    %3319 = vmatpush1.msra.mxu0 0.0
    %3320 = vmatprep.subr.mxu0 0.0
    %3321 = vmatpush1.msra.mxu0 0.0
    %3322 = vmatprep.subr.mxu0 0.0
    %3323 = vmatpush1.msra.mxu0 0.0
    %3324 = vmatprep.subr.mxu0 0.0
    %3325 = vmatpush1.msra.mxu0 0.0
    %3326 = vmatprep.subr.mxu0 0.0
    %3327 = vmatpush1.msra.mxu0 0.0
    %3328 = vmatprep.subr.mxu0 0.0
    %3329 = vmatpush1.msra.mxu0 0.0
    %3330 = vmatprep.subr.mxu0 0.0
    %3331 = vmatpush1.msra.mxu0 0.0
    %3332 = vmatprep.subr.mxu0 0.0
    %3333 = vmatpush1.msra.mxu0 0.0
    %3334 = vmatprep.subr.mxu0 0.0
    %3335 = vmatpush1.msra.mxu0 0.0
    %3336 = vmatprep.subr.mxu0 0.0
    %3337 = vmatpush1.msra.mxu0 0.0
    %3338 = vmatprep.subr.mxu0 0.0
    %3339 = vmatpush1.msra.mxu0 0.0
    %3340 = vmatprep.subr.mxu0 0.0
    %3341 = vmatpush1.msra.mxu0 0.0
    %3342 = vmatprep.subr.mxu0 0.0
    %3343 = vmatpush1.msra.mxu0 0.0
    %3344 = vmatprep.subr.mxu0 0.0
    %3345 = vmatpush1.msra.mxu0 0.0
    %3346 = vmatprep.subr.mxu0 0.0
    %3347 = vmatpush1.msra.mxu0 0.0
    %3348 = vmatprep.subr.mxu0 0.0
    %3349 = vmatpush1.msra.mxu0 0.0
    %3350 = vmatprep.subr.mxu0 0.0
    %3351 = vmatpush1.msra.mxu0 0.0
    %3352 = vmatprep.subr.mxu0 0.0
    %3353 = vmatpush1.msra.mxu0 0.0
    %3354 = vmatprep.subr.mxu0 0.0
    %3355 = vmatpush1.msra.mxu0 0.0
    %3356 = vmatprep.subr.mxu0 0.0
    %3357 = vmatpush1.msra.mxu0 0.0
    %3358 = vmatprep.subr.mxu0 0.0
    %3359 = vmatpush1.msra.mxu0 0.0
    %3360 = vmatprep.subr.mxu0 0.0
    %3361 = vmatpush1.msra.mxu0 0.0
    %3362 = vmatprep.subr.mxu0 0.0
    %3363 = vmatpush1.msra.mxu0 0.0
    %3364 = vmatprep.subr.mxu0 0.0
    %3365 = vmatpush1.msra.mxu0 0.0
    %3366 = vmatprep.subr.mxu0 0.0
    %3367 = vmatpush1.msra.mxu0 0.0
    %3368 = vmatprep.subr.mxu0 0.0
    %3369 = vmatpush1.msra.mxu0 0.0
    %3370 = vmatprep.mubr.f32.mxu0 0.0
    %3371 = vmatmul.mubr.f32.gmra.mrb[0].mxu0 %v3224
    %v3372 = vpop.f32.mrb[0].mxu0
    %v3373 = vadd.f32 0.0, %v3372
    %v3374 = vpop.f32.mrb[0].mxu0
    %3375 = vmatprep.mubr.f32.mxu0 0.0
    %3376 = vmatmul.mubr.f32.gmra.mrb[0].mxu0 %v3227
    %v3377 = vpop.f32.mrb[0].mxu0
    %v3378 = vadd.f32 0.0, %v3377
    %v3379 = vpop.f32.mrb[0].mxu0
    %3380 = vdwg.mxu0
    %v3381 = vld [vmem:[#allocation2 + $0x138] sm:$0x1]
    %v3382 = vld [vmem:[#allocation2 + $0x160] sm:$0x1]
    %v3383 = vld [vmem:[#allocation2 + $0x168] sm:$0x1]
    %v3384 = vlaneseq
    %v3385 = vshrl.u32 %v3384, 7
    %v3386 = vsub.s32 0, %v3385
    %v3387 = vrot.slane %v3001, %v3386
    %3389 = vrot.lane.b32.xlu0 %v3387, 16
    %v3390 = vpop.permute.xlu0 %3389
    %v3392 = vmul.f32 %v1419, %v3390
    %3394 = vrot.lane.b32.xlu0 %v3392, 112
    %v3395 = vpop.permute.xlu0 %3394
    %vm3397 = vcmask 128000
    %v3398 = vsel %vm3397, %v3395, 0.0
    %3399 = vadd.xlane.f32.xlu0 %v3398
    %v3400 = vpop.xlane.xlu0 %3399
    %v3401 = vlaneseq
    %v3402 = vshrl.u32 %v3401, 7
    %v3403 = vsub.s32 0, %v3402
    %v3404 = vrot.slane %v3076, %v3403
    %v3405 = vmul.f32 %v3400, %v3404
    %v3406 = vadd.f32 %v3213, %v3405
    %v3407 = vtanh.pop %v3406
    %vm3408 = vcmask 64512
    %v3410 = vsel %vm3408, %v3381, 0
    %v3413 = vsel %vm3408, %v3407, 0
    %3415 = vmatprep.subr.mxu0 0.0
    %3416 = vmatpush1.xpose.msra.mxu0 %v3413
    %3417 = vmatprep.subr.mxu0 0.0
    %3418 = vmatpush1.xpose.msra.mxu0 0.0
    %3419 = vmatprep.subr.mxu0 0.0
    %3420 = vmatpush1.xpose.msra.mxu0 0.0
    %3421 = vmatprep.subr.mxu0 0.0
    %3422 = vmatpush1.xpose.msra.mxu0 0.0
    %3423 = vmatprep.subr.mxu0 0.0
    %3424 = vmatpush1.xpose.msra.mxu0 0.0
    %3425 = vmatprep.subr.mxu0 0.0
    %3426 = vmatpush1.xpose.msra.mxu0 0.0
    %3427 = vmatprep.subr.mxu0 0.0
    %3428 = vmatpush1.xpose.msra.mxu0 0.0
    %3429 = vmatprep.subr.mxu0 0.0
    %3430 = vmatpush1.xpose.msra.mxu0 0.0
    %3431 = vmatprep.subr.mxu0 0.0
    %3432 = vmatpush1.xpose.msra.mxu0 0.0
    %3433 = vmatprep.subr.mxu0 0.0
    %3434 = vmatpush1.xpose.msra.mxu0 0.0
    %3435 = vmatprep.subr.mxu0 0.0
    %3436 = vmatpush1.xpose.msra.mxu0 0.0
    %3437 = vmatprep.subr.mxu0 0.0
    %3438 = vmatpush1.xpose.msra.mxu0 0.0
    %3439 = vmatprep.subr.mxu0 0.0
    %3440 = vmatpush1.xpose.msra.mxu0 0.0
    %3441 = vmatprep.subr.mxu0 0.0
    %3442 = vmatpush1.xpose.msra.mxu0 0.0
    %3443 = vmatprep.subr.mxu0 0.0
    %3444 = vmatpush1.xpose.msra.mxu0 0.0
    %3445 = vmatprep.subr.mxu0 0.0
    %3446 = vmatpush1.xpose.msra.mxu0 0.0
    %3447 = vmatprep.subr.mxu0 0.0
    %3448 = vmatpush1.xpose.msra.mxu0 0.0
    %3449 = vmatprep.subr.mxu0 0.0
    %3450 = vmatpush1.xpose.msra.mxu0 0.0
    %3451 = vmatprep.subr.mxu0 0.0
    %3452 = vmatpush1.xpose.msra.mxu0 0.0
    %3453 = vmatprep.subr.mxu0 0.0
    %3454 = vmatpush1.xpose.msra.mxu0 0.0
    %3455 = vmatprep.subr.mxu0 0.0
    %3456 = vmatpush1.xpose.msra.mxu0 0.0
    %3457 = vmatprep.subr.mxu0 0.0
    %3458 = vmatpush1.xpose.msra.mxu0 0.0
    %3459 = vmatprep.subr.mxu0 0.0
    %3460 = vmatpush1.xpose.msra.mxu0 0.0
    %3461 = vmatprep.subr.mxu0 0.0
    %3462 = vmatpush1.xpose.msra.mxu0 0.0
    %3463 = vmatprep.subr.mxu0 0.0
    %3464 = vmatpush1.xpose.msra.mxu0 0.0
    %3465 = vmatprep.subr.mxu0 0.0
    %3466 = vmatpush1.xpose.msra.mxu0 0.0
    %3467 = vmatprep.subr.mxu0 0.0
    %3468 = vmatpush1.xpose.msra.mxu0 0.0
    %3469 = vmatprep.subr.mxu0 0.0
    %3470 = vmatpush1.xpose.msra.mxu0 0.0
    %3471 = vmatprep.subr.mxu0 0.0
    %3472 = vmatpush1.xpose.msra.mxu0 0.0
    %3473 = vmatprep.subr.mxu0 0.0
    %3474 = vmatpush1.xpose.msra.mxu0 0.0
    %3475 = vmatprep.subr.mxu0 0.0
    %3476 = vmatpush1.xpose.msra.mxu0 0.0
    %3477 = vmatprep.subr.mxu0 0.0
    %3478 = vmatpush1.xpose.msra.mxu0 0.0
    %3479 = vmatprep.mubr.f32.mxu0 0.0
    %3480 = vmatmul.mubr.f32.gmra.mrb[0].mxu0 %v3410
    %v3481 = vpop.f32.mrb[0].mxu0
    %v3482 = vadd.f32 0.0, %v3481
    %v3483 = vpop.f32.mrb[0].mxu0
    %3484 = vdwg.mxu0
    %vm3485 = vcmask 40960
    %v3486 = vsel %vm3485, %v3482, -inf
    %3487 = vmax.xlane.f32.xlu0 %v3486
    %v3488 = vpop.xlane.xlu0 %3487
    %v3489 = vsub.f32 %v3482, %v3488
    %v3490 = vmul.f32 %v3489, 1.442695
    %v3491 = vpow.pop %v3490
    %v3492 = vsel %vm3485, %v3491, 0.0
    %3493 = vadd.xlane.f32.xlu0 %v3492
    %v3494 = vpop.xlane.xlu0 %3493
    %v3495 = vrcp.pop %v3494
    %v3496 = vmul.f32 %v3491, %v3495
    %3497 = vrot.lane.b32.xlu0 %v1419, 112
    %v3498 = vpop.permute.xlu0 %3497
    %v3500 = vsel %vm500, %v3296, 0
    %v3502 = vsel %vm500, %v3498, 0
    %3504 = vmatprep.subr.mxu0 0.0
    %3505 = vmatpush1.xpose.msra.mxu0 %v3502
    %3506 = vmatprep.subr.mxu0 0.0
    %3507 = vmatpush1.xpose.msra.mxu0 0.0
    %3508 = vmatprep.subr.mxu0 0.0
    %3509 = vmatpush1.xpose.msra.mxu0 0.0
    %3510 = vmatprep.subr.mxu0 0.0
    %3511 = vmatpush1.xpose.msra.mxu0 0.0
    %3512 = vmatprep.subr.mxu0 0.0
    %3513 = vmatpush1.xpose.msra.mxu0 0.0
    %3514 = vmatprep.subr.mxu0 0.0
    %3515 = vmatpush1.xpose.msra.mxu0 0.0
    %3516 = vmatprep.subr.mxu0 0.0
    %3517 = vmatpush1.xpose.msra.mxu0 0.0
    %3518 = vmatprep.subr.mxu0 0.0
    %3519 = vmatpush1.xpose.msra.mxu0 0.0
    %3520 = vmatprep.subr.mxu0 0.0
    %3521 = vmatpush1.xpose.msra.mxu0 0.0
    %3522 = vmatprep.subr.mxu0 0.0
    %3523 = vmatpush1.xpose.msra.mxu0 0.0
    %3524 = vmatprep.subr.mxu0 0.0
    %3525 = vmatpush1.xpose.msra.mxu0 0.0
    %3526 = vmatprep.subr.mxu0 0.0
    %3527 = vmatpush1.xpose.msra.mxu0 0.0
    %3528 = vmatprep.subr.mxu0 0.0
    %3529 = vmatpush1.xpose.msra.mxu0 0.0
    %3530 = vmatprep.subr.mxu0 0.0
    %3531 = vmatpush1.xpose.msra.mxu0 0.0
    %3532 = vmatprep.subr.mxu0 0.0
    %3533 = vmatpush1.xpose.msra.mxu0 0.0
    %3534 = vmatprep.subr.mxu0 0.0
    %3535 = vmatpush1.xpose.msra.mxu0 0.0
    %3536 = vmatprep.subr.mxu0 0.0
    %3537 = vmatpush1.xpose.msra.mxu0 0.0
    %3538 = vmatprep.subr.mxu0 0.0
    %3539 = vmatpush1.xpose.msra.mxu0 0.0
    %3540 = vmatprep.subr.mxu0 0.0
    %3541 = vmatpush1.xpose.msra.mxu0 0.0
    %3542 = vmatprep.subr.mxu0 0.0
    %3543 = vmatpush1.xpose.msra.mxu0 0.0
    %3544 = vmatprep.subr.mxu0 0.0
    %3545 = vmatpush1.xpose.msra.mxu0 0.0
    %3546 = vmatprep.subr.mxu0 0.0
    %3547 = vmatpush1.xpose.msra.mxu0 0.0
    %3548 = vmatprep.subr.mxu0 0.0
    %3549 = vmatpush1.xpose.msra.mxu0 0.0
    %3550 = vmatprep.subr.mxu0 0.0
    %3551 = vmatpush1.xpose.msra.mxu0 0.0
    %3552 = vmatprep.subr.mxu0 0.0
    %3553 = vmatpush1.xpose.msra.mxu0 0.0
    %3554 = vmatprep.subr.mxu0 0.0
    %3555 = vmatpush1.xpose.msra.mxu0 0.0
    %3556 = vmatprep.subr.mxu0 0.0
    %3557 = vmatpush1.xpose.msra.mxu0 0.0
    %3558 = vmatprep.subr.mxu0 0.0
    %3559 = vmatpush1.xpose.msra.mxu0 0.0
    %3560 = vmatprep.subr.mxu0 0.0
    %3561 = vmatpush1.xpose.msra.mxu0 0.0
    %3562 = vmatprep.subr.mxu0 0.0
    %3563 = vmatpush1.xpose.msra.mxu0 0.0
    %3564 = vmatprep.subr.mxu0 0.0
    %3565 = vmatpush1.xpose.msra.mxu0 0.0
    %3566 = vmatprep.subr.mxu0 0.0
    %3567 = vmatpush1.xpose.msra.mxu0 0.0
    %3568 = vmatprep.mubr.f32.mxu0 0.0
    %3569 = vmatmul.mubr.f32.gmra.mrb[0].mxu0 %v3500
    %v3570 = vpop.f32.mrb[0].mxu0
    %v3571 = vadd.f32 0.0, %v3570
    %v3572 = vpop.f32.mrb[0].mxu0
    %3573 = vdwg.mxu0
    %3574 = vmatprep.subr.mxu0 0.0
    %3575 = vmatpush1.xpose.msra.mxu0 %v3500
    %3576 = vmatprep.subr.mxu0 0.0
    %3577 = vmatpush1.xpose.msra.mxu0 0.0
    %3578 = vmatprep.subr.mxu0 0.0
    %3579 = vmatpush1.xpose.msra.mxu0 0.0
    %3580 = vmatprep.subr.mxu0 0.0
    %3581 = vmatpush1.xpose.msra.mxu0 0.0
    %3582 = vmatprep.subr.mxu0 0.0
    %3583 = vmatpush1.xpose.msra.mxu0 0.0
    %3584 = vmatprep.subr.mxu0 0.0
    %3585 = vmatpush1.xpose.msra.mxu0 0.0
    %3586 = vmatprep.subr.mxu0 0.0
    %3587 = vmatpush1.xpose.msra.mxu0 0.0
    %3588 = vmatprep.subr.mxu0 0.0
    %3589 = vmatpush1.xpose.msra.mxu0 0.0
    %3590 = vmatprep.subr.mxu0 0.0
    %3591 = vmatpush1.xpose.msra.mxu0 0.0
    %3592 = vmatprep.subr.mxu0 0.0
    %3593 = vmatpush1.xpose.msra.mxu0 0.0
    %3594 = vmatprep.subr.mxu0 0.0
    %3595 = vmatpush1.xpose.msra.mxu0 0.0
    %3596 = vmatprep.subr.mxu0 0.0
    %3597 = vmatpush1.xpose.msra.mxu0 0.0
    %3598 = vmatprep.subr.mxu0 0.0
    %3599 = vmatpush1.xpose.msra.mxu0 0.0
    %3600 = vmatprep.subr.mxu0 0.0
    %3601 = vmatpush1.xpose.msra.mxu0 0.0
    %3602 = vmatprep.subr.mxu0 0.0
    %3603 = vmatpush1.xpose.msra.mxu0 0.0
    %3604 = vmatprep.subr.mxu0 0.0
    %3605 = vmatpush1.xpose.msra.mxu0 0.0
    %3606 = vmatprep.subr.mxu0 0.0
    %3607 = vmatpush1.xpose.msra.mxu0 0.0
    %3608 = vmatprep.subr.mxu0 0.0
    %3609 = vmatpush1.xpose.msra.mxu0 0.0
    %3610 = vmatprep.subr.mxu0 0.0
    %3611 = vmatpush1.xpose.msra.mxu0 0.0
    %3612 = vmatprep.subr.mxu0 0.0
    %3613 = vmatpush1.xpose.msra.mxu0 0.0
    %3614 = vmatprep.subr.mxu0 0.0
    %3615 = vmatpush1.xpose.msra.mxu0 0.0
    %3616 = vmatprep.subr.mxu0 0.0
    %3617 = vmatpush1.xpose.msra.mxu0 0.0
    %3618 = vmatprep.subr.mxu0 0.0
    %3619 = vmatpush1.xpose.msra.mxu0 0.0
    %3620 = vmatprep.subr.mxu0 0.0
    %3621 = vmatpush1.xpose.msra.mxu0 0.0
    %3622 = vmatprep.subr.mxu0 0.0
    %3623 = vmatpush1.xpose.msra.mxu0 0.0
    %3624 = vmatprep.subr.mxu0 0.0
    %3625 = vmatpush1.xpose.msra.mxu0 0.0
    %3626 = vmatprep.subr.mxu0 0.0
    %3627 = vmatpush1.xpose.msra.mxu0 0.0
    %3628 = vmatprep.subr.mxu0 0.0
    %3629 = vmatpush1.xpose.msra.mxu0 0.0
    %3630 = vmatprep.subr.mxu0 0.0
    %3631 = vmatpush1.xpose.msra.mxu0 0.0
    %3632 = vmatprep.subr.mxu0 0.0
    %3633 = vmatpush1.xpose.msra.mxu0 0.0
    %3634 = vmatprep.subr.mxu0 0.0
    %3635 = vmatpush1.xpose.msra.mxu0 0.0
    %3636 = vmatprep.subr.mxu0 0.0
    %3637 = vmatpush1.xpose.msra.mxu0 0.0
    %3638 = vmatprep.mubr.f32.mxu0 0.0
    %3639 = vmatmul.mubr.f32.gmra.mrb[0].mxu0 %v3502
    %v3640 = vpop.f32.mrb[0].mxu0
    %v3641 = vadd.f32 0.0, %v3640
    %v3642 = vpop.f32.mrb[0].mxu0
    %3643 = vdwg.mxu0
    %vm3644 = vcmask 39936
    %v3646 = vsel %vm3644, %v3641, 0
    %v3649 = vsel %vm1418, %v3373, 0
    %3651 = vmatprep.subr.mxu0 0.0
    %3652 = vmatpush1.msra.mxu0 %v3649
    %3653 = vmatprep.subr.mxu0 0.0
    %3654 = vmatpush1.msra.mxu0 0.0
    %3655 = vmatprep.subr.mxu0 0.0
    %3656 = vmatpush1.msra.mxu0 0.0
    %3657 = vmatprep.subr.mxu0 0.0
    %3658 = vmatpush1.msra.mxu0 0.0
    %3659 = vmatprep.subr.mxu0 0.0
    %3660 = vmatpush1.msra.mxu0 0.0
    %3661 = vmatprep.subr.mxu0 0.0
    %3662 = vmatpush1.msra.mxu0 0.0
    %3663 = vmatprep.subr.mxu0 0.0
    %3664 = vmatpush1.msra.mxu0 0.0
    %3665 = vmatprep.subr.mxu0 0.0
    %3666 = vmatpush1.msra.mxu0 0.0
    %3667 = vmatprep.subr.mxu0 0.0
    %3668 = vmatpush1.msra.mxu0 0.0
    %3669 = vmatprep.subr.mxu0 0.0
    %3670 = vmatpush1.msra.mxu0 0.0
    %3671 = vmatprep.subr.mxu0 0.0
    %3672 = vmatpush1.msra.mxu0 0.0
    %3673 = vmatprep.subr.mxu0 0.0
    %3674 = vmatpush1.msra.mxu0 0.0
    %3675 = vmatprep.subr.mxu0 0.0
    %3676 = vmatpush1.msra.mxu0 0.0
    %3677 = vmatprep.subr.mxu0 0.0
    %3678 = vmatpush1.msra.mxu0 0.0
    %3679 = vmatprep.subr.mxu0 0.0
    %3680 = vmatpush1.msra.mxu0 0.0
    %3681 = vmatprep.subr.mxu0 0.0
    %3682 = vmatpush1.msra.mxu0 0.0
    %3683 = vmatprep.subr.mxu0 0.0
    %3684 = vmatpush1.msra.mxu0 0.0
    %3685 = vmatprep.subr.mxu0 0.0
    %3686 = vmatpush1.msra.mxu0 0.0
    %3687 = vmatprep.subr.mxu0 0.0
    %3688 = vmatpush1.msra.mxu0 0.0
    %3689 = vmatprep.subr.mxu0 0.0
    %3690 = vmatpush1.msra.mxu0 0.0
    %3691 = vmatprep.subr.mxu0 0.0
    %3692 = vmatpush1.msra.mxu0 0.0
    %3693 = vmatprep.subr.mxu0 0.0
    %3694 = vmatpush1.msra.mxu0 0.0
    %3695 = vmatprep.subr.mxu0 0.0
    %3696 = vmatpush1.msra.mxu0 0.0
    %3697 = vmatprep.subr.mxu0 0.0
    %3698 = vmatpush1.msra.mxu0 0.0
    %3699 = vmatprep.subr.mxu0 0.0
    %3700 = vmatpush1.msra.mxu0 0.0
    %3701 = vmatprep.subr.mxu0 0.0
    %3702 = vmatpush1.msra.mxu0 0.0
    %3703 = vmatprep.subr.mxu0 0.0
    %3704 = vmatpush1.msra.mxu0 0.0
    %3705 = vmatprep.subr.mxu0 0.0
    %3706 = vmatpush1.msra.mxu0 0.0
    %3707 = vmatprep.subr.mxu0 0.0
    %3708 = vmatpush1.msra.mxu0 0.0
    %3709 = vmatprep.subr.mxu0 0.0
    %3710 = vmatpush1.msra.mxu0 0.0
    %3711 = vmatprep.subr.mxu0 0.0
    %3712 = vmatpush1.msra.mxu0 0.0
    %3713 = vmatprep.subr.mxu0 0.0
    %3714 = vmatpush1.msra.mxu0 0.0
    %3715 = vmatprep.mubr.f32.mxu0 0.0
    %3716 = vmatmul.mubr.f32.gmra.mrb[0].mxu0 %v3646
    %v3717 = vpop.f32.mrb[0].mxu0
    %v3718 = vadd.f32 0.0, %v3717
    %v3719 = vpop.f32.mrb[0].mxu0
    %3720 = vdwg.mxu0
    %3722 = vrot.lane.b32.xlu0 %v3718, 8
    %v3723 = vpop.permute.xlu0 %3722
    %v3725 = vadd.f32 %v3213, %v3723
    %v3726 = vtanh.pop %v3725
    %3728 = vrot.lane.b32.xlu0 %v3213, 120
    %v3729 = vpop.permute.xlu0 %3728
    %vm3730 = vcmask 48128
    %v3732 = vsel %vm3730, %v3571, 0
    %vm3734 = vcmask 1045504
    %v3735 = vsel %vm3734, %v3729, 0
    %3737 = vmatprep.subr.mxu0 0.0
    %3738 = vmatpush1.msra.mxu0 %v3735
    %3739 = vmatprep.subr.mxu0 0.0
    %3740 = vmatpush1.msra.mxu0 0.0
    %3741 = vmatprep.subr.mxu0 0.0
    %3742 = vmatpush1.msra.mxu0 0.0
    %3743 = vmatprep.subr.mxu0 0.0
    %3744 = vmatpush1.msra.mxu0 0.0
    %3745 = vmatprep.subr.mxu0 0.0
    %3746 = vmatpush1.msra.mxu0 0.0
    %3747 = vmatprep.subr.mxu0 0.0
    %3748 = vmatpush1.msra.mxu0 0.0
    %3749 = vmatprep.subr.mxu0 0.0
    %3750 = vmatpush1.msra.mxu0 0.0
    %3751 = vmatprep.subr.mxu0 0.0
    %3752 = vmatpush1.msra.mxu0 0.0
    %3753 = vmatprep.subr.mxu0 0.0
    %3754 = vmatpush1.msra.mxu0 0.0
    %3755 = vmatprep.subr.mxu0 0.0
    %3756 = vmatpush1.msra.mxu0 0.0
    %3757 = vmatprep.subr.mxu0 0.0
    %3758 = vmatpush1.msra.mxu0 0.0
    %3759 = vmatprep.subr.mxu0 0.0
    %3760 = vmatpush1.msra.mxu0 0.0
    %3761 = vmatprep.subr.mxu0 0.0
    %3762 = vmatpush1.msra.mxu0 0.0
    %3763 = vmatprep.subr.mxu0 0.0
    %3764 = vmatpush1.msra.mxu0 0.0
    %3765 = vmatprep.subr.mxu0 0.0
    %3766 = vmatpush1.msra.mxu0 0.0
    %3767 = vmatprep.subr.mxu0 0.0
    %3768 = vmatpush1.msra.mxu0 0.0
    %3769 = vmatprep.subr.mxu0 0.0
    %3770 = vmatpush1.msra.mxu0 0.0
    %3771 = vmatprep.subr.mxu0 0.0
    %3772 = vmatpush1.msra.mxu0 0.0
    %3773 = vmatprep.subr.mxu0 0.0
    %3774 = vmatpush1.msra.mxu0 0.0
    %3775 = vmatprep.subr.mxu0 0.0
    %3776 = vmatpush1.msra.mxu0 0.0
    %3777 = vmatprep.subr.mxu0 0.0
    %3778 = vmatpush1.msra.mxu0 0.0
    %3779 = vmatprep.subr.mxu0 0.0
    %3780 = vmatpush1.msra.mxu0 0.0
    %3781 = vmatprep.subr.mxu0 0.0
    %3782 = vmatpush1.msra.mxu0 0.0
    %3783 = vmatprep.subr.mxu0 0.0
    %3784 = vmatpush1.msra.mxu0 0.0
    %3785 = vmatprep.subr.mxu0 0.0
    %3786 = vmatpush1.msra.mxu0 0.0
    %3787 = vmatprep.subr.mxu0 0.0
    %3788 = vmatpush1.msra.mxu0 0.0
    %3789 = vmatprep.subr.mxu0 0.0
    %3790 = vmatpush1.msra.mxu0 0.0
    %3791 = vmatprep.subr.mxu0 0.0
    %3792 = vmatpush1.msra.mxu0 0.0
    %3793 = vmatprep.subr.mxu0 0.0
    %3794 = vmatpush1.msra.mxu0 0.0
    %3795 = vmatprep.subr.mxu0 0.0
    %3796 = vmatpush1.msra.mxu0 0.0
    %3797 = vmatprep.subr.mxu0 0.0
    %3798 = vmatpush1.msra.mxu0 0.0
    %3799 = vmatprep.subr.mxu0 0.0
    %3800 = vmatpush1.msra.mxu0 0.0
    %3801 = vmatprep.mubr.f32.mxu0 0.0
    %3802 = vmatmul.mubr.f32.gmra.mrb[0].mxu0 %v3732
    %v3803 = vpop.f32.mrb[0].mxu0
    %v3804 = vadd.f32 0.0, %v3803
    %v3805 = vpop.f32.mrb[0].mxu0
    %3806 = vdwg.mxu0
    %v3807 = vadd.f32 %v3373, %v3804
    %v3808 = vtanh.pop %v3807
    %3810 = vrot.lane.b32.xlu0 %v3726, 120
    %v3811 = vpop.permute.xlu0 %3810
    %v3813 = vsel %vm3408, %v3382, 0
    %v3815 = vsel %vm3408, %v3811, 0
    %3817 = vmatprep.subr.mxu0 0.0
    %3818 = vmatpush1.xpose.msra.mxu0 %v3815
    %3819 = vmatprep.subr.mxu0 0.0
    %3820 = vmatpush1.xpose.msra.mxu0 0.0
    %3821 = vmatprep.subr.mxu0 0.0
    %3822 = vmatpush1.xpose.msra.mxu0 0.0
    %3823 = vmatprep.subr.mxu0 0.0
    %3824 = vmatpush1.xpose.msra.mxu0 0.0
    %3825 = vmatprep.subr.mxu0 0.0
    %3826 = vmatpush1.xpose.msra.mxu0 0.0
    %3827 = vmatprep.subr.mxu0 0.0
    %3828 = vmatpush1.xpose.msra.mxu0 0.0
    %3829 = vmatprep.subr.mxu0 0.0
    %3830 = vmatpush1.xpose.msra.mxu0 0.0
    %3831 = vmatprep.subr.mxu0 0.0
    %3832 = vmatpush1.xpose.msra.mxu0 0.0
    %3833 = vmatprep.subr.mxu0 0.0
    %3834 = vmatpush1.xpose.msra.mxu0 0.0
    %3835 = vmatprep.subr.mxu0 0.0
    %3836 = vmatpush1.xpose.msra.mxu0 0.0
    %3837 = vmatprep.subr.mxu0 0.0
    %3838 = vmatpush1.xpose.msra.mxu0 0.0
    %3839 = vmatprep.subr.mxu0 0.0
    %3840 = vmatpush1.xpose.msra.mxu0 0.0
    %3841 = vmatprep.subr.mxu0 0.0
    %3842 = vmatpush1.xpose.msra.mxu0 0.0
    %3843 = vmatprep.subr.mxu0 0.0
    %3844 = vmatpush1.xpose.msra.mxu0 0.0
    %3845 = vmatprep.subr.mxu0 0.0
    %3846 = vmatpush1.xpose.msra.mxu0 0.0
    %3847 = vmatprep.subr.mxu0 0.0
    %3848 = vmatpush1.xpose.msra.mxu0 0.0
    %3849 = vmatprep.subr.mxu0 0.0
    %3850 = vmatpush1.xpose.msra.mxu0 0.0
    %3851 = vmatprep.subr.mxu0 0.0
    %3852 = vmatpush1.xpose.msra.mxu0 0.0
    %3853 = vmatprep.subr.mxu0 0.0
    %3854 = vmatpush1.xpose.msra.mxu0 0.0
    %3855 = vmatprep.subr.mxu0 0.0
    %3856 = vmatpush1.xpose.msra.mxu0 0.0
    %3857 = vmatprep.subr.mxu0 0.0
    %3858 = vmatpush1.xpose.msra.mxu0 0.0
    %3859 = vmatprep.subr.mxu0 0.0
    %3860 = vmatpush1.xpose.msra.mxu0 0.0
    %3861 = vmatprep.subr.mxu0 0.0
    %3862 = vmatpush1.xpose.msra.mxu0 0.0
    %3863 = vmatprep.subr.mxu0 0.0
    %3864 = vmatpush1.xpose.msra.mxu0 0.0
    %3865 = vmatprep.subr.mxu0 0.0
    %3866 = vmatpush1.xpose.msra.mxu0 0.0
    %3867 = vmatprep.subr.mxu0 0.0
    %3868 = vmatpush1.xpose.msra.mxu0 0.0
    %3869 = vmatprep.subr.mxu0 0.0
    %3870 = vmatpush1.xpose.msra.mxu0 0.0
    %3871 = vmatprep.subr.mxu0 0.0
    %3872 = vmatpush1.xpose.msra.mxu0 0.0
    %3873 = vmatprep.subr.mxu0 0.0
    %3874 = vmatpush1.xpose.msra.mxu0 0.0
    %3875 = vmatprep.subr.mxu0 0.0
    %3876 = vmatpush1.xpose.msra.mxu0 0.0
    %3877 = vmatprep.subr.mxu0 0.0
    %3878 = vmatpush1.xpose.msra.mxu0 0.0
    %3879 = vmatprep.subr.mxu0 0.0
    %3880 = vmatpush1.xpose.msra.mxu0 0.0
    %3881 = vmatprep.mubr.f32.mxu0 0.0
    %3882 = vmatmul.mubr.f32.gmra.mrb[0].mxu0 %v3813
    %v3883 = vpop.f32.mrb[0].mxu0
    %v3884 = vadd.f32 0.0, %v3883
    %v3885 = vpop.f32.mrb[0].mxu0
    %3886 = vdwg.mxu0
    %v3887 = vsel %vm3485, %v3884, -inf
    %3888 = vmax.xlane.f32.xlu0 %v3887
    %v3889 = vpop.xlane.xlu0 %3888
    %v3890 = vsub.f32 %v3884, %v3889
    %v3891 = vmul.f32 %v3890, 1.442695
    %v3892 = vpow.pop %v3891
    %v3893 = vsel %vm3485, %v3892, 0.0
    %3894 = vadd.xlane.f32.xlu0 %v3893
    %v3895 = vpop.xlane.xlu0 %3894
    %v3896 = vrcp.pop %v3895
    %v3897 = vmul.f32 %v3892, %v3896
    %v3899 = vsel %vm3408, %v3383, 0
    %v3902 = vsel %vm3408, %v3808, 0
    %3904 = vmatprep.subr.mxu0 0.0
    %3905 = vmatpush1.xpose.msra.mxu0 %v3902
    %3906 = vmatprep.subr.mxu0 0.0
    %3907 = vmatpush1.xpose.msra.mxu0 0.0
    %3908 = vmatprep.subr.mxu0 0.0
    %3909 = vmatpush1.xpose.msra.mxu0 0.0
    %3910 = vmatprep.subr.mxu0 0.0
    %3911 = vmatpush1.xpose.msra.mxu0 0.0
    %3912 = vmatprep.subr.mxu0 0.0
    %3913 = vmatpush1.xpose.msra.mxu0 0.0
    %3914 = vmatprep.subr.mxu0 0.0
    %3915 = vmatpush1.xpose.msra.mxu0 0.0
    %3916 = vmatprep.subr.mxu0 0.0
    %3917 = vmatpush1.xpose.msra.mxu0 0.0
    %3918 = vmatprep.subr.mxu0 0.0
    %3919 = vmatpush1.xpose.msra.mxu0 0.0
    %3920 = vmatprep.subr.mxu0 0.0
    %3921 = vmatpush1.xpose.msra.mxu0 0.0
    %3922 = vmatprep.subr.mxu0 0.0
    %3923 = vmatpush1.xpose.msra.mxu0 0.0
    %3924 = vmatprep.subr.mxu0 0.0
    %3925 = vmatpush1.xpose.msra.mxu0 0.0
    %3926 = vmatprep.subr.mxu0 0.0
    %3927 = vmatpush1.xpose.msra.mxu0 0.0
    %3928 = vmatprep.subr.mxu0 0.0
    %3929 = vmatpush1.xpose.msra.mxu0 0.0
    %3930 = vmatprep.subr.mxu0 0.0
    %3931 = vmatpush1.xpose.msra.mxu0 0.0
    %3932 = vmatprep.subr.mxu0 0.0
    %3933 = vmatpush1.xpose.msra.mxu0 0.0
    %3934 = vmatprep.subr.mxu0 0.0
    %3935 = vmatpush1.xpose.msra.mxu0 0.0
    %3936 = vmatprep.subr.mxu0 0.0
    %3937 = vmatpush1.xpose.msra.mxu0 0.0
    %3938 = vmatprep.subr.mxu0 0.0
    %3939 = vmatpush1.xpose.msra.mxu0 0.0
    %3940 = vmatprep.subr.mxu0 0.0
    %3941 = vmatpush1.xpose.msra.mxu0 0.0
    %3942 = vmatprep.subr.mxu0 0.0
    %3943 = vmatpush1.xpose.msra.mxu0 0.0
    %3944 = vmatprep.subr.mxu0 0.0
    %3945 = vmatpush1.xpose.msra.mxu0 0.0
    %3946 = vmatprep.subr.mxu0 0.0
    %3947 = vmatpush1.xpose.msra.mxu0 0.0
    %3948 = vmatprep.subr.mxu0 0.0
    %3949 = vmatpush1.xpose.msra.mxu0 0.0
    %3950 = vmatprep.subr.mxu0 0.0
    %3951 = vmatpush1.xpose.msra.mxu0 0.0
    %3952 = vmatprep.subr.mxu0 0.0
    %3953 = vmatpush1.xpose.msra.mxu0 0.0
    %3954 = vmatprep.subr.mxu0 0.0
    %3955 = vmatpush1.xpose.msra.mxu0 0.0
    %3956 = vmatprep.subr.mxu0 0.0
    %3957 = vmatpush1.xpose.msra.mxu0 0.0
    %3958 = vmatprep.subr.mxu0 0.0
    %3959 = vmatpush1.xpose.msra.mxu0 0.0
    %3960 = vmatprep.subr.mxu0 0.0
    %3961 = vmatpush1.xpose.msra.mxu0 0.0
    %3962 = vmatprep.subr.mxu0 0.0
    %3963 = vmatpush1.xpose.msra.mxu0 0.0
    %3964 = vmatprep.subr.mxu0 0.0
    %3965 = vmatpush1.xpose.msra.mxu0 0.0
    %3966 = vmatprep.subr.mxu0 0.0
    %3967 = vmatpush1.xpose.msra.mxu0 0.0
    %3968 = vmatprep.mubr.f32.mxu0 0.0
    %3969 = vmatmul.mubr.f32.gmra.mrb[0].mxu0 %v3899
    %v3970 = vpop.f32.mrb[0].mxu0
    %v3971 = vadd.f32 0.0, %v3970
    %v3972 = vpop.f32.mrb[0].mxu0
    %3973 = vdwg.mxu0
    %vm3974 = vcmask 32768
    %v3975 = vsel %vm3974, %v3971, -inf
    %3976 = vmax.xlane.f32.xlu0 %v3975
    %v3977 = vpop.xlane.xlu0 %3976
    %v3978 = vsub.f32 %v3971, %v3977
    %v3979 = vmul.f32 %v3978, 1.442695
    %v3980 = vpow.pop %v3979
    %v3981 = vsel %vm3974, %v3980, 0.0
    %3982 = vadd.xlane.f32.xlu0 %v3981
    %v3983 = vpop.xlane.xlu0 %3982
    %v3984 = vrcp.pop %v3983
    %v3985 = vmul.f32 %v3980, %v3984
    %v3987 = vrot.slane %v3897, 7
    %v3989 = vsel %vm1407, %v3496, %v3987
    %v3991 = vsel %vm3730, %v3989, 0
    %v3993 = vsel %vm3734, %v3498, 0
    %3995 = vmatprep.subr.mxu0 0.0
    %3996 = vmatpush1.msra.mxu0 %v3993
    %3997 = vmatprep.subr.mxu0 0.0
    %3998 = vmatpush1.msra.mxu0 0.0
    %3999 = vmatprep.subr.mxu0 0.0
    %4000 = vmatpush1.msra.mxu0 0.0
    %4001 = vmatprep.subr.mxu0 0.0
    %4002 = vmatpush1.msra.mxu0 0.0
    %4003 = vmatprep.subr.mxu0 0.0
    %4004 = vmatpush1.msra.mxu0 0.0
    %4005 = vmatprep.subr.mxu0 0.0
    %4006 = vmatpush1.msra.mxu0 0.0
    %4007 = vmatprep.subr.mxu0 0.0
    %4008 = vmatpush1.msra.mxu0 0.0
    %4009 = vmatprep.subr.mxu0 0.0
    %4010 = vmatpush1.msra.mxu0 0.0
    %4011 = vmatprep.subr.mxu0 0.0
    %4012 = vmatpush1.msra.mxu0 0.0
    %4013 = vmatprep.subr.mxu0 0.0
    %4014 = vmatpush1.msra.mxu0 0.0
    %4015 = vmatprep.subr.mxu0 0.0
    %4016 = vmatpush1.msra.mxu0 0.0
    %4017 = vmatprep.subr.mxu0 0.0
    %4018 = vmatpush1.msra.mxu0 0.0
    %4019 = vmatprep.subr.mxu0 0.0
    %4020 = vmatpush1.msra.mxu0 0.0
    %4021 = vmatprep.subr.mxu0 0.0
    %4022 = vmatpush1.msra.mxu0 0.0
    %4023 = vmatprep.subr.mxu0 0.0
    %4024 = vmatpush1.msra.mxu0 0.0
    %4025 = vmatprep.subr.mxu0 0.0
    %4026 = vmatpush1.msra.mxu0 0.0
    %4027 = vmatprep.subr.mxu0 0.0
    %4028 = vmatpush1.msra.mxu0 0.0
    %4029 = vmatprep.subr.mxu0 0.0
    %4030 = vmatpush1.msra.mxu0 0.0
    %4031 = vmatprep.subr.mxu0 0.0
    %4032 = vmatpush1.msra.mxu0 0.0
    %4033 = vmatprep.subr.mxu0 0.0
    %4034 = vmatpush1.msra.mxu0 0.0
    %4035 = vmatprep.subr.mxu0 0.0
    %4036 = vmatpush1.msra.mxu0 0.0
    %4037 = vmatprep.subr.mxu0 0.0
    %4038 = vmatpush1.msra.mxu0 0.0
    %4039 = vmatprep.subr.mxu0 0.0
    %4040 = vmatpush1.msra.mxu0 0.0
    %4041 = vmatprep.subr.mxu0 0.0
    %4042 = vmatpush1.msra.mxu0 0.0
    %4043 = vmatprep.subr.mxu0 0.0
    %4044 = vmatpush1.msra.mxu0 0.0
    %4045 = vmatprep.subr.mxu0 0.0
    %4046 = vmatpush1.msra.mxu0 0.0
    %4047 = vmatprep.subr.mxu0 0.0
    %4048 = vmatpush1.msra.mxu0 0.0
    %4049 = vmatprep.subr.mxu0 0.0
    %4050 = vmatpush1.msra.mxu0 0.0
    %4051 = vmatprep.subr.mxu0 0.0
    %4052 = vmatpush1.msra.mxu0 0.0
    %4053 = vmatprep.subr.mxu0 0.0
    %4054 = vmatpush1.msra.mxu0 0.0
    %4055 = vmatprep.subr.mxu0 0.0
    %4056 = vmatpush1.msra.mxu0 0.0
    %4057 = vmatprep.subr.mxu0 0.0
    %4058 = vmatpush1.msra.mxu0 0.0
    %4059 = vmatprep.mubr.f32.mxu0 0.0
    %4060 = vmatmul.mubr.f32.gmra.mrb[0].mxu0 %v3991
    %v4061 = vpop.f32.mrb[0].mxu0
    %v4062 = vadd.f32 0.0, %v4061
    %v4063 = vpop.f32.mrb[0].mxu0
    %4064 = vdwg.mxu0
    %v4066 = vsel %vm3644, %v3985, 0
    %v4068 = vsel %vm1418, %v1701, 0
    %4070 = vmatprep.subr.mxu0 0.0
    %4071 = vmatpush1.msra.mxu0 %v4068
    %4072 = vmatprep.subr.mxu0 0.0
    %4073 = vmatpush1.msra.mxu0 0.0
    %4074 = vmatprep.subr.mxu0 0.0
    %4075 = vmatpush1.msra.mxu0 0.0
    %4076 = vmatprep.subr.mxu0 0.0
    %4077 = vmatpush1.msra.mxu0 0.0
    %4078 = vmatprep.subr.mxu0 0.0
    %4079 = vmatpush1.msra.mxu0 0.0
    %4080 = vmatprep.subr.mxu0 0.0
    %4081 = vmatpush1.msra.mxu0 0.0
    %4082 = vmatprep.subr.mxu0 0.0
    %4083 = vmatpush1.msra.mxu0 0.0
    %4084 = vmatprep.subr.mxu0 0.0
    %4085 = vmatpush1.msra.mxu0 0.0
    %4086 = vmatprep.subr.mxu0 0.0
    %4087 = vmatpush1.msra.mxu0 0.0
    %4088 = vmatprep.subr.mxu0 0.0
    %4089 = vmatpush1.msra.mxu0 0.0
    %4090 = vmatprep.subr.mxu0 0.0
    %4091 = vmatpush1.msra.mxu0 0.0
    %4092 = vmatprep.subr.mxu0 0.0
    %4093 = vmatpush1.msra.mxu0 0.0
    %4094 = vmatprep.subr.mxu0 0.0
    %4095 = vmatpush1.msra.mxu0 0.0
    %4096 = vmatprep.subr.mxu0 0.0
    %4097 = vmatpush1.msra.mxu0 0.0
    %4098 = vmatprep.subr.mxu0 0.0
    %4099 = vmatpush1.msra.mxu0 0.0
    %4100 = vmatprep.subr.mxu0 0.0
    %4101 = vmatpush1.msra.mxu0 0.0
    %4102 = vmatprep.subr.mxu0 0.0
    %4103 = vmatpush1.msra.mxu0 0.0
    %4104 = vmatprep.subr.mxu0 0.0
    %4105 = vmatpush1.msra.mxu0 0.0
    %4106 = vmatprep.subr.mxu0 0.0
    %4107 = vmatpush1.msra.mxu0 0.0
    %4108 = vmatprep.subr.mxu0 0.0
    %4109 = vmatpush1.msra.mxu0 0.0
    %4110 = vmatprep.subr.mxu0 0.0
    %4111 = vmatpush1.msra.mxu0 0.0
    %4112 = vmatprep.subr.mxu0 0.0
    %4113 = vmatpush1.msra.mxu0 0.0
    %4114 = vmatprep.subr.mxu0 0.0
    %4115 = vmatpush1.msra.mxu0 0.0
    %4116 = vmatprep.subr.mxu0 0.0
    %4117 = vmatpush1.msra.mxu0 0.0
    %4118 = vmatprep.subr.mxu0 0.0
    %4119 = vmatpush1.msra.mxu0 0.0
    %4120 = vmatprep.subr.mxu0 0.0
    %4121 = vmatpush1.msra.mxu0 0.0
    %4122 = vmatprep.subr.mxu0 0.0
    %4123 = vmatpush1.msra.mxu0 0.0
    %4124 = vmatprep.subr.mxu0 0.0
    %4125 = vmatpush1.msra.mxu0 0.0
    %4126 = vmatprep.subr.mxu0 0.0
    %4127 = vmatpush1.msra.mxu0 0.0
    %4128 = vmatprep.subr.mxu0 0.0
    %4129 = vmatpush1.msra.mxu0 0.0
    %4130 = vmatprep.subr.mxu0 0.0
    %4131 = vmatpush1.msra.mxu0 0.0
    %4132 = vmatprep.subr.mxu0 0.0
    %4133 = vmatpush1.msra.mxu0 0.0
    %4134 = vmatprep.mubr.f32.mxu0 0.0
    %4135 = vmatmul.mubr.f32.gmra.mrb[0].mxu0 %v4066
    %v4136 = vpop.f32.mrb[0].mxu0
    %v4137 = vadd.f32 0.0, %v4136
    %v4138 = vpop.f32.mrb[0].mxu0
    %4139 = vdwg.mxu0
    %4140 = vrot.lane.b32.xlu0 %v218, 16
    %v4141 = vpop.permute.xlu0 %4140
    %v4144 = vrot.slane %v4062, 1
    %4145 = vrot.lane.b32.xlu0 %v4144, 32
    %v4146 = vpop.permute.xlu0 %4145
    %4149 = vrot.lane.b32.xlu0 %v4137, 48
    %v4150 = vpop.permute.xlu0 %4149
    %4153 = vrot.lane.b32.xlu0 %v2927, 48
    %v4154 = vpop.permute.xlu0 %4153
    %v4156 = vsel %vm500, %v4062, %v4141
    %v4157 = vsel %vm147, %v4156, %v4146
    %vm4158 = vcmask 392192
    %v4159 = vsel %vm4158, %v4157, %v4150
    %vm4160 = vcmask 523264
    %v4161 = vsel %vm4160, %v4159, %v4154
    %v4162 = vlaneseq
    %v4163 = vshrl.u32 %v4162, 7
    %v4164 = vsub.s32 1, %v4163
    %v4165 = vrot.slane %v3001, %v4164
    %4167 = vrot.lane.b32.xlu0 %v4165, 16
    %v4168 = vpop.permute.xlu0 %4167
    %v4170 = vmul.f32 %v1420, %v4168
    %4172 = vrot.lane.b32.xlu0 %v4170, 112
    %v4173 = vpop.permute.xlu0 %4172
    %v4175 = vsel %vm3397, %v4173, 0.0
    %4176 = vadd.xlane.f32.xlu0 %v4175
    %v4177 = vpop.xlane.xlu0 %4176
    %v4178 = vlaneseq
    %v4179 = vshrl.u32 %v4178, 7
    %v4180 = vsub.s32 1, %v4179
    %v4181 = vrot.slane %v3076, %v4180
    %v4182 = vmul.f32 %v4177, %v4181
    %v4184 = vrot.slane %v4182, 2
    %v4186 = vadd.f32 %v3213, %v4184
    %v4187 = vadd.f32 %v3218, %v4184
    %v4188 = vtanh.pop %v4186
    %v4189 = vtanh.pop %v4187
    %v4192 = vrot.slane %v4188, 6
    %v4193 = vrot.slane %v4189, 6
    %v4194 = vsel %vm1410, %v4192, %v4193
    %v4195 = vsel %vm3408, %v4194, 0
    %4197 = vmatprep.subr.mxu0 0.0
    %4198 = vmatpush1.xpose.msra.mxu0 %v4195
    %4199 = vmatprep.subr.mxu0 0.0
    %4200 = vmatpush1.xpose.msra.mxu0 0.0
    %4201 = vmatprep.subr.mxu0 0.0
    %4202 = vmatpush1.xpose.msra.mxu0 0.0
    %4203 = vmatprep.subr.mxu0 0.0
    %4204 = vmatpush1.xpose.msra.mxu0 0.0
    %4205 = vmatprep.subr.mxu0 0.0
    %4206 = vmatpush1.xpose.msra.mxu0 0.0
    %4207 = vmatprep.subr.mxu0 0.0
    %4208 = vmatpush1.xpose.msra.mxu0 0.0
    %4209 = vmatprep.subr.mxu0 0.0
    %4210 = vmatpush1.xpose.msra.mxu0 0.0
    %4211 = vmatprep.subr.mxu0 0.0
    %4212 = vmatpush1.xpose.msra.mxu0 0.0
    %4213 = vmatprep.subr.mxu0 0.0
    %4214 = vmatpush1.xpose.msra.mxu0 0.0
    %4215 = vmatprep.subr.mxu0 0.0
    %4216 = vmatpush1.xpose.msra.mxu0 0.0
    %4217 = vmatprep.subr.mxu0 0.0
    %4218 = vmatpush1.xpose.msra.mxu0 0.0
    %4219 = vmatprep.subr.mxu0 0.0
    %4220 = vmatpush1.xpose.msra.mxu0 0.0
    %4221 = vmatprep.subr.mxu0 0.0
    %4222 = vmatpush1.xpose.msra.mxu0 0.0
    %4223 = vmatprep.subr.mxu0 0.0
    %4224 = vmatpush1.xpose.msra.mxu0 0.0
    %4225 = vmatprep.subr.mxu0 0.0
    %4226 = vmatpush1.xpose.msra.mxu0 0.0
    %4227 = vmatprep.subr.mxu0 0.0
    %4228 = vmatpush1.xpose.msra.mxu0 0.0
    %4229 = vmatprep.subr.mxu0 0.0
    %4230 = vmatpush1.xpose.msra.mxu0 0.0
    %4231 = vmatprep.subr.mxu0 0.0
    %4232 = vmatpush1.xpose.msra.mxu0 0.0
    %4233 = vmatprep.subr.mxu0 0.0
    %4234 = vmatpush1.xpose.msra.mxu0 0.0
    %4235 = vmatprep.subr.mxu0 0.0
    %4236 = vmatpush1.xpose.msra.mxu0 0.0
    %4237 = vmatprep.subr.mxu0 0.0
    %4238 = vmatpush1.xpose.msra.mxu0 0.0
    %4239 = vmatprep.subr.mxu0 0.0
    %4240 = vmatpush1.xpose.msra.mxu0 0.0
    %4241 = vmatprep.subr.mxu0 0.0
    %4242 = vmatpush1.xpose.msra.mxu0 0.0
    %4243 = vmatprep.subr.mxu0 0.0
    %4244 = vmatpush1.xpose.msra.mxu0 0.0
    %4245 = vmatprep.subr.mxu0 0.0
    %4246 = vmatpush1.xpose.msra.mxu0 0.0
    %4247 = vmatprep.subr.mxu0 0.0
    %4248 = vmatpush1.xpose.msra.mxu0 0.0
    %4249 = vmatprep.subr.mxu0 0.0
    %4250 = vmatpush1.xpose.msra.mxu0 0.0
    %4251 = vmatprep.subr.mxu0 0.0
    %4252 = vmatpush1.xpose.msra.mxu0 0.0
    %4253 = vmatprep.subr.mxu0 0.0
    %4254 = vmatpush1.xpose.msra.mxu0 0.0
    %4255 = vmatprep.subr.mxu0 0.0
    %4256 = vmatpush1.xpose.msra.mxu0 0.0
    %4257 = vmatprep.subr.mxu0 0.0
    %4258 = vmatpush1.xpose.msra.mxu0 0.0
    %4259 = vmatprep.subr.mxu0 0.0
    %4260 = vmatpush1.xpose.msra.mxu0 0.0
    %4261 = vmatprep.mubr.f32.mxu0 0.0
    %4262 = vmatmul.mubr.f32.gmra.mrb[0].mxu0 %v3410
    %v4263 = vpop.f32.mrb[0].mxu0
    %v4264 = vadd.f32 0.0, %v4263
    %v4265 = vpop.f32.mrb[0].mxu0
    %4266 = vdwg.mxu0
    %v4267 = vsel %vm3485, %v4264, -inf
    %4268 = vmax.xlane.f32.xlu0 %v4267
    %v4269 = vpop.xlane.xlu0 %4268
    %v4270 = vsub.f32 %v4264, %v4269
    %v4271 = vmul.f32 %v4270, 1.442695
    %v4272 = vpow.pop %v4271
    %v4273 = vsel %vm3485, %v4272, 0.0
    %4274 = vadd.xlane.f32.xlu0 %v4273
    %v4275 = vpop.xlane.xlu0 %4274
    %v4276 = vrcp.pop %v4275
    %v4277 = vmul.f32 %v4272, %v4276
    %v4279 = vrot.slane %v3296, 5
    %v4280 = vrot.slane %v3301, 5
    %v4281 = vsel %vm1413, %v4279, %v4280
    %4282 = vrot.lane.b32.xlu0 %v1420, 112
    %v4283 = vpop.permute.xlu0 %4282
    %v4284 = vsel %vm500, %v4281, 0
    %v4286 = vsel %vm500, %v4283, 0
    %4288 = vmatprep.subr.mxu0 0.0
    %4289 = vmatpush1.xpose.msra.mxu0 %v4286
    %4290 = vmatprep.subr.mxu0 0.0
    %4291 = vmatpush1.xpose.msra.mxu0 0.0
    %4292 = vmatprep.subr.mxu0 0.0
    %4293 = vmatpush1.xpose.msra.mxu0 0.0
    %4294 = vmatprep.subr.mxu0 0.0
    %4295 = vmatpush1.xpose.msra.mxu0 0.0
    %4296 = vmatprep.subr.mxu0 0.0
    %4297 = vmatpush1.xpose.msra.mxu0 0.0
    %4298 = vmatprep.subr.mxu0 0.0
    %4299 = vmatpush1.xpose.msra.mxu0 0.0
    %4300 = vmatprep.subr.mxu0 0.0
    %4301 = vmatpush1.xpose.msra.mxu0 0.0
    %4302 = vmatprep.subr.mxu0 0.0
    %4303 = vmatpush1.xpose.msra.mxu0 0.0
    %4304 = vmatprep.subr.mxu0 0.0
    %4305 = vmatpush1.xpose.msra.mxu0 0.0
    %4306 = vmatprep.subr.mxu0 0.0
    %4307 = vmatpush1.xpose.msra.mxu0 0.0
    %4308 = vmatprep.subr.mxu0 0.0
    %4309 = vmatpush1.xpose.msra.mxu0 0.0
    %4310 = vmatprep.subr.mxu0 0.0
    %4311 = vmatpush1.xpose.msra.mxu0 0.0
    %4312 = vmatprep.subr.mxu0 0.0
    %4313 = vmatpush1.xpose.msra.mxu0 0.0
    %4314 = vmatprep.subr.mxu0 0.0
    %4315 = vmatpush1.xpose.msra.mxu0 0.0
    %4316 = vmatprep.subr.mxu0 0.0
    %4317 = vmatpush1.xpose.msra.mxu0 0.0
    %4318 = vmatprep.subr.mxu0 0.0
    %4319 = vmatpush1.xpose.msra.mxu0 0.0
    %4320 = vmatprep.subr.mxu0 0.0
    %4321 = vmatpush1.xpose.msra.mxu0 0.0
    %4322 = vmatprep.subr.mxu0 0.0
    %4323 = vmatpush1.xpose.msra.mxu0 0.0
    %4324 = vmatprep.subr.mxu0 0.0
    %4325 = vmatpush1.xpose.msra.mxu0 0.0
    %4326 = vmatprep.subr.mxu0 0.0
    %4327 = vmatpush1.xpose.msra.mxu0 0.0
    %4328 = vmatprep.subr.mxu0 0.0
    %4329 = vmatpush1.xpose.msra.mxu0 0.0
    %4330 = vmatprep.subr.mxu0 0.0
    %4331 = vmatpush1.xpose.msra.mxu0 0.0
    %4332 = vmatprep.subr.mxu0 0.0
    %4333 = vmatpush1.xpose.msra.mxu0 0.0
    %4334 = vmatprep.subr.mxu0 0.0
    %4335 = vmatpush1.xpose.msra.mxu0 0.0
    %4336 = vmatprep.subr.mxu0 0.0
    %4337 = vmatpush1.xpose.msra.mxu0 0.0
    %4338 = vmatprep.subr.mxu0 0.0
    %4339 = vmatpush1.xpose.msra.mxu0 0.0
    %4340 = vmatprep.subr.mxu0 0.0
    %4341 = vmatpush1.xpose.msra.mxu0 0.0
    %4342 = vmatprep.subr.mxu0 0.0
    %4343 = vmatpush1.xpose.msra.mxu0 0.0
    %4344 = vmatprep.subr.mxu0 0.0
    %4345 = vmatpush1.xpose.msra.mxu0 0.0
    %4346 = vmatprep.subr.mxu0 0.0
    %4347 = vmatpush1.xpose.msra.mxu0 0.0
    %4348 = vmatprep.subr.mxu0 0.0
    %4349 = vmatpush1.xpose.msra.mxu0 0.0
    %4350 = vmatprep.subr.mxu0 0.0
    %4351 = vmatpush1.xpose.msra.mxu0 0.0
    %4352 = vmatprep.mubr.f32.mxu0 0.0
    %4353 = vmatmul.mubr.f32.gmra.mrb[0].mxu0 %v4284
    %v4354 = vpop.f32.mrb[0].mxu0
    %v4355 = vadd.f32 0.0, %v4354
    %v4356 = vpop.f32.mrb[0].mxu0
    %4357 = vdwg.mxu0
    %4358 = vmatprep.subr.mxu0 0.0
    %4359 = vmatpush1.xpose.msra.mxu0 %v4284
    %4360 = vmatprep.subr.mxu0 0.0
    %4361 = vmatpush1.xpose.msra.mxu0 0.0
    %4362 = vmatprep.subr.mxu0 0.0
    %4363 = vmatpush1.xpose.msra.mxu0 0.0
    %4364 = vmatprep.subr.mxu0 0.0
    %4365 = vmatpush1.xpose.msra.mxu0 0.0
    %4366 = vmatprep.subr.mxu0 0.0
    %4367 = vmatpush1.xpose.msra.mxu0 0.0
    %4368 = vmatprep.subr.mxu0 0.0
    %4369 = vmatpush1.xpose.msra.mxu0 0.0
    %4370 = vmatprep.subr.mxu0 0.0
    %4371 = vmatpush1.xpose.msra.mxu0 0.0
    %4372 = vmatprep.subr.mxu0 0.0
    %4373 = vmatpush1.xpose.msra.mxu0 0.0
    %4374 = vmatprep.subr.mxu0 0.0
    %4375 = vmatpush1.xpose.msra.mxu0 0.0
    %4376 = vmatprep.subr.mxu0 0.0
    %4377 = vmatpush1.xpose.msra.mxu0 0.0
    %4378 = vmatprep.subr.mxu0 0.0
    %4379 = vmatpush1.xpose.msra.mxu0 0.0
    %4380 = vmatprep.subr.mxu0 0.0
    %4381 = vmatpush1.xpose.msra.mxu0 0.0
    %4382 = vmatprep.subr.mxu0 0.0
    %4383 = vmatpush1.xpose.msra.mxu0 0.0
    %4384 = vmatprep.subr.mxu0 0.0
    %4385 = vmatpush1.xpose.msra.mxu0 0.0
    %4386 = vmatprep.subr.mxu0 0.0
    %4387 = vmatpush1.xpose.msra.mxu0 0.0
    %4388 = vmatprep.subr.mxu0 0.0
    %4389 = vmatpush1.xpose.msra.mxu0 0.0
    %4390 = vmatprep.subr.mxu0 0.0
    %4391 = vmatpush1.xpose.msra.mxu0 0.0
    %4392 = vmatprep.subr.mxu0 0.0
    %4393 = vmatpush1.xpose.msra.mxu0 0.0
    %4394 = vmatprep.subr.mxu0 0.0
    %4395 = vmatpush1.xpose.msra.mxu0 0.0
    %4396 = vmatprep.subr.mxu0 0.0
    %4397 = vmatpush1.xpose.msra.mxu0 0.0
    %4398 = vmatprep.subr.mxu0 0.0
    %4399 = vmatpush1.xpose.msra.mxu0 0.0
    %4400 = vmatprep.subr.mxu0 0.0
    %4401 = vmatpush1.xpose.msra.mxu0 0.0
    %4402 = vmatprep.subr.mxu0 0.0
    %4403 = vmatpush1.xpose.msra.mxu0 0.0
    %4404 = vmatprep.subr.mxu0 0.0
    %4405 = vmatpush1.xpose.msra.mxu0 0.0
    %4406 = vmatprep.subr.mxu0 0.0
    %4407 = vmatpush1.xpose.msra.mxu0 0.0
    %4408 = vmatprep.subr.mxu0 0.0
    %4409 = vmatpush1.xpose.msra.mxu0 0.0
    %4410 = vmatprep.subr.mxu0 0.0
    %4411 = vmatpush1.xpose.msra.mxu0 0.0
    %4412 = vmatprep.subr.mxu0 0.0
    %4413 = vmatpush1.xpose.msra.mxu0 0.0
    %4414 = vmatprep.subr.mxu0 0.0
    %4415 = vmatpush1.xpose.msra.mxu0 0.0
    %4416 = vmatprep.subr.mxu0 0.0
    %4417 = vmatpush1.xpose.msra.mxu0 0.0
    %4418 = vmatprep.subr.mxu0 0.0
    %4419 = vmatpush1.xpose.msra.mxu0 0.0
    %4420 = vmatprep.subr.mxu0 0.0
    %4421 = vmatpush1.xpose.msra.mxu0 0.0
    %4422 = vmatprep.mubr.f32.mxu0 0.0
    %4423 = vmatmul.mubr.f32.gmra.mrb[0].mxu0 %v4286
    %v4424 = vpop.f32.mrb[0].mxu0
    %v4425 = vadd.f32 0.0, %v4424
    %v4426 = vpop.f32.mrb[0].mxu0
    %4427 = vdwg.mxu0
    %v4429 = vrot.slane %v3373, 5
    %v4430 = vrot.slane %v3378, 5
    %v4431 = vsel %vm1413, %v4429, %v4430
    %v4433 = vsel %vm3644, %v4425, 0
    %v4435 = vsel %vm1418, %v4431, 0
    %4437 = vmatprep.subr.mxu0 0.0
    %4438 = vmatpush1.msra.mxu0 %v4435
    %4439 = vmatprep.subr.mxu0 0.0
    %4440 = vmatpush1.msra.mxu0 0.0
    %4441 = vmatprep.subr.mxu0 0.0
    %4442 = vmatpush1.msra.mxu0 0.0
    %4443 = vmatprep.subr.mxu0 0.0
    %4444 = vmatpush1.msra.mxu0 0.0
    %4445 = vmatprep.subr.mxu0 0.0
    %4446 = vmatpush1.msra.mxu0 0.0
    %4447 = vmatprep.subr.mxu0 0.0
    %4448 = vmatpush1.msra.mxu0 0.0
    %4449 = vmatprep.subr.mxu0 0.0
    %4450 = vmatpush1.msra.mxu0 0.0
    %4451 = vmatprep.subr.mxu0 0.0
    %4452 = vmatpush1.msra.mxu0 0.0
    %4453 = vmatprep.subr.mxu0 0.0
    %4454 = vmatpush1.msra.mxu0 0.0
    %4455 = vmatprep.subr.mxu0 0.0
    %4456 = vmatpush1.msra.mxu0 0.0
    %4457 = vmatprep.subr.mxu0 0.0
    %4458 = vmatpush1.msra.mxu0 0.0
    %4459 = vmatprep.subr.mxu0 0.0
    %4460 = vmatpush1.msra.mxu0 0.0
    %4461 = vmatprep.subr.mxu0 0.0
    %4462 = vmatpush1.msra.mxu0 0.0
    %4463 = vmatprep.subr.mxu0 0.0
    %4464 = vmatpush1.msra.mxu0 0.0
    %4465 = vmatprep.subr.mxu0 0.0
    %4466 = vmatpush1.msra.mxu0 0.0
    %4467 = vmatprep.subr.mxu0 0.0
    %4468 = vmatpush1.msra.mxu0 0.0
    %4469 = vmatprep.subr.mxu0 0.0
    %4470 = vmatpush1.msra.mxu0 0.0
    %4471 = vmatprep.subr.mxu0 0.0
    %4472 = vmatpush1.msra.mxu0 0.0
    %4473 = vmatprep.subr.mxu0 0.0
    %4474 = vmatpush1.msra.mxu0 0.0
    %4475 = vmatprep.subr.mxu0 0.0
    %4476 = vmatpush1.msra.mxu0 0.0
    %4477 = vmatprep.subr.mxu0 0.0
    %4478 = vmatpush1.msra.mxu0 0.0
    %4479 = vmatprep.subr.mxu0 0.0
    %4480 = vmatpush1.msra.mxu0 0.0
    %4481 = vmatprep.subr.mxu0 0.0
    %4482 = vmatpush1.msra.mxu0 0.0
    %4483 = vmatprep.subr.mxu0 0.0
    %4484 = vmatpush1.msra.mxu0 0.0
    %4485 = vmatprep.subr.mxu0 0.0
    %4486 = vmatpush1.msra.mxu0 0.0
    %4487 = vmatprep.subr.mxu0 0.0
    %4488 = vmatpush1.msra.mxu0 0.0
    %4489 = vmatprep.subr.mxu0 0.0
    %4490 = vmatpush1.msra.mxu0 0.0
    %4491 = vmatprep.subr.mxu0 0.0
    %4492 = vmatpush1.msra.mxu0 0.0
    %4493 = vmatprep.subr.mxu0 0.0
    %4494 = vmatpush1.msra.mxu0 0.0
    %4495 = vmatprep.subr.mxu0 0.0
    %4496 = vmatpush1.msra.mxu0 0.0
    %4497 = vmatprep.subr.mxu0 0.0
    %4498 = vmatpush1.msra.mxu0 0.0
    %4499 = vmatprep.subr.mxu0 0.0
    %4500 = vmatpush1.msra.mxu0 0.0
    %4501 = vmatprep.mubr.f32.mxu0 0.0
    %4502 = vmatmul.mubr.f32.gmra.mrb[0].mxu0 %v4433
    %v4503 = vpop.f32.mrb[0].mxu0
    %v4504 = vadd.f32 0.0, %v4503
    %v4505 = vpop.f32.mrb[0].mxu0
    %4506 = vdwg.mxu0
    %v4508 = vrot.slane %v4504, 2
    %4509 = vrot.lane.b32.xlu0 %v4508, 8
    %v4510 = vpop.permute.xlu0 %4509
    %v4512 = vadd.f32 %v3213, %v4510
    %v4513 = vadd.f32 %v3218, %v4510
    %v4514 = vtanh.pop %v4512
    %v4515 = vtanh.pop %v4513
    %v4517 = vrot.slane %v3213, 6
    %v4518 = vrot.slane %v3218, 6
    %v4519 = vsel %vm1410, %v4517, %v4518
    %4520 = vrot.lane.b32.xlu0 %v4519, 120
    %v4521 = vpop.permute.xlu0 %4520
    %v4523 = vsel %vm3730, %v4355, 0
    %v4525 = vsel %vm3734, %v4521, 0
    %4527 = vmatprep.subr.mxu0 0.0
    %4528 = vmatpush1.msra.mxu0 %v4525
    %4529 = vmatprep.subr.mxu0 0.0
    %4530 = vmatpush1.msra.mxu0 0.0
    %4531 = vmatprep.subr.mxu0 0.0
    %4532 = vmatpush1.msra.mxu0 0.0
    %4533 = vmatprep.subr.mxu0 0.0
    %4534 = vmatpush1.msra.mxu0 0.0
    %4535 = vmatprep.subr.mxu0 0.0
    %4536 = vmatpush1.msra.mxu0 0.0
    %4537 = vmatprep.subr.mxu0 0.0
    %4538 = vmatpush1.msra.mxu0 0.0
    %4539 = vmatprep.subr.mxu0 0.0
    %4540 = vmatpush1.msra.mxu0 0.0
    %4541 = vmatprep.subr.mxu0 0.0
    %4542 = vmatpush1.msra.mxu0 0.0
    %4543 = vmatprep.subr.mxu0 0.0
    %4544 = vmatpush1.msra.mxu0 0.0
    %4545 = vmatprep.subr.mxu0 0.0
    %4546 = vmatpush1.msra.mxu0 0.0
    %4547 = vmatprep.subr.mxu0 0.0
    %4548 = vmatpush1.msra.mxu0 0.0
    %4549 = vmatprep.subr.mxu0 0.0
    %4550 = vmatpush1.msra.mxu0 0.0
    %4551 = vmatprep.subr.mxu0 0.0
    %4552 = vmatpush1.msra.mxu0 0.0
    %4553 = vmatprep.subr.mxu0 0.0
    %4554 = vmatpush1.msra.mxu0 0.0
    %4555 = vmatprep.subr.mxu0 0.0
    %4556 = vmatpush1.msra.mxu0 0.0
    %4557 = vmatprep.subr.mxu0 0.0
    %4558 = vmatpush1.msra.mxu0 0.0
    %4559 = vmatprep.subr.mxu0 0.0
    %4560 = vmatpush1.msra.mxu0 0.0
    %4561 = vmatprep.subr.mxu0 0.0
    %4562 = vmatpush1.msra.mxu0 0.0
    %4563 = vmatprep.subr.mxu0 0.0
    %4564 = vmatpush1.msra.mxu0 0.0
    %4565 = vmatprep.subr.mxu0 0.0
    %4566 = vmatpush1.msra.mxu0 0.0
    %4567 = vmatprep.subr.mxu0 0.0
    %4568 = vmatpush1.msra.mxu0 0.0
    %4569 = vmatprep.subr.mxu0 0.0
    %4570 = vmatpush1.msra.mxu0 0.0
    %4571 = vmatprep.subr.mxu0 0.0
    %4572 = vmatpush1.msra.mxu0 0.0
    %4573 = vmatprep.subr.mxu0 0.0
    %4574 = vmatpush1.msra.mxu0 0.0
    %4575 = vmatprep.subr.mxu0 0.0
    %4576 = vmatpush1.msra.mxu0 0.0
    %4577 = vmatprep.subr.mxu0 0.0
    %4578 = vmatpush1.msra.mxu0 0.0
    %4579 = vmatprep.subr.mxu0 0.0
    %4580 = vmatpush1.msra.mxu0 0.0
    %4581 = vmatprep.subr.mxu0 0.0
    %4582 = vmatpush1.msra.mxu0 0.0
    %4583 = vmatprep.subr.mxu0 0.0
    %4584 = vmatpush1.msra.mxu0 0.0
    %4585 = vmatprep.subr.mxu0 0.0
    %4586 = vmatpush1.msra.mxu0 0.0
    %4587 = vmatprep.subr.mxu0 0.0
    %4588 = vmatpush1.msra.mxu0 0.0
    %4589 = vmatprep.subr.mxu0 0.0
    %4590 = vmatpush1.msra.mxu0 0.0
    %4591 = vmatprep.mubr.f32.mxu0 0.0
    %4592 = vmatmul.mubr.f32.gmra.mrb[0].mxu0 %v4523
    %v4593 = vpop.f32.mrb[0].mxu0
    %v4594 = vadd.f32 0.0, %v4593
    %v4595 = vpop.f32.mrb[0].mxu0
    %4596 = vdwg.mxu0
    %v4598 = vrot.slane %v4594, 3
    %v4600 = vadd.f32 %v3373, %v4598
    %v4601 = vadd.f32 %v3378, %v4598
    %v4602 = vtanh.pop %v4600
    %v4603 = vtanh.pop %v4601
    %v4606 = vrot.slane %v4514, 6
    %v4607 = vrot.slane %v4515, 6
    %v4608 = vsel %vm1410, %v4606, %v4607
    %4609 = vrot.lane.b32.xlu0 %v4608, 120
    %v4610 = vpop.permute.xlu0 %4609
    %v4611 = vsel %vm3408, %v4610, 0
    %4613 = vmatprep.subr.mxu0 0.0
    %4614 = vmatpush1.xpose.msra.mxu0 %v4611
    %4615 = vmatprep.subr.mxu0 0.0
    %4616 = vmatpush1.xpose.msra.mxu0 0.0
    %4617 = vmatprep.subr.mxu0 0.0
    %4618 = vmatpush1.xpose.msra.mxu0 0.0
    %4619 = vmatprep.subr.mxu0 0.0
    %4620 = vmatpush1.xpose.msra.mxu0 0.0
    %4621 = vmatprep.subr.mxu0 0.0
    %4622 = vmatpush1.xpose.msra.mxu0 0.0
    %4623 = vmatprep.subr.mxu0 0.0
    %4624 = vmatpush1.xpose.msra.mxu0 0.0
    %4625 = vmatprep.subr.mxu0 0.0
    %4626 = vmatpush1.xpose.msra.mxu0 0.0
    %4627 = vmatprep.subr.mxu0 0.0
    %4628 = vmatpush1.xpose.msra.mxu0 0.0
    %4629 = vmatprep.subr.mxu0 0.0
    %4630 = vmatpush1.xpose.msra.mxu0 0.0
    %4631 = vmatprep.subr.mxu0 0.0
    %4632 = vmatpush1.xpose.msra.mxu0 0.0
    %4633 = vmatprep.subr.mxu0 0.0
    %4634 = vmatpush1.xpose.msra.mxu0 0.0
    %4635 = vmatprep.subr.mxu0 0.0
    %4636 = vmatpush1.xpose.msra.mxu0 0.0
    %4637 = vmatprep.subr.mxu0 0.0
    %4638 = vmatpush1.xpose.msra.mxu0 0.0
    %4639 = vmatprep.subr.mxu0 0.0
    %4640 = vmatpush1.xpose.msra.mxu0 0.0
    %4641 = vmatprep.subr.mxu0 0.0
    %4642 = vmatpush1.xpose.msra.mxu0 0.0
    %4643 = vmatprep.subr.mxu0 0.0
    %4644 = vmatpush1.xpose.msra.mxu0 0.0
    %4645 = vmatprep.subr.mxu0 0.0
    %4646 = vmatpush1.xpose.msra.mxu0 0.0
    %4647 = vmatprep.subr.mxu0 0.0
    %4648 = vmatpush1.xpose.msra.mxu0 0.0
    %4649 = vmatprep.subr.mxu0 0.0
    %4650 = vmatpush1.xpose.msra.mxu0 0.0
    %4651 = vmatprep.subr.mxu0 0.0
    %4652 = vmatpush1.xpose.msra.mxu0 0.0
    %4653 = vmatprep.subr.mxu0 0.0
    %4654 = vmatpush1.xpose.msra.mxu0 0.0
    %4655 = vmatprep.subr.mxu0 0.0
    %4656 = vmatpush1.xpose.msra.mxu0 0.0
    %4657 = vmatprep.subr.mxu0 0.0
    %4658 = vmatpush1.xpose.msra.mxu0 0.0
    %4659 = vmatprep.subr.mxu0 0.0
    %4660 = vmatpush1.xpose.msra.mxu0 0.0
    %4661 = vmatprep.subr.mxu0 0.0
    %4662 = vmatpush1.xpose.msra.mxu0 0.0
    %4663 = vmatprep.subr.mxu0 0.0
    %4664 = vmatpush1.xpose.msra.mxu0 0.0
    %4665 = vmatprep.subr.mxu0 0.0
    %4666 = vmatpush1.xpose.msra.mxu0 0.0
    %4667 = vmatprep.subr.mxu0 0.0
    %4668 = vmatpush1.xpose.msra.mxu0 0.0
    %4669 = vmatprep.subr.mxu0 0.0
    %4670 = vmatpush1.xpose.msra.mxu0 0.0
    %4671 = vmatprep.subr.mxu0 0.0
    %4672 = vmatpush1.xpose.msra.mxu0 0.0
    %4673 = vmatprep.subr.mxu0 0.0
    %4674 = vmatpush1.xpose.msra.mxu0 0.0
    %4675 = vmatprep.subr.mxu0 0.0
    %4676 = vmatpush1.xpose.msra.mxu0 0.0
    %4677 = vmatprep.mubr.f32.mxu0 0.0
    %4678 = vmatmul.mubr.f32.gmra.mrb[0].mxu0 %v3813
    %v4679 = vpop.f32.mrb[0].mxu0
    %v4680 = vadd.f32 0.0, %v4679
    %v4681 = vpop.f32.mrb[0].mxu0
    %4682 = vdwg.mxu0
    %v4683 = vsel %vm3485, %v4680, -inf
    %4684 = vmax.xlane.f32.xlu0 %v4683
    %v4685 = vpop.xlane.xlu0 %4684
    %v4686 = vsub.f32 %v4680, %v4685
    %v4687 = vmul.f32 %v4686, 1.442695
    %v4688 = vpow.pop %v4687
    %v4689 = vsel %vm3485, %v4688, 0.0
    %4690 = vadd.xlane.f32.xlu0 %v4689
    %v4691 = vpop.xlane.xlu0 %4690
    %v4692 = vrcp.pop %v4691
    %v4693 = vmul.f32 %v4688, %v4692
    %v4696 = vrot.slane %v4602, 5
    %v4697 = vrot.slane %v4603, 5
    %v4698 = vsel %vm1413, %v4696, %v4697
    %v4699 = vsel %vm3408, %v4698, 0
    %4701 = vmatprep.subr.mxu0 0.0
    %4702 = vmatpush1.xpose.msra.mxu0 %v4699
    %4703 = vmatprep.subr.mxu0 0.0
    %4704 = vmatpush1.xpose.msra.mxu0 0.0
    %4705 = vmatprep.subr.mxu0 0.0
    %4706 = vmatpush1.xpose.msra.mxu0 0.0
    %4707 = vmatprep.subr.mxu0 0.0
    %4708 = vmatpush1.xpose.msra.mxu0 0.0
    %4709 = vmatprep.subr.mxu0 0.0
    %4710 = vmatpush1.xpose.msra.mxu0 0.0
    %4711 = vmatprep.subr.mxu0 0.0
    %4712 = vmatpush1.xpose.msra.mxu0 0.0
    %4713 = vmatprep.subr.mxu0 0.0
    %4714 = vmatpush1.xpose.msra.mxu0 0.0
    %4715 = vmatprep.subr.mxu0 0.0
    %4716 = vmatpush1.xpose.msra.mxu0 0.0
    %4717 = vmatprep.subr.mxu0 0.0
    %4718 = vmatpush1.xpose.msra.mxu0 0.0
    %4719 = vmatprep.subr.mxu0 0.0
    %4720 = vmatpush1.xpose.msra.mxu0 0.0
    %4721 = vmatprep.subr.mxu0 0.0
    %4722 = vmatpush1.xpose.msra.mxu0 0.0
    %4723 = vmatprep.subr.mxu0 0.0
    %4724 = vmatpush1.xpose.msra.mxu0 0.0
    %4725 = vmatprep.subr.mxu0 0.0
    %4726 = vmatpush1.xpose.msra.mxu0 0.0
    %4727 = vmatprep.subr.mxu0 0.0
    %4728 = vmatpush1.xpose.msra.mxu0 0.0
    %4729 = vmatprep.subr.mxu0 0.0
    %4730 = vmatpush1.xpose.msra.mxu0 0.0
    %4731 = vmatprep.subr.mxu0 0.0
    %4732 = vmatpush1.xpose.msra.mxu0 0.0
    %4733 = vmatprep.subr.mxu0 0.0
    %4734 = vmatpush1.xpose.msra.mxu0 0.0
    %4735 = vmatprep.subr.mxu0 0.0
    %4736 = vmatpush1.xpose.msra.mxu0 0.0
    %4737 = vmatprep.subr.mxu0 0.0
    %4738 = vmatpush1.xpose.msra.mxu0 0.0
    %4739 = vmatprep.subr.mxu0 0.0
    %4740 = vmatpush1.xpose.msra.mxu0 0.0
    %4741 = vmatprep.subr.mxu0 0.0
    %4742 = vmatpush1.xpose.msra.mxu0 0.0
    %4743 = vmatprep.subr.mxu0 0.0
    %4744 = vmatpush1.xpose.msra.mxu0 0.0
    %4745 = vmatprep.subr.mxu0 0.0
    %4746 = vmatpush1.xpose.msra.mxu0 0.0
    %4747 = vmatprep.subr.mxu0 0.0
    %4748 = vmatpush1.xpose.msra.mxu0 0.0
    %4749 = vmatprep.subr.mxu0 0.0
    %4750 = vmatpush1.xpose.msra.mxu0 0.0
    %4751 = vmatprep.subr.mxu0 0.0
    %4752 = vmatpush1.xpose.msra.mxu0 0.0
    %4753 = vmatprep.subr.mxu0 0.0
    %4754 = vmatpush1.xpose.msra.mxu0 0.0
    %4755 = vmatprep.subr.mxu0 0.0
    %4756 = vmatpush1.xpose.msra.mxu0 0.0
    %4757 = vmatprep.subr.mxu0 0.0
    %4758 = vmatpush1.xpose.msra.mxu0 0.0
    %4759 = vmatprep.subr.mxu0 0.0
    %4760 = vmatpush1.xpose.msra.mxu0 0.0
    %4761 = vmatprep.subr.mxu0 0.0
    %4762 = vmatpush1.xpose.msra.mxu0 0.0
    %4763 = vmatprep.subr.mxu0 0.0
    %4764 = vmatpush1.xpose.msra.mxu0 0.0
    %4765 = vmatprep.mubr.f32.mxu0 0.0
    %4766 = vmatmul.mubr.f32.gmra.mrb[0].mxu0 %v3899
    %v4767 = vpop.f32.mrb[0].mxu0
    %v4768 = vadd.f32 0.0, %v4767
    %v4769 = vpop.f32.mrb[0].mxu0
    %4770 = vdwg.mxu0
    %v4771 = vsel %vm3974, %v4768, -inf
    %4772 = vmax.xlane.f32.xlu0 %v4771
    %v4773 = vpop.xlane.xlu0 %4772
    %v4774 = vsub.f32 %v4768, %v4773
    %v4775 = vmul.f32 %v4774, 1.442695
    %v4776 = vpow.pop %v4775
    %v4777 = vsel %vm3974, %v4776, 0.0
    %4778 = vadd.xlane.f32.xlu0 %v4777
    %v4779 = vpop.xlane.xlu0 %4778
    %v4780 = vrcp.pop %v4779
    %v4781 = vmul.f32 %v4776, %v4780
    %v4783 = vrot.slane %v4693, 7
    %v4785 = vsel %vm1407, %v4277, %v4783
    %v4787 = vsel %vm3730, %v4785, 0
    %v4789 = vsel %vm3734, %v4283, 0
    %4791 = vmatprep.subr.mxu0 0.0
    %4792 = vmatpush1.msra.mxu0 %v4789
    %4793 = vmatprep.subr.mxu0 0.0
    %4794 = vmatpush1.msra.mxu0 0.0
    %4795 = vmatprep.subr.mxu0 0.0
    %4796 = vmatpush1.msra.mxu0 0.0
    %4797 = vmatprep.subr.mxu0 0.0
    %4798 = vmatpush1.msra.mxu0 0.0
    %4799 = vmatprep.subr.mxu0 0.0
    %4800 = vmatpush1.msra.mxu0 0.0
    %4801 = vmatprep.subr.mxu0 0.0
    %4802 = vmatpush1.msra.mxu0 0.0
    %4803 = vmatprep.subr.mxu0 0.0
    %4804 = vmatpush1.msra.mxu0 0.0
    %4805 = vmatprep.subr.mxu0 0.0
    %4806 = vmatpush1.msra.mxu0 0.0
    %4807 = vmatprep.subr.mxu0 0.0
    %4808 = vmatpush1.msra.mxu0 0.0
    %4809 = vmatprep.subr.mxu0 0.0
    %4810 = vmatpush1.msra.mxu0 0.0
    %4811 = vmatprep.subr.mxu0 0.0
    %4812 = vmatpush1.msra.mxu0 0.0
    %4813 = vmatprep.subr.mxu0 0.0
    %4814 = vmatpush1.msra.mxu0 0.0
    %4815 = vmatprep.subr.mxu0 0.0
    %4816 = vmatpush1.msra.mxu0 0.0
    %4817 = vmatprep.subr.mxu0 0.0
    %4818 = vmatpush1.msra.mxu0 0.0
    %4819 = vmatprep.subr.mxu0 0.0
    %4820 = vmatpush1.msra.mxu0 0.0
    %4821 = vmatprep.subr.mxu0 0.0
    %4822 = vmatpush1.msra.mxu0 0.0
    %4823 = vmatprep.subr.mxu0 0.0
    %4824 = vmatpush1.msra.mxu0 0.0
    %4825 = vmatprep.subr.mxu0 0.0
    %4826 = vmatpush1.msra.mxu0 0.0
    %4827 = vmatprep.subr.mxu0 0.0
    %4828 = vmatpush1.msra.mxu0 0.0
    %4829 = vmatprep.subr.mxu0 0.0
    %4830 = vmatpush1.msra.mxu0 0.0
    %4831 = vmatprep.subr.mxu0 0.0
    %4832 = vmatpush1.msra.mxu0 0.0
    %4833 = vmatprep.subr.mxu0 0.0
    %4834 = vmatpush1.msra.mxu0 0.0
    %4835 = vmatprep.subr.mxu0 0.0
    %4836 = vmatpush1.msra.mxu0 0.0
    %4837 = vmatprep.subr.mxu0 0.0
    %4838 = vmatpush1.msra.mxu0 0.0
    %4839 = vmatprep.subr.mxu0 0.0
    %4840 = vmatpush1.msra.mxu0 0.0
    %4841 = vmatprep.subr.mxu0 0.0
    %4842 = vmatpush1.msra.mxu0 0.0
    %4843 = vmatprep.subr.mxu0 0.0
    %4844 = vmatpush1.msra.mxu0 0.0
    %4845 = vmatprep.subr.mxu0 0.0
    %4846 = vmatpush1.msra.mxu0 0.0
    %4847 = vmatprep.subr.mxu0 0.0
    %4848 = vmatpush1.msra.mxu0 0.0
    %4849 = vmatprep.subr.mxu0 0.0
    %4850 = vmatpush1.msra.mxu0 0.0
    %4851 = vmatprep.subr.mxu0 0.0
    %4852 = vmatpush1.msra.mxu0 0.0
    %4853 = vmatprep.subr.mxu0 0.0
    %4854 = vmatpush1.msra.mxu0 0.0
    %4855 = vmatprep.mubr.f32.mxu0 0.0
    %4856 = vmatmul.mubr.f32.gmra.mrb[0].mxu0 %v4787
    %v4857 = vpop.f32.mrb[0].mxu0
    %v4858 = vadd.f32 0.0, %v4857
    %v4859 = vpop.f32.mrb[0].mxu0
    %4860 = vdwg.mxu0
    %v4861 = vrot.slane %v1701, 5
    %v4862 = vrot.slane %v1702, 5
    %v4863 = vsel %vm1413, %v4861, %v4862
    %v4865 = vsel %vm3644, %v4781, 0
    %v4867 = vsel %vm1418, %v4863, 0
    %4869 = vmatprep.subr.mxu0 0.0
    %4870 = vmatpush1.msra.mxu0 %v4867
    %4871 = vmatprep.subr.mxu0 0.0
    %4872 = vmatpush1.msra.mxu0 0.0
    %4873 = vmatprep.subr.mxu0 0.0
    %4874 = vmatpush1.msra.mxu0 0.0
    %4875 = vmatprep.subr.mxu0 0.0
    %4876 = vmatpush1.msra.mxu0 0.0
    %4877 = vmatprep.subr.mxu0 0.0
    %4878 = vmatpush1.msra.mxu0 0.0
    %4879 = vmatprep.subr.mxu0 0.0
    %4880 = vmatpush1.msra.mxu0 0.0
    %4881 = vmatprep.subr.mxu0 0.0
    %4882 = vmatpush1.msra.mxu0 0.0
    %4883 = vmatprep.subr.mxu0 0.0
    %4884 = vmatpush1.msra.mxu0 0.0
    %4885 = vmatprep.subr.mxu0 0.0
    %4886 = vmatpush1.msra.mxu0 0.0
    %4887 = vmatprep.subr.mxu0 0.0
    %4888 = vmatpush1.msra.mxu0 0.0
    %4889 = vmatprep.subr.mxu0 0.0
    %4890 = vmatpush1.msra.mxu0 0.0
    %4891 = vmatprep.subr.mxu0 0.0
    %4892 = vmatpush1.msra.mxu0 0.0
    %4893 = vmatprep.subr.mxu0 0.0
    %4894 = vmatpush1.msra.mxu0 0.0
    %4895 = vmatprep.subr.mxu0 0.0
    %4896 = vmatpush1.msra.mxu0 0.0
    %4897 = vmatprep.subr.mxu0 0.0
    %4898 = vmatpush1.msra.mxu0 0.0
    %4899 = vmatprep.subr.mxu0 0.0
    %4900 = vmatpush1.msra.mxu0 0.0
    %4901 = vmatprep.subr.mxu0 0.0
    %4902 = vmatpush1.msra.mxu0 0.0
    %4903 = vmatprep.subr.mxu0 0.0
    %4904 = vmatpush1.msra.mxu0 0.0
    %4905 = vmatprep.subr.mxu0 0.0
    %4906 = vmatpush1.msra.mxu0 0.0
    %4907 = vmatprep.subr.mxu0 0.0
    %4908 = vmatpush1.msra.mxu0 0.0
    %4909 = vmatprep.subr.mxu0 0.0
    %4910 = vmatpush1.msra.mxu0 0.0
    %4911 = vmatprep.subr.mxu0 0.0
    %4912 = vmatpush1.msra.mxu0 0.0
    %4913 = vmatprep.subr.mxu0 0.0
    %4914 = vmatpush1.msra.mxu0 0.0
    %4915 = vmatprep.subr.mxu0 0.0
    %4916 = vmatpush1.msra.mxu0 0.0
    %4917 = vmatprep.subr.mxu0 0.0
    %4918 = vmatpush1.msra.mxu0 0.0
    %4919 = vmatprep.subr.mxu0 0.0
    %4920 = vmatpush1.msra.mxu0 0.0
    %4921 = vmatprep.subr.mxu0 0.0
    %4922 = vmatpush1.msra.mxu0 0.0
    %4923 = vmatprep.subr.mxu0 0.0
    %4924 = vmatpush1.msra.mxu0 0.0
    %4925 = vmatprep.subr.mxu0 0.0
    %4926 = vmatpush1.msra.mxu0 0.0
    %4927 = vmatprep.subr.mxu0 0.0
    %4928 = vmatpush1.msra.mxu0 0.0
    %4929 = vmatprep.subr.mxu0 0.0
    %4930 = vmatpush1.msra.mxu0 0.0
    %4931 = vmatprep.subr.mxu0 0.0
    %4932 = vmatpush1.msra.mxu0 0.0
    %4933 = vmatprep.mubr.f32.mxu0 0.0
    %4934 = vmatmul.mubr.f32.gmra.mrb[0].mxu0 %v4865
    %v4935 = vpop.f32.mrb[0].mxu0
    %v4936 = vadd.f32 0.0, %v4935
    %v4937 = vpop.f32.mrb[0].mxu0
    %4938 = vdwg.mxu0
    %v4939 = vrot.slane %v218, 1
    %4940 = vrot.lane.b32.xlu0 %v4939, 16
    %v4941 = vpop.permute.xlu0 %4940
    %v4944 = vrot.slane %v4858, 1
    %4945 = vrot.lane.b32.xlu0 %v4944, 32
    %v4946 = vpop.permute.xlu0 %4945
    %4949 = vrot.lane.b32.xlu0 %v4936, 48
    %v4950 = vpop.permute.xlu0 %4949
    %4953 = vrot.lane.b32.xlu0 %v2928, 48
    %v4954 = vpop.permute.xlu0 %4953
    %v4956 = vsel %vm500, %v4858, %v4941
    %v4957 = vsel %vm147, %v4956, %v4946
    %v4958 = vsel %vm4158, %v4957, %v4950
    %v4959 = vsel %vm4160, %v4958, %v4954
    %v4961 = vrot.slane %v4959, 7
    %v4963 = vsel %vm1407, %v4161, %v4961
    %v4964 = vld [vmem:[#allocation2 + $0x170] sm:$0xff]
    %v4965 = vld [vmem:[#allocation2 + $0x178] sm:$0xff]
    %v4966 = vld [vmem:[#allocation2 + $0x180] sm:$0xff]
    %v4967 = vld [vmem:[#allocation2 + $0x188] sm:$0xff]
    %v4968 = vld [vmem:[#allocation2 + $0x190] sm:$0xff]
    %v4969 = vld [vmem:[#allocation2 + $0x198] sm:$0xff]
    %v4970 = vld [vmem:[#allocation2 + $0x1a0] sm:$0xff]
    %v4971 = vld [vmem:[#allocation2 + $0x1a8] sm:$0xff]
    %v4972 = vld [vmem:[#allocation2 + $0x1b0] sm:$0xff]
    %v4973 = vld [vmem:[#allocation2 + $0x1b8] sm:$0xff]
    %v4974 = vld [vmem:[#allocation2 + $0x1c0] sm:$0x1]
    %v4975 = vlaneseq
    %v4976 = vshrl.u32 %v4975, 7
    %v4977 = vsub.s32 0, %v4976
    %v4978 = vrot.slane %v4974, %v4977
    %vm4979 = vcmask 654336
    %v4981 = vsel %vm4979, %v4963, 0
    %4983 = vmatprep.subr.mxu0 0.0
    %4984 = vmatpush1.msra.mxu0 %v4964
    %4985 = vmatprep.subr.mxu0 0.0
    %4986 = vmatpush1.msra.mxu0 %v4965
    %4987 = vmatprep.subr.mxu0 0.0
    %4988 = vmatpush1.msra.mxu0 %v4966
    %4989 = vmatprep.subr.mxu0 0.0
    %4990 = vmatpush1.msra.mxu0 %v4967
    %4991 = vmatprep.subr.mxu0 0.0
    %4992 = vmatpush1.msra.mxu0 %v4968
    %4993 = vmatprep.subr.mxu0 0.0
    %4994 = vmatpush1.msra.mxu0 %v4969
    %4995 = vmatprep.subr.mxu0 0.0
    %4996 = vmatpush1.msra.mxu0 %v4970
    %4997 = vmatprep.subr.mxu0 0.0
    %4998 = vmatpush1.msra.mxu0 %v4971
    %4999 = vmatprep.subr.mxu0 0.0
    %5000 = vmatpush1.msra.mxu0 %v4972
    %5001 = vmatprep.subr.mxu0 0.0
    %5002 = vmatpush1.msra.mxu0 %v4973
    %5003 = vmatprep.subr.mxu0 0.0
    %5004 = vmatpush1.msra.mxu0 0.0
    %5005 = vmatprep.subr.mxu0 0.0
    %5006 = vmatpush1.msra.mxu0 0.0
    %5007 = vmatprep.subr.mxu0 0.0
    %5008 = vmatpush1.msra.mxu0 0.0
    %5009 = vmatprep.subr.mxu0 0.0
    %5010 = vmatpush1.msra.mxu0 0.0
    %5011 = vmatprep.subr.mxu0 0.0
    %5012 = vmatpush1.msra.mxu0 0.0
    %5013 = vmatprep.subr.mxu0 0.0
    %5014 = vmatpush1.msra.mxu0 0.0
    %5015 = vmatprep.subr.mxu0 0.0
    %5016 = vmatpush1.msra.mxu0 0.0
    %5017 = vmatprep.subr.mxu0 0.0
    %5018 = vmatpush1.msra.mxu0 0.0
    %5019 = vmatprep.subr.mxu0 0.0
    %5020 = vmatpush1.msra.mxu0 0.0
    %5021 = vmatprep.subr.mxu0 0.0
    %5022 = vmatpush1.msra.mxu0 0.0
    %5023 = vmatprep.subr.mxu0 0.0
    %5024 = vmatpush1.msra.mxu0 0.0
    %5025 = vmatprep.subr.mxu0 0.0
    %5026 = vmatpush1.msra.mxu0 0.0
    %5027 = vmatprep.subr.mxu0 0.0
    %5028 = vmatpush1.msra.mxu0 0.0
    %5029 = vmatprep.subr.mxu0 0.0
    %5030 = vmatpush1.msra.mxu0 0.0
    %5031 = vmatprep.subr.mxu0 0.0
    %5032 = vmatpush1.msra.mxu0 0.0
    %5033 = vmatprep.subr.mxu0 0.0
    %5034 = vmatpush1.msra.mxu0 0.0
    %5035 = vmatprep.subr.mxu0 0.0
    %5036 = vmatpush1.msra.mxu0 0.0
    %5037 = vmatprep.subr.mxu0 0.0
    %5038 = vmatpush1.msra.mxu0 0.0
    %5039 = vmatprep.subr.mxu0 0.0
    %5040 = vmatpush1.msra.mxu0 0.0
    %5041 = vmatprep.subr.mxu0 0.0
    %5042 = vmatpush1.msra.mxu0 0.0
    %5043 = vmatprep.subr.mxu0 0.0
    %5044 = vmatpush1.msra.mxu0 0.0
    %5045 = vmatprep.subr.mxu0 0.0
    %5046 = vmatpush1.msra.mxu0 0.0
    %5047 = vmatprep.mubr.f32.mxu0 0.0
    %5048 = vmatmul.mubr.f32.gmra.mrb[0].mxu0 %v4981
    %v5049 = vpop.f32.mrb[0].mxu0
    %v5050 = vadd.f32 %v4978, %v5049
    %v5051 = vpop.f32.mrb[0].mxu0
    %5052 = vdwg.mxu0
    %v5053 = vmax.f32 %v5050, 0.0
    %vm5054 = vcmask 9216
    %v5055 = vsel %vm5054, %v5053, -inf
    %5056 = vmax.xlane.f32.xlu0 %v5055
    %v5057 = vpop.xlane.xlu0 %5056
    %v5058 = vsub.f32 %v5053, %v5057
    %v5059 = vmul.f32 %v5058, 1.442695
    %v5060 = vpow.pop %v5059
    %v5061 = vsel %vm5054, %v5060, 0.0
    %5062 = vadd.xlane.f32.xlu0 %v5061
    %v5063 = vpop.xlane.xlu0 %5062
    %v5064 = vrcp.pop %v5063
    %v5065 = vmul.f32 %v5060, %v5064
    %5066 = vst.msk [vmem:[#allocation5] sm:$0x3] %vm5054, %v5065
    // Predicated region
    $region18: #{gcan_forward.1} parent=1 // pred_check
      _
    $region19: #{gcan_forward.1} parent=1 // pred_check_branch
      %5068 = sbr.rel (0) target = $region21
    $region20: #{gcan_forward.1} parent=1 // pred_region
      %s5070 = ssub.s32 32, 32
      %5071 = vsyncadd [#allocation4], %s5070
      %s5073 = sshll.u32 [#allocation5], 4
      %s5074 = int_to_ptr.vmem [resolvable:$true] %s5073
      %5076 = dma.vmem_to_hbm [thread:$0]  %s5074, 32, %s3, [#allocation4]
    $region21: #{gcan_forward.1} parent=1 // pred_fallthru
      _
    // Predicated region
    $region22: #{gcan_forward.1} parent=1 // pred_check
      _
    $region23: #{gcan_forward.1} parent=1 // pred_check_branch
      %5078 = sbr.rel (0) target = $region25
    $region24: #{gcan_forward.1} parent=1 // pred_region
      %5079 = dma.done [#allocation4], 32
    $region25: #{gcan_forward.1} parent=1 // pred_fallthru
      _
    %5080 = vsyncpa [#allocation3], 1
    %5081 = vsyncpa [#allocation4], 1

</llo_original>
